<compile_context>
chip_gen: v6e
topology: v6e:2x2x1
jax: 0.10.0
libtpu: 0.0.40
codegen_flags: <defaults>
</compile_context>

<pallas_src>
import functools

import jax
import jax.numpy as jnp
from jax.experimental import pallas as pl
from jax.experimental.pallas import tpu as pltpu


def _round_up(x, m):
    return ((x + m - 1) // m) * m


def mlp_kernel(x_ref, w1_ref, b1_ref, w2_ref, b2_ref, w3_ref, b3_ref, o_ref):
    # fc1 + sigmoid  (bf16 operands, f32 accumulate, f32 activation math)
    h1 = jnp.dot(x_ref[...], w1_ref[...], preferred_element_type=jnp.float32)
    h1 = jax.nn.sigmoid(h1 + b1_ref[...])
    # fc2 + sigmoid
    h2 = jnp.dot(h1.astype(jnp.bfloat16), w2_ref[...],
                 preferred_element_type=jnp.float32)
    h2 = jax.nn.sigmoid(h2 + b2_ref[...])
    # fc3 + sigmoid
    h3 = jnp.dot(h2.astype(jnp.bfloat16), w3_ref[...],
                 preferred_element_type=jnp.float32)
    o_ref[...] = jax.nn.sigmoid(h3 + b3_ref[...]).astype(o_ref.dtype)


@functools.partial(jax.jit, static_argnames=())
def model_3_2_forward(x, params):
    """x: (B, 1, 28, 28) float32 (NCHW). Returns (B, num_classes) float32."""
    w1, b1, w2, b2, w3, b3 = params
    B = x.shape[0]
    x_flat = x.reshape(B, -1)                      # nn.Flatten -> (B, 784)
    K1 = x_flat.shape[1]
    H1 = w1.shape[1]                               # 1024
    H2 = w2.shape[1]                               # 256
    C = w3.shape[1]                                # num_classes

    # Lane/sublane-friendly padding.
    K1p = _round_up(K1, 128)                       # 784 -> 896
    Cp = max(128, _round_up(C, 128))               # 10  -> 128

    # Batch tile: large enough to amortize per-step overhead, small enough to
    # keep activations + resident weights well inside the scoped VMEM limit.
    TM = 512 if B >= 512 else max(8, _round_up(B, 8))
    Bp = _round_up(B, TM)

    # Pad + cast matmul operands to bf16 (zero pads contribute exactly 0).
    x_p = jnp.pad(x_flat, ((0, Bp - B), (0, K1p - K1))).astype(jnp.bfloat16)
    w1_p = jnp.pad(w1, ((0, K1p - K1), (0, 0))).astype(jnp.bfloat16)
    w2_p = w2.astype(jnp.bfloat16)
    w3_p = jnp.pad(w3, ((0, 0), (0, Cp - C))).astype(jnp.bfloat16)
    b1_p = b1.astype(jnp.float32)
    b2_p = b2.astype(jnp.float32)
    b3_p = jnp.pad(b3, ((0, 0), (0, Cp - C))).astype(jnp.float32)

    nb = Bp // TM

    bytes_accessed = (x_p.size * 2 + w1_p.size * 2 + w2_p.size * 2 +
                      w3_p.size * 2 + b1_p.size * 4 + b2_p.size * 4 +
                      b3_p.size * 4 + Bp * Cp * 4)
    cost = pl.CostEstimate(
        flops=2 * Bp * (K1p * H1 + H1 * H2 + H2 * Cp),
        transcendentals=Bp * (H1 + H2 + Cp),
        bytes_accessed=bytes_accessed,
    )

    out = pl.pallas_call(
        mlp_kernel,
        out_shape=jax.ShapeDtypeStruct((Bp, Cp), jnp.float32),
        grid_spec=pltpu.PrefetchScalarGridSpec(
            num_scalar_prefetch=0,
            grid=(nb,),
            in_specs=[
                pl.BlockSpec((TM, K1p), lambda i: (i, 0)),   # x tile
                pl.BlockSpec((K1p, H1), lambda i: (0, 0)),   # w1 (resident)
                pl.BlockSpec((1, H1), lambda i: (0, 0)),     # b1
                pl.BlockSpec((H1, H2), lambda i: (0, 0)),    # w2
                pl.BlockSpec((1, H2), lambda i: (0, 0)),     # b2
                pl.BlockSpec((H2, Cp), lambda i: (0, 0)),    # w3
                pl.BlockSpec((1, Cp), lambda i: (0, 0)),     # b3
            ],
            out_specs=pl.BlockSpec((TM, Cp), lambda i: (i, 0)),
        ),
        compiler_params=pltpu.CompilerParams(
            dimension_semantics=("parallel",),
        ),
        cost_estimate=cost,
    )(x_p, w1_p, b1_p, w2_p, b2_p, w3_p, b3_p)

    return out[:B, :C]


def init_params(key, num_classes):
    """Deterministic parameter init (shapes match Model_3_2.__init__)."""
    k1, k2, k3, k4, k5, k6 = jax.random.split(key, 6)

    def lin(kw, kb, fan_in, fan_out):
        bound = 1.0 / jnp.sqrt(fan_in)
        w = jax.random.uniform(kw, (fan_in, fan_out), jnp.float32, -bound, bound)
        b = jax.random.uniform(kb, (1, fan_out), jnp.float32, -bound, bound)
        return w, b

    w1, b1 = lin(k1, k2, 28 * 28, 1024)
    w2, b2 = lin(k3, k4, 1024, 256)
    w3, b3 = lin(k5, k6, 256, num_classes)
    return (w1, b1, w2, b2, w3, b3)


def reference_forward(x, params):
    """Pure-JAX reference mirroring the kernel's bf16-operand / f32-accum math."""
    w1, b1, w2, b2, w3, b3 = params
    h = x.reshape(x.shape[0], -1).astype(jnp.bfloat16)
    h = jax.nn.sigmoid(
        jnp.dot(h, w1.astype(jnp.bfloat16), preferred_element_type=jnp.float32) + b1)
    h = jax.nn.sigmoid(
        jnp.dot(h.astype(jnp.bfloat16), w2.astype(jnp.bfloat16),
                preferred_element_type=jnp.float32) + b2)
    h = jax.nn.sigmoid(
        jnp.dot(h.astype(jnp.bfloat16), w3.astype(jnp.bfloat16),
                preferred_element_type=jnp.float32) + b3)
    return h


if __name__ == "__main__":
    key = jax.random.PRNGKey(0)
    kx, kp = jax.random.split(key)

    num_classes = 10
    batch = 8
    x = jax.random.normal(kx, (batch, 1, 28, 28), dtype=jnp.float32)  # NCHW
    params = init_params(kp, num_classes)

    out = model_3_2_forward(x, params)
    out = jax.block_until_ready(out)

    ref = reference_forward(x, params)
    assert out.shape == (batch, num_classes)
    assert jnp.allclose(out, ref, atol=2e-3, rtol=2e-3), (
        float(jnp.max(jnp.abs(out - ref))))

    print("KERNEL_OK")
</pallas_src>

<mosaic_0001>
module attributes {stable_mosaic.version = 11 : i64} {
  func.func @mlp_kernel(%arg0: i32, %arg1: memref<8x896xbf16, #tpu.memory_space<vmem>>, %arg2: memref<896x1024xbf16, #tpu.memory_space<vmem>>, %arg3: memref<1x1024xf32, #tpu.memory_space<vmem>>, %arg4: memref<1024x256xbf16, #tpu.memory_space<vmem>>, %arg5: memref<1x256xf32, #tpu.memory_space<vmem>>, %arg6: memref<256x128xbf16, #tpu.memory_space<vmem>>, %arg7: memref<1x128xf32, #tpu.memory_space<vmem>>, %arg8: memref<8x128xf32, #tpu.memory_space<vmem>>) attributes {dimension_semantics = [#tpu.dimension_semantics<parallel>], iteration_bounds = array<i64: 1>, scalar_prefetch = 0 : i64, scratch_operands = 0 : i64, tpu.core_type = #tpu.core_type<tc>, window_params = [{transform_indices = @transform_0, window_bounds = array<i64: 8, 896>}, {pipeline_mode = #tpu.pipeline_mode<synchronous>, transform_indices = @transform_1, window_bounds = array<i64: 896, 1024>}, {pipeline_mode = #tpu.pipeline_mode<synchronous>, transform_indices = @transform_2, window_bounds = array<i64: 1, 1024>}, {pipeline_mode = #tpu.pipeline_mode<synchronous>, transform_indices = @transform_3, window_bounds = array<i64: 1024, 256>}, {pipeline_mode = #tpu.pipeline_mode<synchronous>, transform_indices = @transform_4, window_bounds = array<i64: 1, 256>}, {pipeline_mode = #tpu.pipeline_mode<synchronous>, transform_indices = @transform_5, window_bounds = array<i64: 256, 128>}, {pipeline_mode = #tpu.pipeline_mode<synchronous>, transform_indices = @transform_6, window_bounds = array<i64: 1, 128>}, {transform_indices = @transform_7, window_bounds = array<i64: 8, 128>}]} {
    %c0 = arith.constant 0 : index
    %c0_0 = arith.constant 0 : index
    %0 = vector.load %arg1[%c0, %c0_0] : memref<8x896xbf16, #tpu.memory_space<vmem>>, vector<8x896xbf16>
    %c0_1 = arith.constant 0 : index
    %c0_2 = arith.constant 0 : index
    %1 = vector.load %arg2[%c0_1, %c0_2] : memref<896x1024xbf16, #tpu.memory_space<vmem>>, vector<896x1024xbf16>
    %cst = arith.constant dense<0.000000e+00> : vector<8x1024xf32>
    %2 = tpu.matmul %0, %1, %cst {dimension_numbers = #tpu.dot_dimension_numbers<[1], [0], [0], [1], [0, 0, 1, 1], [], []>} : vector<8x896xbf16>, vector<896x1024xbf16>, vector<8x1024xf32> -> vector<8x1024xf32>
    %c0_3 = arith.constant 0 : index
    %c0_4 = arith.constant 0 : index
    %3 = vector.load %arg3[%c0_3, %c0_4] : memref<1x1024xf32, #tpu.memory_space<vmem>>, vector<1x1024xf32>
    %4 = vector.broadcast %3 : vector<1x1024xf32> to vector<8x1024xf32>
    %5 = arith.addf %2, %4 : vector<8x1024xf32>
    %6 = arith.negf %5 : vector<8x1024xf32>
    %7 = math.exp %6 : vector<8x1024xf32>
    %cst_5 = arith.constant 1.000000e+00 : f32
    %8 = vector.broadcast %cst_5 : f32 to vector<8x1024xf32>
    %9 = arith.addf %8, %7 : vector<8x1024xf32>
    %10 = arith.divf %8, %9 : vector<8x1024xf32>
    %11 = arith.truncf %10 : vector<8x1024xf32> to vector<8x1024xbf16>
    %c0_6 = arith.constant 0 : index
    %c0_7 = arith.constant 0 : index
    %12 = vector.load %arg4[%c0_6, %c0_7] : memref<1024x256xbf16, #tpu.memory_space<vmem>>, vector<1024x256xbf16>
    %cst_8 = arith.constant dense<0.000000e+00> : vector<8x256xf32>
    %13 = tpu.matmul %11, %12, %cst_8 {dimension_numbers = #tpu.dot_dimension_numbers<[1], [0], [0], [1], [0, 0, 1, 1], [], []>} : vector<8x1024xbf16>, vector<1024x256xbf16>, vector<8x256xf32> -> vector<8x256xf32>
    %c0_9 = arith.constant 0 : index
    %c0_10 = arith.constant 0 : index
    %14 = vector.load %arg5[%c0_9, %c0_10] : memref<1x256xf32, #tpu.memory_space<vmem>>, vector<1x256xf32>
    %15 = vector.broadcast %14 : vector<1x256xf32> to vector<8x256xf32>
    %16 = arith.addf %13, %15 : vector<8x256xf32>
    %17 = arith.negf %16 : vector<8x256xf32>
    %18 = math.exp %17 : vector<8x256xf32>
    %cst_11 = arith.constant 1.000000e+00 : f32
    %19 = vector.broadcast %cst_11 : f32 to vector<8x256xf32>
    %20 = arith.addf %19, %18 : vector<8x256xf32>
    %21 = arith.divf %19, %20 : vector<8x256xf32>
    %22 = arith.truncf %21 : vector<8x256xf32> to vector<8x256xbf16>
    %c0_12 = arith.constant 0 : index
    %c0_13 = arith.constant 0 : index
    %23 = vector.load %arg6[%c0_12, %c0_13] : memref<256x128xbf16, #tpu.memory_space<vmem>>, vector<256x128xbf16>
    %cst_14 = arith.constant dense<0.000000e+00> : vector<8x128xf32>
    %24 = tpu.matmul %22, %23, %cst_14 {dimension_numbers = #tpu.dot_dimension_numbers<[1], [0], [0], [1], [0, 0, 1, 1], [], []>} : vector<8x256xbf16>, vector<256x128xbf16>, vector<8x128xf32> -> vector<8x128xf32>
    %c0_15 = arith.constant 0 : index
    %c0_16 = arith.constant 0 : index
    %25 = vector.load %arg7[%c0_15, %c0_16] : memref<1x128xf32, #tpu.memory_space<vmem>>, vector<1x128xf32>
    %26 = vector.broadcast %25 : vector<1x128xf32> to vector<8x128xf32>
    %27 = arith.addf %24, %26 : vector<8x128xf32>
    %28 = arith.negf %27 : vector<8x128xf32>
    %29 = math.exp %28 : vector<8x128xf32>
    %cst_17 = arith.constant 1.000000e+00 : f32
    %30 = vector.broadcast %cst_17 : f32 to vector<8x128xf32>
    %31 = arith.addf %30, %29 : vector<8x128xf32>
    %32 = arith.divf %30, %31 : vector<8x128xf32>
    %c0_18 = arith.constant 0 : index
    %c0_19 = arith.constant 0 : index
    %33 = vector.load %arg8[%c0_18, %c0_19] : memref<8x128xf32, #tpu.memory_space<vmem>>, vector<8x128xf32>
    tpu.vector_store %arg8[%c0_18, %c0_19], %32 {strides = array<i32>} : memref<8x128xf32, #tpu.memory_space<vmem>>, vector<8x128xf32>,
    return
  }
  func.func @transform_0(%arg0: i32) -> (i32, i32) {
    %c0_i32 = arith.constant 0 : i32
    %c0_i32_0 = arith.constant 0 : i32
    return %arg0, %c0_i32 : i32, i32
  }
  func.func @transform_1(%arg0: i32) -> (i32, i32) {
    %c0_i32 = arith.constant 0 : i32
    %c0_i32_0 = arith.constant 0 : i32
    %c0_i32_1 = arith.constant 0 : i32
    return %c0_i32, %c0_i32_0 : i32, i32
  }
  func.func @transform_2(%arg0: i32) -> (i32, i32) {
    %c0_i32 = arith.constant 0 : i32
    %c0_i32_0 = arith.constant 0 : i32
    %c0_i32_1 = arith.constant 0 : i32
    return %c0_i32, %c0_i32_0 : i32, i32
  }
  func.func @transform_3(%arg0: i32) -> (i32, i32) {
    %c0_i32 = arith.constant 0 : i32
    %c0_i32_0 = arith.constant 0 : i32
    %c0_i32_1 = arith.constant 0 : i32
    return %c0_i32, %c0_i32_0 : i32, i32
  }
  func.func @transform_4(%arg0: i32) -> (i32, i32) {
    %c0_i32 = arith.constant 0 : i32
    %c0_i32_0 = arith.constant 0 : i32
    %c0_i32_1 = arith.constant 0 : i32
    return %c0_i32, %c0_i32_0 : i32, i32
  }
  func.func @transform_5(%arg0: i32) -> (i32, i32) {
    %c0_i32 = arith.constant 0 : i32
    %c0_i32_0 = arith.constant 0 : i32
    %c0_i32_1 = arith.constant 0 : i32
    return %c0_i32, %c0_i32_0 : i32, i32
  }
  func.func @transform_6(%arg0: i32) -> (i32, i32) {
    %c0_i32 = arith.constant 0 : i32
    %c0_i32_0 = arith.constant 0 : i32
    %c0_i32_1 = arith.constant 0 : i32
    return %c0_i32, %c0_i32_0 : i32, i32
  }
  func.func @transform_7(%arg0: i32) -> (i32, i32) {
    %c0_i32 = arith.constant 0 : i32
    %c0_i32_0 = arith.constant 0 : i32
    return %arg0, %c0_i32 : i32, i32
  }
}

</mosaic_0001>

<llo_original>
// kernel: model_3_2_forward.1
$region0: #{model_3_2_forward.1}
  #allocation0 [shape = 'u32[]', space=smem, size = 0x4, offset = 0x4, fixed_abs, tag = 'smem constant byte address 0x4 - core index']
  #allocation1 [shape = 'u32[144,128]{1,0:T(1,128)}', space=vmem, size = 0x12000, scoped, tag = 'internal scratch']
  %s0 = inlined_call_operand.vmem [shape: bf16[8,896], index: 0, kind: input, shape index: {}]
  %s1 = inlined_call_operand.vmem [shape: bf16[896,1024], index: 1, kind: input, shape index: {}]
  %s2 = inlined_call_operand.vmem [shape: f32[1,1024], index: 2, kind: input, shape index: {}]
  %s3 = inlined_call_operand.vmem [shape: bf16[1024,256], index: 3, kind: input, shape index: {}]
  %s4 = inlined_call_operand.vmem [shape: f32[1,256], index: 4, kind: input, shape index: {}]
  %s5 = inlined_call_operand.vmem [shape: bf16[256,128], index: 5, kind: input, shape index: {}]
  %s6 = inlined_call_operand.vmem [shape: f32[1,128], index: 6, kind: input, shape index: {}]
  %s7 = inlined_call_operand.hbm [shape: f32[8,128], index: 7, kind: output, shape index: {}]
  %s8 = sld [smem:[#allocation0]]
  $region38: #{model_3_2_forward.1} parent=0
    _
  %s10 = ssub.s32 1, %s8
  %s11 = scalar_select 0, %s10, %s8
  $region1: #{model_3_2_forward.1} parent=0
    #allocation2 [shape = 'u8[4096]{0}', space=vmem, size = 0x1000, scoped, tag = 'output window, operand 0, single buffered']
    #allocation3 [shape = 's32[1]{0}', space=sflag, size = 0x4, scoped, tag = 'scoped memory for model_3_2_forward.1']
    %12 = vsyncpa [#allocation3], 0
    // Predicated region
    $region2: #{model_3_2_forward.1} parent=1 // pred_check
      _
    $region3: #{model_3_2_forward.1} parent=1 // pred_check_branch
      %14 = sbr.rel (0) target = $region5
    $region4: #{model_3_2_forward.1} parent=1 // pred_region
      _
    $region5: #{model_3_2_forward.1} parent=1 // pred_fallthru
      _
    // Predicated region
    $region6: #{model_3_2_forward.1} parent=1 // pred_check
      _
    $region7: #{model_3_2_forward.1} parent=1 // pred_check_branch
      %16 = sbr.rel (0) target = $region9
    $region8: #{model_3_2_forward.1} parent=1 // pred_region
      _
    $region9: #{model_3_2_forward.1} parent=1 // pred_fallthru
      _
    // Predicated region
    $region10: #{model_3_2_forward.1} parent=1 // pred_check
      _
    $region11: #{model_3_2_forward.1} parent=1 // pred_check_branch
      %18 = sbr.rel (0) target = $region13
    $region12: #{model_3_2_forward.1} parent=1 // pred_region
      _
    $region13: #{model_3_2_forward.1} parent=1 // pred_fallthru
      _
    // Predicated region
    $region14: #{model_3_2_forward.1} parent=1 // pred_check
      _
    $region15: #{model_3_2_forward.1} parent=1 // pred_check_branch
      %20 = sbr.rel (0) target = $region17
    $region16: #{model_3_2_forward.1} parent=1 // pred_region
      _
    $region17: #{model_3_2_forward.1} parent=1 // pred_fallthru
      _
    // Predicated region
    $region18: #{model_3_2_forward.1} parent=1 // pred_check
      _
    $region19: #{model_3_2_forward.1} parent=1 // pred_check_branch
      %22 = sbr.rel (0) target = $region21
    $region20: #{model_3_2_forward.1} parent=1 // pred_region
      _
    $region21: #{model_3_2_forward.1} parent=1 // pred_fallthru
      _
    // Predicated region
    $region22: #{model_3_2_forward.1} parent=1 // pred_check
      _
    $region23: #{model_3_2_forward.1} parent=1 // pred_check_branch
      %24 = sbr.rel (0) target = $region25
    $region24: #{model_3_2_forward.1} parent=1 // pred_region
      _
    $region25: #{model_3_2_forward.1} parent=1 // pred_fallthru
      _
    // Predicated region
    $region26: #{model_3_2_forward.1} parent=1 // pred_check
      _
    $region27: #{model_3_2_forward.1} parent=1 // pred_check_branch
      %26 = sbr.rel (0) target = $region29
    $region28: #{model_3_2_forward.1} parent=1 // pred_region
      _
    $region29: #{model_3_2_forward.1} parent=1 // pred_fallthru
      _
    %v28 = vld [vmem:[%s0] sm:$0xff]
    %v29 = vld [vmem:[%s0 + $0x8] sm:$0xff]
    %v30 = vld [vmem:[%s0 + $0x10] sm:$0xff]
    %v31 = vld [vmem:[%s0 + $0x18] sm:$0xf]
    %v32 = vld [vmem:[%s1] sm:$0xff]
    %v33 = vld [vmem:[%s1 + $0x8] sm:$0xff]
    %v34 = vld [vmem:[%s1 + $0x10] sm:$0xff]
    %v35 = vld [vmem:[%s1 + $0x18] sm:$0xff]
    %v36 = vld [vmem:[%s1 + $0x20] sm:$0xff]
    %v37 = vld [vmem:[%s1 + $0x28] sm:$0xff]
    %v38 = vld [vmem:[%s1 + $0x30] sm:$0xff]
    %v39 = vld [vmem:[%s1 + $0x38] sm:$0xff]
    %v40 = vld [vmem:[%s1 + $0x40] sm:$0xff]
    %v41 = vld [vmem:[%s1 + $0x48] sm:$0xff]
    %v42 = vld [vmem:[%s1 + $0x50] sm:$0xff]
    %v43 = vld [vmem:[%s1 + $0x58] sm:$0xff]
    %v44 = vld [vmem:[%s1 + $0x60] sm:$0xff]
    %v45 = vld [vmem:[%s1 + $0x68] sm:$0xff]
    %v46 = vld [vmem:[%s1 + $0x70] sm:$0xff]
    %v47 = vld [vmem:[%s1 + $0x78] sm:$0xff]
    %v48 = vld [vmem:[%s1 + $0x80] sm:$0xff]
    %v49 = vld [vmem:[%s1 + $0x88] sm:$0xff]
    %v50 = vld [vmem:[%s1 + $0x90] sm:$0xff]
    %v51 = vld [vmem:[%s1 + $0x98] sm:$0xff]
    %v52 = vld [vmem:[%s1 + $0xa0] sm:$0xff]
    %v53 = vld [vmem:[%s1 + $0xa8] sm:$0xff]
    %v54 = vld [vmem:[%s1 + $0xb0] sm:$0xff]
    %v55 = vld [vmem:[%s1 + $0xb8] sm:$0xff]
    %v56 = vld [vmem:[%s1 + $0xc0] sm:$0xff]
    %v57 = vld [vmem:[%s1 + $0xc8] sm:$0xff]
    %v58 = vld [vmem:[%s1 + $0xd0] sm:$0xff]
    %v59 = vld [vmem:[%s1 + $0xd8] sm:$0xff]
    %v60 = vld [vmem:[%s1 + $0xe0] sm:$0xff]
    %v61 = vld [vmem:[%s1 + $0xe8] sm:$0xff]
    %v62 = vld [vmem:[%s1 + $0xf0] sm:$0xff]
    %v63 = vld [vmem:[%s1 + $0xf8] sm:$0xff]
    %v64 = vld [vmem:[%s1 + $0x100] sm:$0xff]
    %v65 = vld [vmem:[%s1 + $0x108] sm:$0xff]
    %v66 = vld [vmem:[%s1 + $0x110] sm:$0xff]
    %v67 = vld [vmem:[%s1 + $0x118] sm:$0xff]
    %v68 = vld [vmem:[%s1 + $0x120] sm:$0xff]
    %v69 = vld [vmem:[%s1 + $0x128] sm:$0xff]
    %v70 = vld [vmem:[%s1 + $0x130] sm:$0xff]
    %v71 = vld [vmem:[%s1 + $0x138] sm:$0xff]
    %v72 = vld [vmem:[%s1 + $0x140] sm:$0xff]
    %v73 = vld [vmem:[%s1 + $0x148] sm:$0xff]
    %v74 = vld [vmem:[%s1 + $0x150] sm:$0xff]
    %v75 = vld [vmem:[%s1 + $0x158] sm:$0xff]
    %v76 = vld [vmem:[%s1 + $0x160] sm:$0xff]
    %v77 = vld [vmem:[%s1 + $0x168] sm:$0xff]
    %v78 = vld [vmem:[%s1 + $0x170] sm:$0xff]
    %v79 = vld [vmem:[%s1 + $0x178] sm:$0xff]
    %v80 = vld [vmem:[%s1 + $0x180] sm:$0xff]
    %v81 = vld [vmem:[%s1 + $0x188] sm:$0xff]
    %v82 = vld [vmem:[%s1 + $0x190] sm:$0xff]
    %v83 = vld [vmem:[%s1 + $0x198] sm:$0xff]
    %v84 = vld [vmem:[%s1 + $0x1a0] sm:$0xff]
    %v85 = vld [vmem:[%s1 + $0x1a8] sm:$0xff]
    %v86 = vld [vmem:[%s1 + $0x1b0] sm:$0xff]
    %v87 = vld [vmem:[%s1 + $0x1b8] sm:$0xff]
    %v88 = vld [vmem:[%s1 + $0x1c0] sm:$0xff]
    %v89 = vld [vmem:[%s1 + $0x1c8] sm:$0xff]
    %v90 = vld [vmem:[%s1 + $0x1d0] sm:$0xff]
    %v91 = vld [vmem:[%s1 + $0x1d8] sm:$0xff]
    %v92 = vld [vmem:[%s1 + $0x1e0] sm:$0xff]
    %v93 = vld [vmem:[%s1 + $0x1e8] sm:$0xff]
    %v94 = vld [vmem:[%s1 + $0x1f0] sm:$0xff]
    %v95 = vld [vmem:[%s1 + $0x1f8] sm:$0xff]
    %v96 = vld [vmem:[%s1 + $0x200] sm:$0xff]
    %v97 = vld [vmem:[%s1 + $0x208] sm:$0xff]
    %v98 = vld [vmem:[%s1 + $0x210] sm:$0xff]
    %v99 = vld [vmem:[%s1 + $0x218] sm:$0xff]
    %v100 = vld [vmem:[%s1 + $0x220] sm:$0xff]
    %v101 = vld [vmem:[%s1 + $0x228] sm:$0xff]
    %v102 = vld [vmem:[%s1 + $0x230] sm:$0xff]
    %v103 = vld [vmem:[%s1 + $0x238] sm:$0xff]
    %v104 = vld [vmem:[%s1 + $0x240] sm:$0xff]
    %v105 = vld [vmem:[%s1 + $0x248] sm:$0xff]
    %v106 = vld [vmem:[%s1 + $0x250] sm:$0xff]
    %v107 = vld [vmem:[%s1 + $0x258] sm:$0xff]
    %v108 = vld [vmem:[%s1 + $0x260] sm:$0xff]
    %v109 = vld [vmem:[%s1 + $0x268] sm:$0xff]
    %v110 = vld [vmem:[%s1 + $0x270] sm:$0xff]
    %v111 = vld [vmem:[%s1 + $0x278] sm:$0xff]
    %v112 = vld [vmem:[%s1 + $0x280] sm:$0xff]
    %v113 = vld [vmem:[%s1 + $0x288] sm:$0xff]
    %v114 = vld [vmem:[%s1 + $0x290] sm:$0xff]
    %v115 = vld [vmem:[%s1 + $0x298] sm:$0xff]
    %v116 = vld [vmem:[%s1 + $0x2a0] sm:$0xff]
    %v117 = vld [vmem:[%s1 + $0x2a8] sm:$0xff]
    %v118 = vld [vmem:[%s1 + $0x2b0] sm:$0xff]
    %v119 = vld [vmem:[%s1 + $0x2b8] sm:$0xff]
    %v120 = vld [vmem:[%s1 + $0x2c0] sm:$0xff]
    %v121 = vld [vmem:[%s1 + $0x2c8] sm:$0xff]
    %v122 = vld [vmem:[%s1 + $0x2d0] sm:$0xff]
    %v123 = vld [vmem:[%s1 + $0x2d8] sm:$0xff]
    %v124 = vld [vmem:[%s1 + $0x2e0] sm:$0xff]
    %v125 = vld [vmem:[%s1 + $0x2e8] sm:$0xff]
    %v126 = vld [vmem:[%s1 + $0x2f0] sm:$0xff]
    %v127 = vld [vmem:[%s1 + $0x2f8] sm:$0xff]
    %v128 = vld [vmem:[%s1 + $0x300] sm:$0xff]
    %v129 = vld [vmem:[%s1 + $0x308] sm:$0xff]
    %v130 = vld [vmem:[%s1 + $0x310] sm:$0xff]
    %v131 = vld [vmem:[%s1 + $0x318] sm:$0xff]
    %v132 = vld [vmem:[%s1 + $0x320] sm:$0xff]
    %v133 = vld [vmem:[%s1 + $0x328] sm:$0xff]
    %v134 = vld [vmem:[%s1 + $0x330] sm:$0xff]
    %v135 = vld [vmem:[%s1 + $0x338] sm:$0xff]
    %v136 = vld [vmem:[%s1 + $0x340] sm:$0xff]
    %v137 = vld [vmem:[%s1 + $0x348] sm:$0xff]
    %v138 = vld [vmem:[%s1 + $0x350] sm:$0xff]
    %v139 = vld [vmem:[%s1 + $0x358] sm:$0xff]
    %v140 = vld [vmem:[%s1 + $0x360] sm:$0xff]
    %v141 = vld [vmem:[%s1 + $0x368] sm:$0xff]
    %v142 = vld [vmem:[%s1 + $0x370] sm:$0xff]
    %v143 = vld [vmem:[%s1 + $0x378] sm:$0xff]
    %v144 = vld [vmem:[%s1 + $0x380] sm:$0xff]
    %v145 = vld [vmem:[%s1 + $0x388] sm:$0xff]
    %v146 = vld [vmem:[%s1 + $0x390] sm:$0xff]
    %v147 = vld [vmem:[%s1 + $0x398] sm:$0xff]
    %v148 = vld [vmem:[%s1 + $0x3a0] sm:$0xff]
    %v149 = vld [vmem:[%s1 + $0x3a8] sm:$0xff]
    %v150 = vld [vmem:[%s1 + $0x3b0] sm:$0xff]
    %v151 = vld [vmem:[%s1 + $0x3b8] sm:$0xff]
    %v152 = vld [vmem:[%s1 + $0x3c0] sm:$0xff]
    %v153 = vld [vmem:[%s1 + $0x3c8] sm:$0xff]
    %v154 = vld [vmem:[%s1 + $0x3d0] sm:$0xff]
    %v155 = vld [vmem:[%s1 + $0x3d8] sm:$0xff]
    %v156 = vld [vmem:[%s1 + $0x3e0] sm:$0xff]
    %v157 = vld [vmem:[%s1 + $0x3e8] sm:$0xff]
    %v158 = vld [vmem:[%s1 + $0x3f0] sm:$0xff]
    %v159 = vld [vmem:[%s1 + $0x3f8] sm:$0xff]
    %v160 = vld [vmem:[%s1 + $0x400] sm:$0xff]
    %v161 = vld [vmem:[%s1 + $0x408] sm:$0xff]
    %v162 = vld [vmem:[%s1 + $0x410] sm:$0xff]
    %v163 = vld [vmem:[%s1 + $0x418] sm:$0xff]
    %v164 = vld [vmem:[%s1 + $0x420] sm:$0xff]
    %v165 = vld [vmem:[%s1 + $0x428] sm:$0xff]
    %v166 = vld [vmem:[%s1 + $0x430] sm:$0xff]
    %v167 = vld [vmem:[%s1 + $0x438] sm:$0xff]
    %v168 = vld [vmem:[%s1 + $0x440] sm:$0xff]
    %v169 = vld [vmem:[%s1 + $0x448] sm:$0xff]
    %v170 = vld [vmem:[%s1 + $0x450] sm:$0xff]
    %v171 = vld [vmem:[%s1 + $0x458] sm:$0xff]
    %v172 = vld [vmem:[%s1 + $0x460] sm:$0xff]
    %v173 = vld [vmem:[%s1 + $0x468] sm:$0xff]
    %v174 = vld [vmem:[%s1 + $0x470] sm:$0xff]
    %v175 = vld [vmem:[%s1 + $0x478] sm:$0xff]
    %v176 = vld [vmem:[%s1 + $0x480] sm:$0xff]
    %v177 = vld [vmem:[%s1 + $0x488] sm:$0xff]
    %v178 = vld [vmem:[%s1 + $0x490] sm:$0xff]
    %v179 = vld [vmem:[%s1 + $0x498] sm:$0xff]
    %v180 = vld [vmem:[%s1 + $0x4a0] sm:$0xff]
    %v181 = vld [vmem:[%s1 + $0x4a8] sm:$0xff]
    %v182 = vld [vmem:[%s1 + $0x4b0] sm:$0xff]
    %v183 = vld [vmem:[%s1 + $0x4b8] sm:$0xff]
    %v184 = vld [vmem:[%s1 + $0x4c0] sm:$0xff]
    %v185 = vld [vmem:[%s1 + $0x4c8] sm:$0xff]
    %v186 = vld [vmem:[%s1 + $0x4d0] sm:$0xff]
    %v187 = vld [vmem:[%s1 + $0x4d8] sm:$0xff]
    %v188 = vld [vmem:[%s1 + $0x4e0] sm:$0xff]
    %v189 = vld [vmem:[%s1 + $0x4e8] sm:$0xff]
    %v190 = vld [vmem:[%s1 + $0x4f0] sm:$0xff]
    %v191 = vld [vmem:[%s1 + $0x4f8] sm:$0xff]
    %v192 = vld [vmem:[%s1 + $0x500] sm:$0xff]
    %v193 = vld [vmem:[%s1 + $0x508] sm:$0xff]
    %v194 = vld [vmem:[%s1 + $0x510] sm:$0xff]
    %v195 = vld [vmem:[%s1 + $0x518] sm:$0xff]
    %v196 = vld [vmem:[%s1 + $0x520] sm:$0xff]
    %v197 = vld [vmem:[%s1 + $0x528] sm:$0xff]
    %v198 = vld [vmem:[%s1 + $0x530] sm:$0xff]
    %v199 = vld [vmem:[%s1 + $0x538] sm:$0xff]
    %v200 = vld [vmem:[%s1 + $0x540] sm:$0xff]
    %v201 = vld [vmem:[%s1 + $0x548] sm:$0xff]
    %v202 = vld [vmem:[%s1 + $0x550] sm:$0xff]
    %v203 = vld [vmem:[%s1 + $0x558] sm:$0xff]
    %v204 = vld [vmem:[%s1 + $0x560] sm:$0xff]
    %v205 = vld [vmem:[%s1 + $0x568] sm:$0xff]
    %v206 = vld [vmem:[%s1 + $0x570] sm:$0xff]
    %v207 = vld [vmem:[%s1 + $0x578] sm:$0xff]
    %v208 = vld [vmem:[%s1 + $0x580] sm:$0xff]
    %v209 = vld [vmem:[%s1 + $0x588] sm:$0xff]
    %v210 = vld [vmem:[%s1 + $0x590] sm:$0xff]
    %v211 = vld [vmem:[%s1 + $0x598] sm:$0xff]
    %v212 = vld [vmem:[%s1 + $0x5a0] sm:$0xff]
    %v213 = vld [vmem:[%s1 + $0x5a8] sm:$0xff]
    %v214 = vld [vmem:[%s1 + $0x5b0] sm:$0xff]
    %v215 = vld [vmem:[%s1 + $0x5b8] sm:$0xff]
    %v216 = vld [vmem:[%s1 + $0x5c0] sm:$0xff]
    %v217 = vld [vmem:[%s1 + $0x5c8] sm:$0xff]
    %v218 = vld [vmem:[%s1 + $0x5d0] sm:$0xff]
    %v219 = vld [vmem:[%s1 + $0x5d8] sm:$0xff]
    %v220 = vld [vmem:[%s1 + $0x5e0] sm:$0xff]
    %v221 = vld [vmem:[%s1 + $0x5e8] sm:$0xff]
    %v222 = vld [vmem:[%s1 + $0x5f0] sm:$0xff]
    %v223 = vld [vmem:[%s1 + $0x5f8] sm:$0xff]
    %v224 = vld [vmem:[%s1 + $0x600] sm:$0xff]
    %v225 = vld [vmem:[%s1 + $0x608] sm:$0xff]
    %v226 = vld [vmem:[%s1 + $0x610] sm:$0xff]
    %v227 = vld [vmem:[%s1 + $0x618] sm:$0xff]
    %v228 = vld [vmem:[%s1 + $0x620] sm:$0xff]
    %v229 = vld [vmem:[%s1 + $0x628] sm:$0xff]
    %v230 = vld [vmem:[%s1 + $0x630] sm:$0xff]
    %v231 = vld [vmem:[%s1 + $0x638] sm:$0xff]
    %v232 = vld [vmem:[%s1 + $0x640] sm:$0xff]
    %v233 = vld [vmem:[%s1 + $0x648] sm:$0xff]
    %v234 = vld [vmem:[%s1 + $0x650] sm:$0xff]
    %v235 = vld [vmem:[%s1 + $0x658] sm:$0xff]
    %v236 = vld [vmem:[%s1 + $0x660] sm:$0xff]
    %v237 = vld [vmem:[%s1 + $0x668] sm:$0xff]
    %v238 = vld [vmem:[%s1 + $0x670] sm:$0xff]
    %v239 = vld [vmem:[%s1 + $0x678] sm:$0xff]
    %v240 = vld [vmem:[%s1 + $0x680] sm:$0xff]
    %v241 = vld [vmem:[%s1 + $0x688] sm:$0xff]
    %v242 = vld [vmem:[%s1 + $0x690] sm:$0xff]
    %v243 = vld [vmem:[%s1 + $0x698] sm:$0xff]
    %v244 = vld [vmem:[%s1 + $0x6a0] sm:$0xff]
    %v245 = vld [vmem:[%s1 + $0x6a8] sm:$0xff]
    %v246 = vld [vmem:[%s1 + $0x6b0] sm:$0xff]
    %v247 = vld [vmem:[%s1 + $0x6b8] sm:$0xff]
    %v248 = vld [vmem:[%s1 + $0x6c0] sm:$0xff]
    %v249 = vld [vmem:[%s1 + $0x6c8] sm:$0xff]
    %v250 = vld [vmem:[%s1 + $0x6d0] sm:$0xff]
    %v251 = vld [vmem:[%s1 + $0x6d8] sm:$0xff]
    %v252 = vld [vmem:[%s1 + $0x6e0] sm:$0xff]
    %v253 = vld [vmem:[%s1 + $0x6e8] sm:$0xff]
    %v254 = vld [vmem:[%s1 + $0x6f0] sm:$0xff]
    %v255 = vld [vmem:[%s1 + $0x6f8] sm:$0xff]
    %v256 = vld [vmem:[%s1 + $0x700] sm:$0xff]
    %v257 = vld [vmem:[%s1 + $0x708] sm:$0xff]
    %v258 = vld [vmem:[%s1 + $0x710] sm:$0xff]
    %v259 = vld [vmem:[%s1 + $0x718] sm:$0xff]
    %v260 = vld [vmem:[%s1 + $0x720] sm:$0xff]
    %v261 = vld [vmem:[%s1 + $0x728] sm:$0xff]
    %v262 = vld [vmem:[%s1 + $0x730] sm:$0xff]
    %v263 = vld [vmem:[%s1 + $0x738] sm:$0xff]
    %v264 = vld [vmem:[%s1 + $0x740] sm:$0xff]
    %v265 = vld [vmem:[%s1 + $0x748] sm:$0xff]
    %v266 = vld [vmem:[%s1 + $0x750] sm:$0xff]
    %v267 = vld [vmem:[%s1 + $0x758] sm:$0xff]
    %v268 = vld [vmem:[%s1 + $0x760] sm:$0xff]
    %v269 = vld [vmem:[%s1 + $0x768] sm:$0xff]
    %v270 = vld [vmem:[%s1 + $0x770] sm:$0xff]
    %v271 = vld [vmem:[%s1 + $0x778] sm:$0xff]
    %v272 = vld [vmem:[%s1 + $0x780] sm:$0xff]
    %v273 = vld [vmem:[%s1 + $0x788] sm:$0xff]
    %v274 = vld [vmem:[%s1 + $0x790] sm:$0xff]
    %v275 = vld [vmem:[%s1 + $0x798] sm:$0xff]
    %v276 = vld [vmem:[%s1 + $0x7a0] sm:$0xff]
    %v277 = vld [vmem:[%s1 + $0x7a8] sm:$0xff]
    %v278 = vld [vmem:[%s1 + $0x7b0] sm:$0xff]
    %v279 = vld [vmem:[%s1 + $0x7b8] sm:$0xff]
    %v280 = vld [vmem:[%s1 + $0x7c0] sm:$0xff]
    %v281 = vld [vmem:[%s1 + $0x7c8] sm:$0xff]
    %v282 = vld [vmem:[%s1 + $0x7d0] sm:$0xff]
    %v283 = vld [vmem:[%s1 + $0x7d8] sm:$0xff]
    %v284 = vld [vmem:[%s1 + $0x7e0] sm:$0xff]
    %v285 = vld [vmem:[%s1 + $0x7e8] sm:$0xff]
    %v286 = vld [vmem:[%s1 + $0x7f0] sm:$0xff]
    %v287 = vld [vmem:[%s1 + $0x7f8] sm:$0xff]
    %v288 = vld [vmem:[%s1 + $0x800] sm:$0xff]
    %v289 = vld [vmem:[%s1 + $0x808] sm:$0xff]
    %v290 = vld [vmem:[%s1 + $0x810] sm:$0xff]
    %v291 = vld [vmem:[%s1 + $0x818] sm:$0xff]
    %v292 = vld [vmem:[%s1 + $0x820] sm:$0xff]
    %v293 = vld [vmem:[%s1 + $0x828] sm:$0xff]
    %v294 = vld [vmem:[%s1 + $0x830] sm:$0xff]
    %v295 = vld [vmem:[%s1 + $0x838] sm:$0xff]
    %v296 = vld [vmem:[%s1 + $0x840] sm:$0xff]
    %v297 = vld [vmem:[%s1 + $0x848] sm:$0xff]
    %v298 = vld [vmem:[%s1 + $0x850] sm:$0xff]
    %v299 = vld [vmem:[%s1 + $0x858] sm:$0xff]
    %v300 = vld [vmem:[%s1 + $0x860] sm:$0xff]
    %v301 = vld [vmem:[%s1 + $0x868] sm:$0xff]
    %v302 = vld [vmem:[%s1 + $0x870] sm:$0xff]
    %v303 = vld [vmem:[%s1 + $0x878] sm:$0xff]
    %v304 = vld [vmem:[%s1 + $0x880] sm:$0xff]
    %v305 = vld [vmem:[%s1 + $0x888] sm:$0xff]
    %v306 = vld [vmem:[%s1 + $0x890] sm:$0xff]
    %v307 = vld [vmem:[%s1 + $0x898] sm:$0xff]
    %v308 = vld [vmem:[%s1 + $0x8a0] sm:$0xff]
    %v309 = vld [vmem:[%s1 + $0x8a8] sm:$0xff]
    %v310 = vld [vmem:[%s1 + $0x8b0] sm:$0xff]
    %v311 = vld [vmem:[%s1 + $0x8b8] sm:$0xff]
    %v312 = vld [vmem:[%s1 + $0x8c0] sm:$0xff]
    %v313 = vld [vmem:[%s1 + $0x8c8] sm:$0xff]
    %v314 = vld [vmem:[%s1 + $0x8d0] sm:$0xff]
    %v315 = vld [vmem:[%s1 + $0x8d8] sm:$0xff]
    %v316 = vld [vmem:[%s1 + $0x8e0] sm:$0xff]
    %v317 = vld [vmem:[%s1 + $0x8e8] sm:$0xff]
    %v318 = vld [vmem:[%s1 + $0x8f0] sm:$0xff]
    %v319 = vld [vmem:[%s1 + $0x8f8] sm:$0xff]
    %v320 = vld [vmem:[%s1 + $0x900] sm:$0xff]
    %v321 = vld [vmem:[%s1 + $0x908] sm:$0xff]
    %v322 = vld [vmem:[%s1 + $0x910] sm:$0xff]
    %v323 = vld [vmem:[%s1 + $0x918] sm:$0xff]
    %v324 = vld [vmem:[%s1 + $0x920] sm:$0xff]
    %v325 = vld [vmem:[%s1 + $0x928] sm:$0xff]
    %v326 = vld [vmem:[%s1 + $0x930] sm:$0xff]
    %v327 = vld [vmem:[%s1 + $0x938] sm:$0xff]
    %v328 = vld [vmem:[%s1 + $0x940] sm:$0xff]
    %v329 = vld [vmem:[%s1 + $0x948] sm:$0xff]
    %v330 = vld [vmem:[%s1 + $0x950] sm:$0xff]
    %v331 = vld [vmem:[%s1 + $0x958] sm:$0xff]
    %v332 = vld [vmem:[%s1 + $0x960] sm:$0xff]
    %v333 = vld [vmem:[%s1 + $0x968] sm:$0xff]
    %v334 = vld [vmem:[%s1 + $0x970] sm:$0xff]
    %v335 = vld [vmem:[%s1 + $0x978] sm:$0xff]
    %v336 = vld [vmem:[%s1 + $0x980] sm:$0xff]
    %v337 = vld [vmem:[%s1 + $0x988] sm:$0xff]
    %v338 = vld [vmem:[%s1 + $0x990] sm:$0xff]
    %v339 = vld [vmem:[%s1 + $0x998] sm:$0xff]
    %v340 = vld [vmem:[%s1 + $0x9a0] sm:$0xff]
    %v341 = vld [vmem:[%s1 + $0x9a8] sm:$0xff]
    %v342 = vld [vmem:[%s1 + $0x9b0] sm:$0xff]
    %v343 = vld [vmem:[%s1 + $0x9b8] sm:$0xff]
    %v344 = vld [vmem:[%s1 + $0x9c0] sm:$0xff]
    %v345 = vld [vmem:[%s1 + $0x9c8] sm:$0xff]
    %v346 = vld [vmem:[%s1 + $0x9d0] sm:$0xff]
    %v347 = vld [vmem:[%s1 + $0x9d8] sm:$0xff]
    %v348 = vld [vmem:[%s1 + $0x9e0] sm:$0xff]
    %v349 = vld [vmem:[%s1 + $0x9e8] sm:$0xff]
    %v350 = vld [vmem:[%s1 + $0x9f0] sm:$0xff]
    %v351 = vld [vmem:[%s1 + $0x9f8] sm:$0xff]
    %v352 = vld [vmem:[%s1 + $0xa00] sm:$0xff]
    %v353 = vld [vmem:[%s1 + $0xa08] sm:$0xff]
    %v354 = vld [vmem:[%s1 + $0xa10] sm:$0xff]
    %v355 = vld [vmem:[%s1 + $0xa18] sm:$0xff]
    %v356 = vld [vmem:[%s1 + $0xa20] sm:$0xff]
    %v357 = vld [vmem:[%s1 + $0xa28] sm:$0xff]
    %v358 = vld [vmem:[%s1 + $0xa30] sm:$0xff]
    %v359 = vld [vmem:[%s1 + $0xa38] sm:$0xff]
    %v360 = vld [vmem:[%s1 + $0xa40] sm:$0xff]
    %v361 = vld [vmem:[%s1 + $0xa48] sm:$0xff]
    %v362 = vld [vmem:[%s1 + $0xa50] sm:$0xff]
    %v363 = vld [vmem:[%s1 + $0xa58] sm:$0xff]
    %v364 = vld [vmem:[%s1 + $0xa60] sm:$0xff]
    %v365 = vld [vmem:[%s1 + $0xa68] sm:$0xff]
    %v366 = vld [vmem:[%s1 + $0xa70] sm:$0xff]
    %v367 = vld [vmem:[%s1 + $0xa78] sm:$0xff]
    %v368 = vld [vmem:[%s1 + $0xa80] sm:$0xff]
    %v369 = vld [vmem:[%s1 + $0xa88] sm:$0xff]
    %v370 = vld [vmem:[%s1 + $0xa90] sm:$0xff]
    %v371 = vld [vmem:[%s1 + $0xa98] sm:$0xff]
    %v372 = vld [vmem:[%s1 + $0xaa0] sm:$0xff]
    %v373 = vld [vmem:[%s1 + $0xaa8] sm:$0xff]
    %v374 = vld [vmem:[%s1 + $0xab0] sm:$0xff]
    %v375 = vld [vmem:[%s1 + $0xab8] sm:$0xff]
    %v376 = vld [vmem:[%s1 + $0xac0] sm:$0xff]
    %v377 = vld [vmem:[%s1 + $0xac8] sm:$0xff]
    %v378 = vld [vmem:[%s1 + $0xad0] sm:$0xff]
    %v379 = vld [vmem:[%s1 + $0xad8] sm:$0xff]
    %v380 = vld [vmem:[%s1 + $0xae0] sm:$0xff]
    %v381 = vld [vmem:[%s1 + $0xae8] sm:$0xff]
    %v382 = vld [vmem:[%s1 + $0xaf0] sm:$0xff]
    %v383 = vld [vmem:[%s1 + $0xaf8] sm:$0xff]
    %v384 = vld [vmem:[%s1 + $0xb00] sm:$0xff]
    %v385 = vld [vmem:[%s1 + $0xb08] sm:$0xff]
    %v386 = vld [vmem:[%s1 + $0xb10] sm:$0xff]
    %v387 = vld [vmem:[%s1 + $0xb18] sm:$0xff]
    %v388 = vld [vmem:[%s1 + $0xb20] sm:$0xff]
    %v389 = vld [vmem:[%s1 + $0xb28] sm:$0xff]
    %v390 = vld [vmem:[%s1 + $0xb30] sm:$0xff]
    %v391 = vld [vmem:[%s1 + $0xb38] sm:$0xff]
    %v392 = vld [vmem:[%s1 + $0xb40] sm:$0xff]
    %v393 = vld [vmem:[%s1 + $0xb48] sm:$0xff]
    %v394 = vld [vmem:[%s1 + $0xb50] sm:$0xff]
    %v395 = vld [vmem:[%s1 + $0xb58] sm:$0xff]
    %v396 = vld [vmem:[%s1 + $0xb60] sm:$0xff]
    %v397 = vld [vmem:[%s1 + $0xb68] sm:$0xff]
    %v398 = vld [vmem:[%s1 + $0xb70] sm:$0xff]
    %v399 = vld [vmem:[%s1 + $0xb78] sm:$0xff]
    %v400 = vld [vmem:[%s1 + $0xb80] sm:$0xff]
    %v401 = vld [vmem:[%s1 + $0xb88] sm:$0xff]
    %v402 = vld [vmem:[%s1 + $0xb90] sm:$0xff]
    %v403 = vld [vmem:[%s1 + $0xb98] sm:$0xff]
    %v404 = vld [vmem:[%s1 + $0xba0] sm:$0xff]
    %v405 = vld [vmem:[%s1 + $0xba8] sm:$0xff]
    %v406 = vld [vmem:[%s1 + $0xbb0] sm:$0xff]
    %v407 = vld [vmem:[%s1 + $0xbb8] sm:$0xff]
    %v408 = vld [vmem:[%s1 + $0xbc0] sm:$0xff]
    %v409 = vld [vmem:[%s1 + $0xbc8] sm:$0xff]
    %v410 = vld [vmem:[%s1 + $0xbd0] sm:$0xff]
    %v411 = vld [vmem:[%s1 + $0xbd8] sm:$0xff]
    %v412 = vld [vmem:[%s1 + $0xbe0] sm:$0xff]
    %v413 = vld [vmem:[%s1 + $0xbe8] sm:$0xff]
    %v414 = vld [vmem:[%s1 + $0xbf0] sm:$0xff]
    %v415 = vld [vmem:[%s1 + $0xbf8] sm:$0xff]
    %v416 = vld [vmem:[%s1 + $0xc00] sm:$0xff]
    %v417 = vld [vmem:[%s1 + $0xc08] sm:$0xff]
    %v418 = vld [vmem:[%s1 + $0xc10] sm:$0xff]
    %v419 = vld [vmem:[%s1 + $0xc18] sm:$0xff]
    %v420 = vld [vmem:[%s1 + $0xc20] sm:$0xff]
    %v421 = vld [vmem:[%s1 + $0xc28] sm:$0xff]
    %v422 = vld [vmem:[%s1 + $0xc30] sm:$0xff]
    %v423 = vld [vmem:[%s1 + $0xc38] sm:$0xff]
    %v424 = vld [vmem:[%s1 + $0xc40] sm:$0xff]
    %v425 = vld [vmem:[%s1 + $0xc48] sm:$0xff]
    %v426 = vld [vmem:[%s1 + $0xc50] sm:$0xff]
    %v427 = vld [vmem:[%s1 + $0xc58] sm:$0xff]
    %v428 = vld [vmem:[%s1 + $0xc60] sm:$0xff]
    %v429 = vld [vmem:[%s1 + $0xc68] sm:$0xff]
    %v430 = vld [vmem:[%s1 + $0xc70] sm:$0xff]
    %v431 = vld [vmem:[%s1 + $0xc78] sm:$0xff]
    %v432 = vld [vmem:[%s1 + $0xc80] sm:$0xff]
    %v433 = vld [vmem:[%s1 + $0xc88] sm:$0xff]
    %v434 = vld [vmem:[%s1 + $0xc90] sm:$0xff]
    %v435 = vld [vmem:[%s1 + $0xc98] sm:$0xff]
    %v436 = vld [vmem:[%s1 + $0xca0] sm:$0xff]
    %v437 = vld [vmem:[%s1 + $0xca8] sm:$0xff]
    %v438 = vld [vmem:[%s1 + $0xcb0] sm:$0xff]
    %v439 = vld [vmem:[%s1 + $0xcb8] sm:$0xff]
    %v440 = vld [vmem:[%s1 + $0xcc0] sm:$0xff]
    %v441 = vld [vmem:[%s1 + $0xcc8] sm:$0xff]
    %v442 = vld [vmem:[%s1 + $0xcd0] sm:$0xff]
    %v443 = vld [vmem:[%s1 + $0xcd8] sm:$0xff]
    %v444 = vld [vmem:[%s1 + $0xce0] sm:$0xff]
    %v445 = vld [vmem:[%s1 + $0xce8] sm:$0xff]
    %v446 = vld [vmem:[%s1 + $0xcf0] sm:$0xff]
    %v447 = vld [vmem:[%s1 + $0xcf8] sm:$0xff]
    %v448 = vld [vmem:[%s1 + $0xd00] sm:$0xff]
    %v449 = vld [vmem:[%s1 + $0xd08] sm:$0xff]
    %v450 = vld [vmem:[%s1 + $0xd10] sm:$0xff]
    %v451 = vld [vmem:[%s1 + $0xd18] sm:$0xff]
    %v452 = vld [vmem:[%s1 + $0xd20] sm:$0xff]
    %v453 = vld [vmem:[%s1 + $0xd28] sm:$0xff]
    %v454 = vld [vmem:[%s1 + $0xd30] sm:$0xff]
    %v455 = vld [vmem:[%s1 + $0xd38] sm:$0xff]
    %v456 = vld [vmem:[%s1 + $0xd40] sm:$0xff]
    %v457 = vld [vmem:[%s1 + $0xd48] sm:$0xff]
    %v458 = vld [vmem:[%s1 + $0xd50] sm:$0xff]
    %v459 = vld [vmem:[%s1 + $0xd58] sm:$0xff]
    %v460 = vld [vmem:[%s1 + $0xd60] sm:$0xff]
    %v461 = vld [vmem:[%s1 + $0xd68] sm:$0xff]
    %v462 = vld [vmem:[%s1 + $0xd70] sm:$0xff]
    %v463 = vld [vmem:[%s1 + $0xd78] sm:$0xff]
    %v464 = vld [vmem:[%s1 + $0xd80] sm:$0xff]
    %v465 = vld [vmem:[%s1 + $0xd88] sm:$0xff]
    %v466 = vld [vmem:[%s1 + $0xd90] sm:$0xff]
    %v467 = vld [vmem:[%s1 + $0xd98] sm:$0xff]
    %v468 = vld [vmem:[%s1 + $0xda0] sm:$0xff]
    %v469 = vld [vmem:[%s1 + $0xda8] sm:$0xff]
    %v470 = vld [vmem:[%s1 + $0xdb0] sm:$0xff]
    %v471 = vld [vmem:[%s1 + $0xdb8] sm:$0xff]
    %v472 = vld [vmem:[%s1 + $0xdc0] sm:$0xff]
    %v473 = vld [vmem:[%s1 + $0xdc8] sm:$0xff]
    %v474 = vld [vmem:[%s1 + $0xdd0] sm:$0xff]
    %v475 = vld [vmem:[%s1 + $0xdd8] sm:$0xff]
    %v476 = vld [vmem:[%s1 + $0xde0] sm:$0xff]
    %v477 = vld [vmem:[%s1 + $0xde8] sm:$0xff]
    %v478 = vld [vmem:[%s1 + $0xdf0] sm:$0xff]
    %v479 = vld [vmem:[%s1 + $0xdf8] sm:$0xff]
    %v480 = vld [vmem:[%s2] sm:$0xff]
    %v482 = vlaneseq
    %v483 = vshrl.u32 %v482, 7
    %v484 = vsub.s32 0, %v483
    %v485 = vrot.slane %v480, %v484
    %v486 = vlaneseq
    %v487 = vshrl.u32 %v486, 7
    %v488 = vsub.s32 1, %v487
    %v489 = vrot.slane %v480, %v488
    %v490 = vlaneseq
    %v491 = vshrl.u32 %v490, 7
    %v492 = vsub.s32 2, %v491
    %v493 = vrot.slane %v480, %v492
    %v494 = vlaneseq
    %v495 = vshrl.u32 %v494, 7
    %v496 = vsub.s32 3, %v495
    %v497 = vrot.slane %v480, %v496
    %v498 = vlaneseq
    %v499 = vshrl.u32 %v498, 7
    %v500 = vsub.s32 4, %v499
    %v501 = vrot.slane %v480, %v500
    %v502 = vlaneseq
    %v503 = vshrl.u32 %v502, 7
    %v504 = vsub.s32 5, %v503
    %v505 = vrot.slane %v480, %v504
    %v506 = vlaneseq
    %v507 = vshrl.u32 %v506, 7
    %v508 = vsub.s32 6, %v507
    %v509 = vrot.slane %v480, %v508
    %v510 = vlaneseq
    %v511 = vshrl.u32 %v510, 7
    %v512 = vsub.s32 7, %v511
    %v513 = vrot.slane %v480, %v512
    %v526 = vunpack.c.l.b16 %v28
    %v527 = vunpack.c.h.b16 %v28
    %v528 = vunpack.c.l.b16 %v29
    %v529 = vunpack.c.h.b16 %v29
    %v530 = vunpack.c.l.b16 %v30
    %v531 = vunpack.c.h.b16 %v30
    %v532 = vunpack.c.l.b16 %v31
    %v533 = vpack.c.b16 %v526, %v526
    %v534 = vpack.c.b16 %v527, %v527
    %v535 = vpack.c.b16 %v528, %v528
    %v536 = vpack.c.b16 %v529, %v529
    %v537 = vpack.c.b16 %v530, %v530
    %v538 = vpack.c.b16 %v531, %v531
    %v539 = vpack.c.b16 %v532, %v532
    %v995 = vunpack.c.l.b16 %v32
    %v996 = vunpack.c.h.b16 %v32
    %v997 = vunpack.c.l.b16 %v33
    %v998 = vunpack.c.h.b16 %v33
    %v999 = vunpack.c.l.b16 %v34
    %v1000 = vunpack.c.h.b16 %v34
    %v1001 = vunpack.c.l.b16 %v35
    %v1002 = vunpack.c.h.b16 %v35
    %v1003 = vunpack.c.l.b16 %v36
    %v1004 = vunpack.c.h.b16 %v36
    %v1005 = vunpack.c.l.b16 %v37
    %v1006 = vunpack.c.h.b16 %v37
    %v1007 = vunpack.c.l.b16 %v38
    %v1008 = vunpack.c.h.b16 %v38
    %v1009 = vunpack.c.l.b16 %v39
    %v1010 = vunpack.c.h.b16 %v39
    %v1011 = vunpack.c.l.b16 %v40
    %v1012 = vunpack.c.h.b16 %v40
    %v1013 = vunpack.c.l.b16 %v41
    %v1014 = vunpack.c.h.b16 %v41
    %v1015 = vunpack.c.l.b16 %v42
    %v1016 = vunpack.c.h.b16 %v42
    %v1017 = vunpack.c.l.b16 %v43
    %v1018 = vunpack.c.h.b16 %v43
    %v1019 = vunpack.c.l.b16 %v44
    %v1020 = vunpack.c.h.b16 %v44
    %v1021 = vunpack.c.l.b16 %v45
    %v1022 = vunpack.c.h.b16 %v45
    %v1023 = vunpack.c.l.b16 %v46
    %v1024 = vunpack.c.h.b16 %v46
    %v1025 = vunpack.c.l.b16 %v47
    %v1026 = vunpack.c.h.b16 %v47
    %v1027 = vunpack.c.l.b16 %v48
    %v1028 = vunpack.c.h.b16 %v48
    %v1029 = vunpack.c.l.b16 %v49
    %v1030 = vunpack.c.h.b16 %v49
    %v1031 = vunpack.c.l.b16 %v50
    %v1032 = vunpack.c.h.b16 %v50
    %v1033 = vunpack.c.l.b16 %v51
    %v1034 = vunpack.c.h.b16 %v51
    %v1035 = vunpack.c.l.b16 %v52
    %v1036 = vunpack.c.h.b16 %v52
    %v1037 = vunpack.c.l.b16 %v53
    %v1038 = vunpack.c.h.b16 %v53
    %v1039 = vunpack.c.l.b16 %v54
    %v1040 = vunpack.c.h.b16 %v54
    %v1041 = vunpack.c.l.b16 %v55
    %v1042 = vunpack.c.h.b16 %v55
    %v1043 = vunpack.c.l.b16 %v56
    %v1044 = vunpack.c.h.b16 %v56
    %v1045 = vunpack.c.l.b16 %v57
    %v1046 = vunpack.c.h.b16 %v57
    %v1047 = vunpack.c.l.b16 %v58
    %v1048 = vunpack.c.h.b16 %v58
    %v1049 = vunpack.c.l.b16 %v59
    %v1050 = vunpack.c.h.b16 %v59
    %v1051 = vunpack.c.l.b16 %v60
    %v1052 = vunpack.c.h.b16 %v60
    %v1053 = vunpack.c.l.b16 %v61
    %v1054 = vunpack.c.h.b16 %v61
    %v1055 = vunpack.c.l.b16 %v62
    %v1056 = vunpack.c.h.b16 %v62
    %v1057 = vunpack.c.l.b16 %v63
    %v1058 = vunpack.c.h.b16 %v63
    %v1059 = vunpack.c.l.b16 %v64
    %v1060 = vunpack.c.h.b16 %v64
    %v1061 = vunpack.c.l.b16 %v65
    %v1062 = vunpack.c.h.b16 %v65
    %v1063 = vunpack.c.l.b16 %v66
    %v1064 = vunpack.c.h.b16 %v66
    %v1065 = vunpack.c.l.b16 %v67
    %v1066 = vunpack.c.h.b16 %v67
    %v1067 = vunpack.c.l.b16 %v68
    %v1068 = vunpack.c.h.b16 %v68
    %v1069 = vunpack.c.l.b16 %v69
    %v1070 = vunpack.c.h.b16 %v69
    %v1071 = vunpack.c.l.b16 %v70
    %v1072 = vunpack.c.h.b16 %v70
    %v1073 = vunpack.c.l.b16 %v71
    %v1074 = vunpack.c.h.b16 %v71
    %v1075 = vunpack.c.l.b16 %v72
    %v1076 = vunpack.c.h.b16 %v72
    %v1077 = vunpack.c.l.b16 %v73
    %v1078 = vunpack.c.h.b16 %v73
    %v1079 = vunpack.c.l.b16 %v74
    %v1080 = vunpack.c.h.b16 %v74
    %v1081 = vunpack.c.l.b16 %v75
    %v1082 = vunpack.c.h.b16 %v75
    %v1083 = vunpack.c.l.b16 %v76
    %v1084 = vunpack.c.h.b16 %v76
    %v1085 = vunpack.c.l.b16 %v77
    %v1086 = vunpack.c.h.b16 %v77
    %v1087 = vunpack.c.l.b16 %v78
    %v1088 = vunpack.c.h.b16 %v78
    %v1089 = vunpack.c.l.b16 %v79
    %v1090 = vunpack.c.h.b16 %v79
    %v1091 = vunpack.c.l.b16 %v80
    %v1092 = vunpack.c.h.b16 %v80
    %v1093 = vunpack.c.l.b16 %v81
    %v1094 = vunpack.c.h.b16 %v81
    %v1095 = vunpack.c.l.b16 %v82
    %v1096 = vunpack.c.h.b16 %v82
    %v1097 = vunpack.c.l.b16 %v83
    %v1098 = vunpack.c.h.b16 %v83
    %v1099 = vunpack.c.l.b16 %v84
    %v1100 = vunpack.c.h.b16 %v84
    %v1101 = vunpack.c.l.b16 %v85
    %v1102 = vunpack.c.h.b16 %v85
    %v1103 = vunpack.c.l.b16 %v86
    %v1104 = vunpack.c.h.b16 %v86
    %v1105 = vunpack.c.l.b16 %v87
    %v1106 = vunpack.c.h.b16 %v87
    %v1107 = vunpack.c.l.b16 %v88
    %v1108 = vunpack.c.h.b16 %v88
    %v1109 = vunpack.c.l.b16 %v89
    %v1110 = vunpack.c.h.b16 %v89
    %v1111 = vunpack.c.l.b16 %v90
    %v1112 = vunpack.c.h.b16 %v90
    %v1113 = vunpack.c.l.b16 %v91
    %v1114 = vunpack.c.h.b16 %v91
    %v1115 = vunpack.c.l.b16 %v92
    %v1116 = vunpack.c.h.b16 %v92
    %v1117 = vunpack.c.l.b16 %v93
    %v1118 = vunpack.c.h.b16 %v93
    %v1119 = vunpack.c.l.b16 %v94
    %v1120 = vunpack.c.h.b16 %v94
    %v1121 = vunpack.c.l.b16 %v95
    %v1122 = vunpack.c.h.b16 %v95
    %v1123 = vunpack.c.l.b16 %v96
    %v1124 = vunpack.c.h.b16 %v96
    %v1125 = vunpack.c.l.b16 %v97
    %v1126 = vunpack.c.h.b16 %v97
    %v1127 = vunpack.c.l.b16 %v98
    %v1128 = vunpack.c.h.b16 %v98
    %v1129 = vunpack.c.l.b16 %v99
    %v1130 = vunpack.c.h.b16 %v99
    %v1131 = vunpack.c.l.b16 %v100
    %v1132 = vunpack.c.h.b16 %v100
    %v1133 = vunpack.c.l.b16 %v101
    %v1134 = vunpack.c.h.b16 %v101
    %v1135 = vunpack.c.l.b16 %v102
    %v1136 = vunpack.c.h.b16 %v102
    %v1137 = vunpack.c.l.b16 %v103
    %v1138 = vunpack.c.h.b16 %v103
    %v1139 = vunpack.c.l.b16 %v104
    %v1140 = vunpack.c.h.b16 %v104
    %v1141 = vunpack.c.l.b16 %v105
    %v1142 = vunpack.c.h.b16 %v105
    %v1143 = vunpack.c.l.b16 %v106
    %v1144 = vunpack.c.h.b16 %v106
    %v1145 = vunpack.c.l.b16 %v107
    %v1146 = vunpack.c.h.b16 %v107
    %v1147 = vunpack.c.l.b16 %v108
    %v1148 = vunpack.c.h.b16 %v108
    %v1149 = vunpack.c.l.b16 %v109
    %v1150 = vunpack.c.h.b16 %v109
    %v1151 = vunpack.c.l.b16 %v110
    %v1152 = vunpack.c.h.b16 %v110
    %v1153 = vunpack.c.l.b16 %v111
    %v1154 = vunpack.c.h.b16 %v111
    %v1155 = vunpack.c.l.b16 %v112
    %v1156 = vunpack.c.h.b16 %v112
    %v1157 = vunpack.c.l.b16 %v113
    %v1158 = vunpack.c.h.b16 %v113
    %v1159 = vunpack.c.l.b16 %v114
    %v1160 = vunpack.c.h.b16 %v114
    %v1161 = vunpack.c.l.b16 %v115
    %v1162 = vunpack.c.h.b16 %v115
    %v1163 = vunpack.c.l.b16 %v116
    %v1164 = vunpack.c.h.b16 %v116
    %v1165 = vunpack.c.l.b16 %v117
    %v1166 = vunpack.c.h.b16 %v117
    %v1167 = vunpack.c.l.b16 %v118
    %v1168 = vunpack.c.h.b16 %v118
    %v1169 = vunpack.c.l.b16 %v119
    %v1170 = vunpack.c.h.b16 %v119
    %v1171 = vunpack.c.l.b16 %v120
    %v1172 = vunpack.c.h.b16 %v120
    %v1173 = vunpack.c.l.b16 %v121
    %v1174 = vunpack.c.h.b16 %v121
    %v1175 = vunpack.c.l.b16 %v122
    %v1176 = vunpack.c.h.b16 %v122
    %v1177 = vunpack.c.l.b16 %v123
    %v1178 = vunpack.c.h.b16 %v123
    %v1179 = vunpack.c.l.b16 %v124
    %v1180 = vunpack.c.h.b16 %v124
    %v1181 = vunpack.c.l.b16 %v125
    %v1182 = vunpack.c.h.b16 %v125
    %v1183 = vunpack.c.l.b16 %v126
    %v1184 = vunpack.c.h.b16 %v126
    %v1185 = vunpack.c.l.b16 %v127
    %v1186 = vunpack.c.h.b16 %v127
    %v1187 = vunpack.c.l.b16 %v128
    %v1188 = vunpack.c.h.b16 %v128
    %v1189 = vunpack.c.l.b16 %v129
    %v1190 = vunpack.c.h.b16 %v129
    %v1191 = vunpack.c.l.b16 %v130
    %v1192 = vunpack.c.h.b16 %v130
    %v1193 = vunpack.c.l.b16 %v131
    %v1194 = vunpack.c.h.b16 %v131
    %v1195 = vunpack.c.l.b16 %v132
    %v1196 = vunpack.c.h.b16 %v132
    %v1197 = vunpack.c.l.b16 %v133
    %v1198 = vunpack.c.h.b16 %v133
    %v1199 = vunpack.c.l.b16 %v134
    %v1200 = vunpack.c.h.b16 %v134
    %v1201 = vunpack.c.l.b16 %v135
    %v1202 = vunpack.c.h.b16 %v135
    %v1203 = vunpack.c.l.b16 %v136
    %v1204 = vunpack.c.h.b16 %v136
    %v1205 = vunpack.c.l.b16 %v137
    %v1206 = vunpack.c.h.b16 %v137
    %v1207 = vunpack.c.l.b16 %v138
    %v1208 = vunpack.c.h.b16 %v138
    %v1209 = vunpack.c.l.b16 %v139
    %v1210 = vunpack.c.h.b16 %v139
    %v1211 = vunpack.c.l.b16 %v140
    %v1212 = vunpack.c.h.b16 %v140
    %v1213 = vunpack.c.l.b16 %v141
    %v1214 = vunpack.c.h.b16 %v141
    %v1215 = vunpack.c.l.b16 %v142
    %v1216 = vunpack.c.h.b16 %v142
    %v1217 = vunpack.c.l.b16 %v143
    %v1218 = vunpack.c.h.b16 %v143
    %v1219 = vunpack.c.l.b16 %v144
    %v1220 = vunpack.c.h.b16 %v144
    %v1221 = vunpack.c.l.b16 %v145
    %v1222 = vunpack.c.h.b16 %v145
    %v1223 = vunpack.c.l.b16 %v146
    %v1224 = vunpack.c.h.b16 %v146
    %v1225 = vunpack.c.l.b16 %v147
    %v1226 = vunpack.c.h.b16 %v147
    %v1227 = vunpack.c.l.b16 %v148
    %v1228 = vunpack.c.h.b16 %v148
    %v1229 = vunpack.c.l.b16 %v149
    %v1230 = vunpack.c.h.b16 %v149
    %v1231 = vunpack.c.l.b16 %v150
    %v1232 = vunpack.c.h.b16 %v150
    %v1233 = vunpack.c.l.b16 %v151
    %v1234 = vunpack.c.h.b16 %v151
    %v1235 = vunpack.c.l.b16 %v152
    %v1236 = vunpack.c.h.b16 %v152
    %v1237 = vunpack.c.l.b16 %v153
    %v1238 = vunpack.c.h.b16 %v153
    %v1239 = vunpack.c.l.b16 %v154
    %v1240 = vunpack.c.h.b16 %v154
    %v1241 = vunpack.c.l.b16 %v155
    %v1242 = vunpack.c.h.b16 %v155
    %v1243 = vunpack.c.l.b16 %v156
    %v1244 = vunpack.c.h.b16 %v156
    %v1245 = vunpack.c.l.b16 %v157
    %v1246 = vunpack.c.h.b16 %v157
    %v1247 = vunpack.c.l.b16 %v158
    %v1248 = vunpack.c.h.b16 %v158
    %v1249 = vunpack.c.l.b16 %v159
    %v1250 = vunpack.c.h.b16 %v159
    %v1251 = vunpack.c.l.b16 %v160
    %v1252 = vunpack.c.h.b16 %v160
    %v1253 = vunpack.c.l.b16 %v161
    %v1254 = vunpack.c.h.b16 %v161
    %v1255 = vunpack.c.l.b16 %v162
    %v1256 = vunpack.c.h.b16 %v162
    %v1257 = vunpack.c.l.b16 %v163
    %v1258 = vunpack.c.h.b16 %v163
    %v1259 = vunpack.c.l.b16 %v164
    %v1260 = vunpack.c.h.b16 %v164
    %v1261 = vunpack.c.l.b16 %v165
    %v1262 = vunpack.c.h.b16 %v165
    %v1263 = vunpack.c.l.b16 %v166
    %v1264 = vunpack.c.h.b16 %v166
    %v1265 = vunpack.c.l.b16 %v167
    %v1266 = vunpack.c.h.b16 %v167
    %v1267 = vunpack.c.l.b16 %v168
    %v1268 = vunpack.c.h.b16 %v168
    %v1269 = vunpack.c.l.b16 %v169
    %v1270 = vunpack.c.h.b16 %v169
    %v1271 = vunpack.c.l.b16 %v170
    %v1272 = vunpack.c.h.b16 %v170
    %v1273 = vunpack.c.l.b16 %v171
    %v1274 = vunpack.c.h.b16 %v171
    %v1275 = vunpack.c.l.b16 %v172
    %v1276 = vunpack.c.h.b16 %v172
    %v1277 = vunpack.c.l.b16 %v173
    %v1278 = vunpack.c.h.b16 %v173
    %v1279 = vunpack.c.l.b16 %v174
    %v1280 = vunpack.c.h.b16 %v174
    %v1281 = vunpack.c.l.b16 %v175
    %v1282 = vunpack.c.h.b16 %v175
    %v1283 = vunpack.c.l.b16 %v176
    %v1284 = vunpack.c.h.b16 %v176
    %v1285 = vunpack.c.l.b16 %v177
    %v1286 = vunpack.c.h.b16 %v177
    %v1287 = vunpack.c.l.b16 %v178
    %v1288 = vunpack.c.h.b16 %v178
    %v1289 = vunpack.c.l.b16 %v179
    %v1290 = vunpack.c.h.b16 %v179
    %v1291 = vunpack.c.l.b16 %v180
    %v1292 = vunpack.c.h.b16 %v180
    %v1293 = vunpack.c.l.b16 %v181
    %v1294 = vunpack.c.h.b16 %v181
    %v1295 = vunpack.c.l.b16 %v182
    %v1296 = vunpack.c.h.b16 %v182
    %v1297 = vunpack.c.l.b16 %v183
    %v1298 = vunpack.c.h.b16 %v183
    %v1299 = vunpack.c.l.b16 %v184
    %v1300 = vunpack.c.h.b16 %v184
    %v1301 = vunpack.c.l.b16 %v185
    %v1302 = vunpack.c.h.b16 %v185
    %v1303 = vunpack.c.l.b16 %v186
    %v1304 = vunpack.c.h.b16 %v186
    %v1305 = vunpack.c.l.b16 %v187
    %v1306 = vunpack.c.h.b16 %v187
    %v1307 = vunpack.c.l.b16 %v188
    %v1308 = vunpack.c.h.b16 %v188
    %v1309 = vunpack.c.l.b16 %v189
    %v1310 = vunpack.c.h.b16 %v189
    %v1311 = vunpack.c.l.b16 %v190
    %v1312 = vunpack.c.h.b16 %v190
    %v1313 = vunpack.c.l.b16 %v191
    %v1314 = vunpack.c.h.b16 %v191
    %v1315 = vunpack.c.l.b16 %v192
    %v1316 = vunpack.c.h.b16 %v192
    %v1317 = vunpack.c.l.b16 %v193
    %v1318 = vunpack.c.h.b16 %v193
    %v1319 = vunpack.c.l.b16 %v194
    %v1320 = vunpack.c.h.b16 %v194
    %v1321 = vunpack.c.l.b16 %v195
    %v1322 = vunpack.c.h.b16 %v195
    %v1323 = vunpack.c.l.b16 %v196
    %v1324 = vunpack.c.h.b16 %v196
    %v1325 = vunpack.c.l.b16 %v197
    %v1326 = vunpack.c.h.b16 %v197
    %v1327 = vunpack.c.l.b16 %v198
    %v1328 = vunpack.c.h.b16 %v198
    %v1329 = vunpack.c.l.b16 %v199
    %v1330 = vunpack.c.h.b16 %v199
    %v1331 = vunpack.c.l.b16 %v200
    %v1332 = vunpack.c.h.b16 %v200
    %v1333 = vunpack.c.l.b16 %v201
    %v1334 = vunpack.c.h.b16 %v201
    %v1335 = vunpack.c.l.b16 %v202
    %v1336 = vunpack.c.h.b16 %v202
    %v1337 = vunpack.c.l.b16 %v203
    %v1338 = vunpack.c.h.b16 %v203
    %v1339 = vunpack.c.l.b16 %v204
    %v1340 = vunpack.c.h.b16 %v204
    %v1341 = vunpack.c.l.b16 %v205
    %v1342 = vunpack.c.h.b16 %v205
    %v1343 = vunpack.c.l.b16 %v206
    %v1344 = vunpack.c.h.b16 %v206
    %v1345 = vunpack.c.l.b16 %v207
    %v1346 = vunpack.c.h.b16 %v207
    %v1347 = vunpack.c.l.b16 %v208
    %v1348 = vunpack.c.h.b16 %v208
    %v1349 = vunpack.c.l.b16 %v209
    %v1350 = vunpack.c.h.b16 %v209
    %v1351 = vunpack.c.l.b16 %v210
    %v1352 = vunpack.c.h.b16 %v210
    %v1353 = vunpack.c.l.b16 %v211
    %v1354 = vunpack.c.h.b16 %v211
    %v1355 = vunpack.c.l.b16 %v212
    %v1356 = vunpack.c.h.b16 %v212
    %v1357 = vunpack.c.l.b16 %v213
    %v1358 = vunpack.c.h.b16 %v213
    %v1359 = vunpack.c.l.b16 %v214
    %v1360 = vunpack.c.h.b16 %v214
    %v1361 = vunpack.c.l.b16 %v215
    %v1362 = vunpack.c.h.b16 %v215
    %v1363 = vunpack.c.l.b16 %v216
    %v1364 = vunpack.c.h.b16 %v216
    %v1365 = vunpack.c.l.b16 %v217
    %v1366 = vunpack.c.h.b16 %v217
    %v1367 = vunpack.c.l.b16 %v218
    %v1368 = vunpack.c.h.b16 %v218
    %v1369 = vunpack.c.l.b16 %v219
    %v1370 = vunpack.c.h.b16 %v219
    %v1371 = vunpack.c.l.b16 %v220
    %v1372 = vunpack.c.h.b16 %v220
    %v1373 = vunpack.c.l.b16 %v221
    %v1374 = vunpack.c.h.b16 %v221
    %v1375 = vunpack.c.l.b16 %v222
    %v1376 = vunpack.c.h.b16 %v222
    %v1377 = vunpack.c.l.b16 %v223
    %v1378 = vunpack.c.h.b16 %v223
    %v1379 = vunpack.c.l.b16 %v224
    %v1380 = vunpack.c.h.b16 %v224
    %v1381 = vunpack.c.l.b16 %v225
    %v1382 = vunpack.c.h.b16 %v225
    %v1383 = vunpack.c.l.b16 %v226
    %v1384 = vunpack.c.h.b16 %v226
    %v1385 = vunpack.c.l.b16 %v227
    %v1386 = vunpack.c.h.b16 %v227
    %v1387 = vunpack.c.l.b16 %v228
    %v1388 = vunpack.c.h.b16 %v228
    %v1389 = vunpack.c.l.b16 %v229
    %v1390 = vunpack.c.h.b16 %v229
    %v1391 = vunpack.c.l.b16 %v230
    %v1392 = vunpack.c.h.b16 %v230
    %v1393 = vunpack.c.l.b16 %v231
    %v1394 = vunpack.c.h.b16 %v231
    %v1395 = vunpack.c.l.b16 %v232
    %v1396 = vunpack.c.h.b16 %v232
    %v1397 = vunpack.c.l.b16 %v233
    %v1398 = vunpack.c.h.b16 %v233
    %v1399 = vunpack.c.l.b16 %v234
    %v1400 = vunpack.c.h.b16 %v234
    %v1401 = vunpack.c.l.b16 %v235
    %v1402 = vunpack.c.h.b16 %v235
    %v1403 = vunpack.c.l.b16 %v236
    %v1404 = vunpack.c.h.b16 %v236
    %v1405 = vunpack.c.l.b16 %v237
    %v1406 = vunpack.c.h.b16 %v237
    %v1407 = vunpack.c.l.b16 %v238
    %v1408 = vunpack.c.h.b16 %v238
    %v1409 = vunpack.c.l.b16 %v239
    %v1410 = vunpack.c.h.b16 %v239
    %v1411 = vunpack.c.l.b16 %v240
    %v1412 = vunpack.c.h.b16 %v240
    %v1413 = vunpack.c.l.b16 %v241
    %v1414 = vunpack.c.h.b16 %v241
    %v1415 = vunpack.c.l.b16 %v242
    %v1416 = vunpack.c.h.b16 %v242
    %v1417 = vunpack.c.l.b16 %v243
    %v1418 = vunpack.c.h.b16 %v243
    %v1419 = vunpack.c.l.b16 %v244
    %v1420 = vunpack.c.h.b16 %v244
    %v1421 = vunpack.c.l.b16 %v245
    %v1422 = vunpack.c.h.b16 %v245
    %v1423 = vunpack.c.l.b16 %v246
    %v1424 = vunpack.c.h.b16 %v246
    %v1425 = vunpack.c.l.b16 %v247
    %v1426 = vunpack.c.h.b16 %v247
    %v1427 = vunpack.c.l.b16 %v248
    %v1428 = vunpack.c.h.b16 %v248
    %v1429 = vunpack.c.l.b16 %v249
    %v1430 = vunpack.c.h.b16 %v249
    %v1431 = vunpack.c.l.b16 %v250
    %v1432 = vunpack.c.h.b16 %v250
    %v1433 = vunpack.c.l.b16 %v251
    %v1434 = vunpack.c.h.b16 %v251
    %v1435 = vunpack.c.l.b16 %v252
    %v1436 = vunpack.c.h.b16 %v252
    %v1437 = vunpack.c.l.b16 %v253
    %v1438 = vunpack.c.h.b16 %v253
    %v1439 = vunpack.c.l.b16 %v254
    %v1440 = vunpack.c.h.b16 %v254
    %v1441 = vunpack.c.l.b16 %v255
    %v1442 = vunpack.c.h.b16 %v255
    %v1443 = vunpack.c.l.b16 %v256
    %v1444 = vunpack.c.h.b16 %v256
    %v1445 = vunpack.c.l.b16 %v257
    %v1446 = vunpack.c.h.b16 %v257
    %v1447 = vunpack.c.l.b16 %v258
    %v1448 = vunpack.c.h.b16 %v258
    %v1449 = vunpack.c.l.b16 %v259
    %v1450 = vunpack.c.h.b16 %v259
    %v1451 = vunpack.c.l.b16 %v260
    %v1452 = vunpack.c.h.b16 %v260
    %v1453 = vunpack.c.l.b16 %v261
    %v1454 = vunpack.c.h.b16 %v261
    %v1455 = vunpack.c.l.b16 %v262
    %v1456 = vunpack.c.h.b16 %v262
    %v1457 = vunpack.c.l.b16 %v263
    %v1458 = vunpack.c.h.b16 %v263
    %v1459 = vunpack.c.l.b16 %v264
    %v1460 = vunpack.c.h.b16 %v264
    %v1461 = vunpack.c.l.b16 %v265
    %v1462 = vunpack.c.h.b16 %v265
    %v1463 = vunpack.c.l.b16 %v266
    %v1464 = vunpack.c.h.b16 %v266
    %v1465 = vunpack.c.l.b16 %v267
    %v1466 = vunpack.c.h.b16 %v267
    %v1467 = vunpack.c.l.b16 %v268
    %v1468 = vunpack.c.h.b16 %v268
    %v1469 = vunpack.c.l.b16 %v269
    %v1470 = vunpack.c.h.b16 %v269
    %v1471 = vunpack.c.l.b16 %v270
    %v1472 = vunpack.c.h.b16 %v270
    %v1473 = vunpack.c.l.b16 %v271
    %v1474 = vunpack.c.h.b16 %v271
    %v1475 = vunpack.c.l.b16 %v272
    %v1476 = vunpack.c.h.b16 %v272
    %v1477 = vunpack.c.l.b16 %v273
    %v1478 = vunpack.c.h.b16 %v273
    %v1479 = vunpack.c.l.b16 %v274
    %v1480 = vunpack.c.h.b16 %v274
    %v1481 = vunpack.c.l.b16 %v275
    %v1482 = vunpack.c.h.b16 %v275
    %v1483 = vunpack.c.l.b16 %v276
    %v1484 = vunpack.c.h.b16 %v276
    %v1485 = vunpack.c.l.b16 %v277
    %v1486 = vunpack.c.h.b16 %v277
    %v1487 = vunpack.c.l.b16 %v278
    %v1488 = vunpack.c.h.b16 %v278
    %v1489 = vunpack.c.l.b16 %v279
    %v1490 = vunpack.c.h.b16 %v279
    %v1491 = vunpack.c.l.b16 %v280
    %v1492 = vunpack.c.h.b16 %v280
    %v1493 = vunpack.c.l.b16 %v281
    %v1494 = vunpack.c.h.b16 %v281
    %v1495 = vunpack.c.l.b16 %v282
    %v1496 = vunpack.c.h.b16 %v282
    %v1497 = vunpack.c.l.b16 %v283
    %v1498 = vunpack.c.h.b16 %v283
    %v1499 = vunpack.c.l.b16 %v284
    %v1500 = vunpack.c.h.b16 %v284
    %v1501 = vunpack.c.l.b16 %v285
    %v1502 = vunpack.c.h.b16 %v285
    %v1503 = vunpack.c.l.b16 %v286
    %v1504 = vunpack.c.h.b16 %v286
    %v1505 = vunpack.c.l.b16 %v287
    %v1506 = vunpack.c.h.b16 %v287
    %v1507 = vunpack.c.l.b16 %v288
    %v1508 = vunpack.c.h.b16 %v288
    %v1509 = vunpack.c.l.b16 %v289
    %v1510 = vunpack.c.h.b16 %v289
    %v1511 = vunpack.c.l.b16 %v290
    %v1512 = vunpack.c.h.b16 %v290
    %v1513 = vunpack.c.l.b16 %v291
    %v1514 = vunpack.c.h.b16 %v291
    %v1515 = vunpack.c.l.b16 %v292
    %v1516 = vunpack.c.h.b16 %v292
    %v1517 = vunpack.c.l.b16 %v293
    %v1518 = vunpack.c.h.b16 %v293
    %v1519 = vunpack.c.l.b16 %v294
    %v1520 = vunpack.c.h.b16 %v294
    %v1521 = vunpack.c.l.b16 %v295
    %v1522 = vunpack.c.h.b16 %v295
    %v1523 = vunpack.c.l.b16 %v296
    %v1524 = vunpack.c.h.b16 %v296
    %v1525 = vunpack.c.l.b16 %v297
    %v1526 = vunpack.c.h.b16 %v297
    %v1527 = vunpack.c.l.b16 %v298
    %v1528 = vunpack.c.h.b16 %v298
    %v1529 = vunpack.c.l.b16 %v299
    %v1530 = vunpack.c.h.b16 %v299
    %v1531 = vunpack.c.l.b16 %v300
    %v1532 = vunpack.c.h.b16 %v300
    %v1533 = vunpack.c.l.b16 %v301
    %v1534 = vunpack.c.h.b16 %v301
    %v1535 = vunpack.c.l.b16 %v302
    %v1536 = vunpack.c.h.b16 %v302
    %v1537 = vunpack.c.l.b16 %v303
    %v1538 = vunpack.c.h.b16 %v303
    %v1539 = vunpack.c.l.b16 %v304
    %v1540 = vunpack.c.h.b16 %v304
    %v1541 = vunpack.c.l.b16 %v305
    %v1542 = vunpack.c.h.b16 %v305
    %v1543 = vunpack.c.l.b16 %v306
    %v1544 = vunpack.c.h.b16 %v306
    %v1545 = vunpack.c.l.b16 %v307
    %v1546 = vunpack.c.h.b16 %v307
    %v1547 = vunpack.c.l.b16 %v308
    %v1548 = vunpack.c.h.b16 %v308
    %v1549 = vunpack.c.l.b16 %v309
    %v1550 = vunpack.c.h.b16 %v309
    %v1551 = vunpack.c.l.b16 %v310
    %v1552 = vunpack.c.h.b16 %v310
    %v1553 = vunpack.c.l.b16 %v311
    %v1554 = vunpack.c.h.b16 %v311
    %v1555 = vunpack.c.l.b16 %v312
    %v1556 = vunpack.c.h.b16 %v312
    %v1557 = vunpack.c.l.b16 %v313
    %v1558 = vunpack.c.h.b16 %v313
    %v1559 = vunpack.c.l.b16 %v314
    %v1560 = vunpack.c.h.b16 %v314
    %v1561 = vunpack.c.l.b16 %v315
    %v1562 = vunpack.c.h.b16 %v315
    %v1563 = vunpack.c.l.b16 %v316
    %v1564 = vunpack.c.h.b16 %v316
    %v1565 = vunpack.c.l.b16 %v317
    %v1566 = vunpack.c.h.b16 %v317
    %v1567 = vunpack.c.l.b16 %v318
    %v1568 = vunpack.c.h.b16 %v318
    %v1569 = vunpack.c.l.b16 %v319
    %v1570 = vunpack.c.h.b16 %v319
    %v1571 = vunpack.c.l.b16 %v320
    %v1572 = vunpack.c.h.b16 %v320
    %v1573 = vunpack.c.l.b16 %v321
    %v1574 = vunpack.c.h.b16 %v321
    %v1575 = vunpack.c.l.b16 %v322
    %v1576 = vunpack.c.h.b16 %v322
    %v1577 = vunpack.c.l.b16 %v323
    %v1578 = vunpack.c.h.b16 %v323
    %v1579 = vunpack.c.l.b16 %v324
    %v1580 = vunpack.c.h.b16 %v324
    %v1581 = vunpack.c.l.b16 %v325
    %v1582 = vunpack.c.h.b16 %v325
    %v1583 = vunpack.c.l.b16 %v326
    %v1584 = vunpack.c.h.b16 %v326
    %v1585 = vunpack.c.l.b16 %v327
    %v1586 = vunpack.c.h.b16 %v327
    %v1587 = vunpack.c.l.b16 %v328
    %v1588 = vunpack.c.h.b16 %v328
    %v1589 = vunpack.c.l.b16 %v329
    %v1590 = vunpack.c.h.b16 %v329
    %v1591 = vunpack.c.l.b16 %v330
    %v1592 = vunpack.c.h.b16 %v330
    %v1593 = vunpack.c.l.b16 %v331
    %v1594 = vunpack.c.h.b16 %v331
    %v1595 = vunpack.c.l.b16 %v332
    %v1596 = vunpack.c.h.b16 %v332
    %v1597 = vunpack.c.l.b16 %v333
    %v1598 = vunpack.c.h.b16 %v333
    %v1599 = vunpack.c.l.b16 %v334
    %v1600 = vunpack.c.h.b16 %v334
    %v1601 = vunpack.c.l.b16 %v335
    %v1602 = vunpack.c.h.b16 %v335
    %v1603 = vunpack.c.l.b16 %v336
    %v1604 = vunpack.c.h.b16 %v336
    %v1605 = vunpack.c.l.b16 %v337
    %v1606 = vunpack.c.h.b16 %v337
    %v1607 = vunpack.c.l.b16 %v338
    %v1608 = vunpack.c.h.b16 %v338
    %v1609 = vunpack.c.l.b16 %v339
    %v1610 = vunpack.c.h.b16 %v339
    %v1611 = vunpack.c.l.b16 %v340
    %v1612 = vunpack.c.h.b16 %v340
    %v1613 = vunpack.c.l.b16 %v341
    %v1614 = vunpack.c.h.b16 %v341
    %v1615 = vunpack.c.l.b16 %v342
    %v1616 = vunpack.c.h.b16 %v342
    %v1617 = vunpack.c.l.b16 %v343
    %v1618 = vunpack.c.h.b16 %v343
    %v1619 = vunpack.c.l.b16 %v344
    %v1620 = vunpack.c.h.b16 %v344
    %v1621 = vunpack.c.l.b16 %v345
    %v1622 = vunpack.c.h.b16 %v345
    %v1623 = vunpack.c.l.b16 %v346
    %v1624 = vunpack.c.h.b16 %v346
    %v1625 = vunpack.c.l.b16 %v347
    %v1626 = vunpack.c.h.b16 %v347
    %v1627 = vunpack.c.l.b16 %v348
    %v1628 = vunpack.c.h.b16 %v348
    %v1629 = vunpack.c.l.b16 %v349
    %v1630 = vunpack.c.h.b16 %v349
    %v1631 = vunpack.c.l.b16 %v350
    %v1632 = vunpack.c.h.b16 %v350
    %v1633 = vunpack.c.l.b16 %v351
    %v1634 = vunpack.c.h.b16 %v351
    %v1635 = vunpack.c.l.b16 %v352
    %v1636 = vunpack.c.h.b16 %v352
    %v1637 = vunpack.c.l.b16 %v353
    %v1638 = vunpack.c.h.b16 %v353
    %v1639 = vunpack.c.l.b16 %v354
    %v1640 = vunpack.c.h.b16 %v354
    %v1641 = vunpack.c.l.b16 %v355
    %v1642 = vunpack.c.h.b16 %v355
    %v1643 = vunpack.c.l.b16 %v356
    %v1644 = vunpack.c.h.b16 %v356
    %v1645 = vunpack.c.l.b16 %v357
    %v1646 = vunpack.c.h.b16 %v357
    %v1647 = vunpack.c.l.b16 %v358
    %v1648 = vunpack.c.h.b16 %v358
    %v1649 = vunpack.c.l.b16 %v359
    %v1650 = vunpack.c.h.b16 %v359
    %v1651 = vunpack.c.l.b16 %v360
    %v1652 = vunpack.c.h.b16 %v360
    %v1653 = vunpack.c.l.b16 %v361
    %v1654 = vunpack.c.h.b16 %v361
    %v1655 = vunpack.c.l.b16 %v362
    %v1656 = vunpack.c.h.b16 %v362
    %v1657 = vunpack.c.l.b16 %v363
    %v1658 = vunpack.c.h.b16 %v363
    %v1659 = vunpack.c.l.b16 %v364
    %v1660 = vunpack.c.h.b16 %v364
    %v1661 = vunpack.c.l.b16 %v365
    %v1662 = vunpack.c.h.b16 %v365
    %v1663 = vunpack.c.l.b16 %v366
    %v1664 = vunpack.c.h.b16 %v366
    %v1665 = vunpack.c.l.b16 %v367
    %v1666 = vunpack.c.h.b16 %v367
    %v1667 = vunpack.c.l.b16 %v368
    %v1668 = vunpack.c.h.b16 %v368
    %v1669 = vunpack.c.l.b16 %v369
    %v1670 = vunpack.c.h.b16 %v369
    %v1671 = vunpack.c.l.b16 %v370
    %v1672 = vunpack.c.h.b16 %v370
    %v1673 = vunpack.c.l.b16 %v371
    %v1674 = vunpack.c.h.b16 %v371
    %v1675 = vunpack.c.l.b16 %v372
    %v1676 = vunpack.c.h.b16 %v372
    %v1677 = vunpack.c.l.b16 %v373
    %v1678 = vunpack.c.h.b16 %v373
    %v1679 = vunpack.c.l.b16 %v374
    %v1680 = vunpack.c.h.b16 %v374
    %v1681 = vunpack.c.l.b16 %v375
    %v1682 = vunpack.c.h.b16 %v375
    %v1683 = vunpack.c.l.b16 %v376
    %v1684 = vunpack.c.h.b16 %v376
    %v1685 = vunpack.c.l.b16 %v377
    %v1686 = vunpack.c.h.b16 %v377
    %v1687 = vunpack.c.l.b16 %v378
    %v1688 = vunpack.c.h.b16 %v378
    %v1689 = vunpack.c.l.b16 %v379
    %v1690 = vunpack.c.h.b16 %v379
    %v1691 = vunpack.c.l.b16 %v380
    %v1692 = vunpack.c.h.b16 %v380
    %v1693 = vunpack.c.l.b16 %v381
    %v1694 = vunpack.c.h.b16 %v381
    %v1695 = vunpack.c.l.b16 %v382
    %v1696 = vunpack.c.h.b16 %v382
    %v1697 = vunpack.c.l.b16 %v383
    %v1698 = vunpack.c.h.b16 %v383
    %v1699 = vunpack.c.l.b16 %v384
    %v1700 = vunpack.c.h.b16 %v384
    %v1701 = vunpack.c.l.b16 %v385
    %v1702 = vunpack.c.h.b16 %v385
    %v1703 = vunpack.c.l.b16 %v386
    %v1704 = vunpack.c.h.b16 %v386
    %v1705 = vunpack.c.l.b16 %v387
    %v1706 = vunpack.c.h.b16 %v387
    %v1707 = vunpack.c.l.b16 %v388
    %v1708 = vunpack.c.h.b16 %v388
    %v1709 = vunpack.c.l.b16 %v389
    %v1710 = vunpack.c.h.b16 %v389
    %v1711 = vunpack.c.l.b16 %v390
    %v1712 = vunpack.c.h.b16 %v390
    %v1713 = vunpack.c.l.b16 %v391
    %v1714 = vunpack.c.h.b16 %v391
    %v1715 = vunpack.c.l.b16 %v392
    %v1716 = vunpack.c.h.b16 %v392
    %v1717 = vunpack.c.l.b16 %v393
    %v1718 = vunpack.c.h.b16 %v393
    %v1719 = vunpack.c.l.b16 %v394
    %v1720 = vunpack.c.h.b16 %v394
    %v1721 = vunpack.c.l.b16 %v395
    %v1722 = vunpack.c.h.b16 %v395
    %v1723 = vunpack.c.l.b16 %v396
    %v1724 = vunpack.c.h.b16 %v396
    %v1725 = vunpack.c.l.b16 %v397
    %v1726 = vunpack.c.h.b16 %v397
    %v1727 = vunpack.c.l.b16 %v398
    %v1728 = vunpack.c.h.b16 %v398
    %v1729 = vunpack.c.l.b16 %v399
    %v1730 = vunpack.c.h.b16 %v399
    %v1731 = vunpack.c.l.b16 %v400
    %v1732 = vunpack.c.h.b16 %v400
    %v1733 = vunpack.c.l.b16 %v401
    %v1734 = vunpack.c.h.b16 %v401
    %v1735 = vunpack.c.l.b16 %v402
    %v1736 = vunpack.c.h.b16 %v402
    %v1737 = vunpack.c.l.b16 %v403
    %v1738 = vunpack.c.h.b16 %v403
    %v1739 = vunpack.c.l.b16 %v404
    %v1740 = vunpack.c.h.b16 %v404
    %v1741 = vunpack.c.l.b16 %v405
    %v1742 = vunpack.c.h.b16 %v405
    %v1743 = vunpack.c.l.b16 %v406
    %v1744 = vunpack.c.h.b16 %v406
    %v1745 = vunpack.c.l.b16 %v407
    %v1746 = vunpack.c.h.b16 %v407
    %v1747 = vunpack.c.l.b16 %v408
    %v1748 = vunpack.c.h.b16 %v408
    %v1749 = vunpack.c.l.b16 %v409
    %v1750 = vunpack.c.h.b16 %v409
    %v1751 = vunpack.c.l.b16 %v410
    %v1752 = vunpack.c.h.b16 %v410
    %v1753 = vunpack.c.l.b16 %v411
    %v1754 = vunpack.c.h.b16 %v411
    %v1755 = vunpack.c.l.b16 %v412
    %v1756 = vunpack.c.h.b16 %v412
    %v1757 = vunpack.c.l.b16 %v413
    %v1758 = vunpack.c.h.b16 %v413
    %v1759 = vunpack.c.l.b16 %v414
    %v1760 = vunpack.c.h.b16 %v414
    %v1761 = vunpack.c.l.b16 %v415
    %v1762 = vunpack.c.h.b16 %v415
    %v1763 = vunpack.c.l.b16 %v416
    %v1764 = vunpack.c.h.b16 %v416
    %v1765 = vunpack.c.l.b16 %v417
    %v1766 = vunpack.c.h.b16 %v417
    %v1767 = vunpack.c.l.b16 %v418
    %v1768 = vunpack.c.h.b16 %v418
    %v1769 = vunpack.c.l.b16 %v419
    %v1770 = vunpack.c.h.b16 %v419
    %v1771 = vunpack.c.l.b16 %v420
    %v1772 = vunpack.c.h.b16 %v420
    %v1773 = vunpack.c.l.b16 %v421
    %v1774 = vunpack.c.h.b16 %v421
    %v1775 = vunpack.c.l.b16 %v422
    %v1776 = vunpack.c.h.b16 %v422
    %v1777 = vunpack.c.l.b16 %v423
    %v1778 = vunpack.c.h.b16 %v423
    %v1779 = vunpack.c.l.b16 %v424
    %v1780 = vunpack.c.h.b16 %v424
    %v1781 = vunpack.c.l.b16 %v425
    %v1782 = vunpack.c.h.b16 %v425
    %v1783 = vunpack.c.l.b16 %v426
    %v1784 = vunpack.c.h.b16 %v426
    %v1785 = vunpack.c.l.b16 %v427
    %v1786 = vunpack.c.h.b16 %v427
    %v1787 = vunpack.c.l.b16 %v428
    %v1788 = vunpack.c.h.b16 %v428
    %v1789 = vunpack.c.l.b16 %v429
    %v1790 = vunpack.c.h.b16 %v429
    %v1791 = vunpack.c.l.b16 %v430
    %v1792 = vunpack.c.h.b16 %v430
    %v1793 = vunpack.c.l.b16 %v431
    %v1794 = vunpack.c.h.b16 %v431
    %v1795 = vunpack.c.l.b16 %v432
    %v1796 = vunpack.c.h.b16 %v432
    %v1797 = vunpack.c.l.b16 %v433
    %v1798 = vunpack.c.h.b16 %v433
    %v1799 = vunpack.c.l.b16 %v434
    %v1800 = vunpack.c.h.b16 %v434
    %v1801 = vunpack.c.l.b16 %v435
    %v1802 = vunpack.c.h.b16 %v435
    %v1803 = vunpack.c.l.b16 %v436
    %v1804 = vunpack.c.h.b16 %v436
    %v1805 = vunpack.c.l.b16 %v437
    %v1806 = vunpack.c.h.b16 %v437
    %v1807 = vunpack.c.l.b16 %v438
    %v1808 = vunpack.c.h.b16 %v438
    %v1809 = vunpack.c.l.b16 %v439
    %v1810 = vunpack.c.h.b16 %v439
    %v1811 = vunpack.c.l.b16 %v440
    %v1812 = vunpack.c.h.b16 %v440
    %v1813 = vunpack.c.l.b16 %v441
    %v1814 = vunpack.c.h.b16 %v441
    %v1815 = vunpack.c.l.b16 %v442
    %v1816 = vunpack.c.h.b16 %v442
    %v1817 = vunpack.c.l.b16 %v443
    %v1818 = vunpack.c.h.b16 %v443
    %v1819 = vunpack.c.l.b16 %v444
    %v1820 = vunpack.c.h.b16 %v444
    %v1821 = vunpack.c.l.b16 %v445
    %v1822 = vunpack.c.h.b16 %v445
    %v1823 = vunpack.c.l.b16 %v446
    %v1824 = vunpack.c.h.b16 %v446
    %v1825 = vunpack.c.l.b16 %v447
    %v1826 = vunpack.c.h.b16 %v447
    %v1827 = vunpack.c.l.b16 %v448
    %v1828 = vunpack.c.h.b16 %v448
    %v1829 = vunpack.c.l.b16 %v449
    %v1830 = vunpack.c.h.b16 %v449
    %v1831 = vunpack.c.l.b16 %v450
    %v1832 = vunpack.c.h.b16 %v450
    %v1833 = vunpack.c.l.b16 %v451
    %v1834 = vunpack.c.h.b16 %v451
    %v1835 = vunpack.c.l.b16 %v452
    %v1836 = vunpack.c.h.b16 %v452
    %v1837 = vunpack.c.l.b16 %v453
    %v1838 = vunpack.c.h.b16 %v453
    %v1839 = vunpack.c.l.b16 %v454
    %v1840 = vunpack.c.h.b16 %v454
    %v1841 = vunpack.c.l.b16 %v455
    %v1842 = vunpack.c.h.b16 %v455
    %v1843 = vunpack.c.l.b16 %v456
    %v1844 = vunpack.c.h.b16 %v456
    %v1845 = vunpack.c.l.b16 %v457
    %v1846 = vunpack.c.h.b16 %v457
    %v1847 = vunpack.c.l.b16 %v458
    %v1848 = vunpack.c.h.b16 %v458
    %v1849 = vunpack.c.l.b16 %v459
    %v1850 = vunpack.c.h.b16 %v459
    %v1851 = vunpack.c.l.b16 %v460
    %v1852 = vunpack.c.h.b16 %v460
    %v1853 = vunpack.c.l.b16 %v461
    %v1854 = vunpack.c.h.b16 %v461
    %v1855 = vunpack.c.l.b16 %v462
    %v1856 = vunpack.c.h.b16 %v462
    %v1857 = vunpack.c.l.b16 %v463
    %v1858 = vunpack.c.h.b16 %v463
    %v1859 = vunpack.c.l.b16 %v464
    %v1860 = vunpack.c.h.b16 %v464
    %v1861 = vunpack.c.l.b16 %v465
    %v1862 = vunpack.c.h.b16 %v465
    %v1863 = vunpack.c.l.b16 %v466
    %v1864 = vunpack.c.h.b16 %v466
    %v1865 = vunpack.c.l.b16 %v467
    %v1866 = vunpack.c.h.b16 %v467
    %v1867 = vunpack.c.l.b16 %v468
    %v1868 = vunpack.c.h.b16 %v468
    %v1869 = vunpack.c.l.b16 %v469
    %v1870 = vunpack.c.h.b16 %v469
    %v1871 = vunpack.c.l.b16 %v470
    %v1872 = vunpack.c.h.b16 %v470
    %v1873 = vunpack.c.l.b16 %v471
    %v1874 = vunpack.c.h.b16 %v471
    %v1875 = vunpack.c.l.b16 %v472
    %v1876 = vunpack.c.h.b16 %v472
    %v1877 = vunpack.c.l.b16 %v473
    %v1878 = vunpack.c.h.b16 %v473
    %v1879 = vunpack.c.l.b16 %v474
    %v1880 = vunpack.c.h.b16 %v474
    %v1881 = vunpack.c.l.b16 %v475
    %v1882 = vunpack.c.h.b16 %v475
    %v1883 = vunpack.c.l.b16 %v476
    %v1884 = vunpack.c.h.b16 %v476
    %v1885 = vunpack.c.l.b16 %v477
    %v1886 = vunpack.c.h.b16 %v477
    %v1887 = vunpack.c.l.b16 %v478
    %v1888 = vunpack.c.h.b16 %v478
    %v1889 = vunpack.c.l.b16 %v479
    %v1890 = vunpack.c.h.b16 %v479
    %v1891 = vpack.c.b16 %v1003, %v995
    %v1892 = vpack.c.b16 %v1004, %v996
    %v1893 = vpack.c.b16 %v1005, %v997
    %v1894 = vpack.c.b16 %v1006, %v998
    %v1895 = vpack.c.b16 %v1007, %v999
    %v1896 = vpack.c.b16 %v1008, %v1000
    %v1897 = vpack.c.b16 %v1009, %v1001
    %v1898 = vpack.c.b16 %v1010, %v1002
    %v1899 = vpack.c.b16 %v1019, %v1011
    %v1900 = vpack.c.b16 %v1020, %v1012
    %v1901 = vpack.c.b16 %v1021, %v1013
    %v1902 = vpack.c.b16 %v1022, %v1014
    %v1903 = vpack.c.b16 %v1023, %v1015
    %v1904 = vpack.c.b16 %v1024, %v1016
    %v1905 = vpack.c.b16 %v1025, %v1017
    %v1906 = vpack.c.b16 %v1026, %v1018
    %v1907 = vpack.c.b16 %v1035, %v1027
    %v1908 = vpack.c.b16 %v1036, %v1028
    %v1909 = vpack.c.b16 %v1037, %v1029
    %v1910 = vpack.c.b16 %v1038, %v1030
    %v1911 = vpack.c.b16 %v1039, %v1031
    %v1912 = vpack.c.b16 %v1040, %v1032
    %v1913 = vpack.c.b16 %v1041, %v1033
    %v1914 = vpack.c.b16 %v1042, %v1034
    %v1915 = vpack.c.b16 %v1051, %v1043
    %v1916 = vpack.c.b16 %v1052, %v1044
    %v1917 = vpack.c.b16 %v1053, %v1045
    %v1918 = vpack.c.b16 %v1054, %v1046
    %v1919 = vpack.c.b16 %v1055, %v1047
    %v1920 = vpack.c.b16 %v1056, %v1048
    %v1921 = vpack.c.b16 %v1057, %v1049
    %v1922 = vpack.c.b16 %v1058, %v1050
    %v1923 = vpack.c.b16 %v1067, %v1059
    %v1924 = vpack.c.b16 %v1068, %v1060
    %v1925 = vpack.c.b16 %v1069, %v1061
    %v1926 = vpack.c.b16 %v1070, %v1062
    %v1927 = vpack.c.b16 %v1071, %v1063
    %v1928 = vpack.c.b16 %v1072, %v1064
    %v1929 = vpack.c.b16 %v1073, %v1065
    %v1930 = vpack.c.b16 %v1074, %v1066
    %v1931 = vpack.c.b16 %v1083, %v1075
    %v1932 = vpack.c.b16 %v1084, %v1076
    %v1933 = vpack.c.b16 %v1085, %v1077
    %v1934 = vpack.c.b16 %v1086, %v1078
    %v1935 = vpack.c.b16 %v1087, %v1079
    %v1936 = vpack.c.b16 %v1088, %v1080
    %v1937 = vpack.c.b16 %v1089, %v1081
    %v1938 = vpack.c.b16 %v1090, %v1082
    %v1939 = vpack.c.b16 %v1099, %v1091
    %v1940 = vpack.c.b16 %v1100, %v1092
    %v1941 = vpack.c.b16 %v1101, %v1093
    %v1942 = vpack.c.b16 %v1102, %v1094
    %v1943 = vpack.c.b16 %v1103, %v1095
    %v1944 = vpack.c.b16 %v1104, %v1096
    %v1945 = vpack.c.b16 %v1105, %v1097
    %v1946 = vpack.c.b16 %v1106, %v1098
    %v1947 = vpack.c.b16 %v1115, %v1107
    %v1948 = vpack.c.b16 %v1116, %v1108
    %v1949 = vpack.c.b16 %v1117, %v1109
    %v1950 = vpack.c.b16 %v1118, %v1110
    %v1951 = vpack.c.b16 %v1119, %v1111
    %v1952 = vpack.c.b16 %v1120, %v1112
    %v1953 = vpack.c.b16 %v1121, %v1113
    %v1954 = vpack.c.b16 %v1122, %v1114
    %v1955 = vpack.c.b16 %v1131, %v1123
    %v1956 = vpack.c.b16 %v1132, %v1124
    %v1957 = vpack.c.b16 %v1133, %v1125
    %v1958 = vpack.c.b16 %v1134, %v1126
    %v1959 = vpack.c.b16 %v1135, %v1127
    %v1960 = vpack.c.b16 %v1136, %v1128
    %v1961 = vpack.c.b16 %v1137, %v1129
    %v1962 = vpack.c.b16 %v1138, %v1130
    %v1963 = vpack.c.b16 %v1147, %v1139
    %v1964 = vpack.c.b16 %v1148, %v1140
    %v1965 = vpack.c.b16 %v1149, %v1141
    %v1966 = vpack.c.b16 %v1150, %v1142
    %v1967 = vpack.c.b16 %v1151, %v1143
    %v1968 = vpack.c.b16 %v1152, %v1144
    %v1969 = vpack.c.b16 %v1153, %v1145
    %v1970 = vpack.c.b16 %v1154, %v1146
    %v1971 = vpack.c.b16 %v1163, %v1155
    %v1972 = vpack.c.b16 %v1164, %v1156
    %v1973 = vpack.c.b16 %v1165, %v1157
    %v1974 = vpack.c.b16 %v1166, %v1158
    %v1975 = vpack.c.b16 %v1167, %v1159
    %v1976 = vpack.c.b16 %v1168, %v1160
    %v1977 = vpack.c.b16 %v1169, %v1161
    %v1978 = vpack.c.b16 %v1170, %v1162
    %v1979 = vpack.c.b16 %v1179, %v1171
    %v1980 = vpack.c.b16 %v1180, %v1172
    %v1981 = vpack.c.b16 %v1181, %v1173
    %v1982 = vpack.c.b16 %v1182, %v1174
    %v1983 = vpack.c.b16 %v1183, %v1175
    %v1984 = vpack.c.b16 %v1184, %v1176
    %v1985 = vpack.c.b16 %v1185, %v1177
    %v1986 = vpack.c.b16 %v1186, %v1178
    %v1987 = vpack.c.b16 %v1195, %v1187
    %v1988 = vpack.c.b16 %v1196, %v1188
    %v1989 = vpack.c.b16 %v1197, %v1189
    %v1990 = vpack.c.b16 %v1198, %v1190
    %v1991 = vpack.c.b16 %v1199, %v1191
    %v1992 = vpack.c.b16 %v1200, %v1192
    %v1993 = vpack.c.b16 %v1201, %v1193
    %v1994 = vpack.c.b16 %v1202, %v1194
    %v1995 = vpack.c.b16 %v1211, %v1203
    %v1996 = vpack.c.b16 %v1212, %v1204
    %v1997 = vpack.c.b16 %v1213, %v1205
    %v1998 = vpack.c.b16 %v1214, %v1206
    %v1999 = vpack.c.b16 %v1215, %v1207
    %v2000 = vpack.c.b16 %v1216, %v1208
    %v2001 = vpack.c.b16 %v1217, %v1209
    %v2002 = vpack.c.b16 %v1218, %v1210
    %v2003 = vpack.c.b16 %v1227, %v1219
    %v2004 = vpack.c.b16 %v1228, %v1220
    %v2005 = vpack.c.b16 %v1229, %v1221
    %v2006 = vpack.c.b16 %v1230, %v1222
    %v2007 = vpack.c.b16 %v1231, %v1223
    %v2008 = vpack.c.b16 %v1232, %v1224
    %v2009 = vpack.c.b16 %v1233, %v1225
    %v2010 = vpack.c.b16 %v1234, %v1226
    %v2011 = vpack.c.b16 %v1243, %v1235
    %v2012 = vpack.c.b16 %v1244, %v1236
    %v2013 = vpack.c.b16 %v1245, %v1237
    %v2014 = vpack.c.b16 %v1246, %v1238
    %v2015 = vpack.c.b16 %v1247, %v1239
    %v2016 = vpack.c.b16 %v1248, %v1240
    %v2017 = vpack.c.b16 %v1249, %v1241
    %v2018 = vpack.c.b16 %v1250, %v1242
    %v2019 = vpack.c.b16 %v1259, %v1251
    %v2020 = vpack.c.b16 %v1260, %v1252
    %v2021 = vpack.c.b16 %v1261, %v1253
    %v2022 = vpack.c.b16 %v1262, %v1254
    %v2023 = vpack.c.b16 %v1263, %v1255
    %v2024 = vpack.c.b16 %v1264, %v1256
    %v2025 = vpack.c.b16 %v1265, %v1257
    %v2026 = vpack.c.b16 %v1266, %v1258
    %v2027 = vpack.c.b16 %v1275, %v1267
    %v2028 = vpack.c.b16 %v1276, %v1268
    %v2029 = vpack.c.b16 %v1277, %v1269
    %v2030 = vpack.c.b16 %v1278, %v1270
    %v2031 = vpack.c.b16 %v1279, %v1271
    %v2032 = vpack.c.b16 %v1280, %v1272
    %v2033 = vpack.c.b16 %v1281, %v1273
    %v2034 = vpack.c.b16 %v1282, %v1274
    %v2035 = vpack.c.b16 %v1291, %v1283
    %v2036 = vpack.c.b16 %v1292, %v1284
    %v2037 = vpack.c.b16 %v1293, %v1285
    %v2038 = vpack.c.b16 %v1294, %v1286
    %v2039 = vpack.c.b16 %v1295, %v1287
    %v2040 = vpack.c.b16 %v1296, %v1288
    %v2041 = vpack.c.b16 %v1297, %v1289
    %v2042 = vpack.c.b16 %v1298, %v1290
    %v2043 = vpack.c.b16 %v1307, %v1299
    %v2044 = vpack.c.b16 %v1308, %v1300
    %v2045 = vpack.c.b16 %v1309, %v1301
    %v2046 = vpack.c.b16 %v1310, %v1302
    %v2047 = vpack.c.b16 %v1311, %v1303
    %v2048 = vpack.c.b16 %v1312, %v1304
    %v2049 = vpack.c.b16 %v1313, %v1305
    %v2050 = vpack.c.b16 %v1314, %v1306
    %v2051 = vpack.c.b16 %v1323, %v1315
    %v2052 = vpack.c.b16 %v1324, %v1316
    %v2053 = vpack.c.b16 %v1325, %v1317
    %v2054 = vpack.c.b16 %v1326, %v1318
    %v2055 = vpack.c.b16 %v1327, %v1319
    %v2056 = vpack.c.b16 %v1328, %v1320
    %v2057 = vpack.c.b16 %v1329, %v1321
    %v2058 = vpack.c.b16 %v1330, %v1322
    %v2059 = vpack.c.b16 %v1339, %v1331
    %v2060 = vpack.c.b16 %v1340, %v1332
    %v2061 = vpack.c.b16 %v1341, %v1333
    %v2062 = vpack.c.b16 %v1342, %v1334
    %v2063 = vpack.c.b16 %v1343, %v1335
    %v2064 = vpack.c.b16 %v1344, %v1336
    %v2065 = vpack.c.b16 %v1345, %v1337
    %v2066 = vpack.c.b16 %v1346, %v1338
    %v2067 = vpack.c.b16 %v1355, %v1347
    %v2068 = vpack.c.b16 %v1356, %v1348
    %v2069 = vpack.c.b16 %v1357, %v1349
    %v2070 = vpack.c.b16 %v1358, %v1350
    %v2071 = vpack.c.b16 %v1359, %v1351
    %v2072 = vpack.c.b16 %v1360, %v1352
    %v2073 = vpack.c.b16 %v1361, %v1353
    %v2074 = vpack.c.b16 %v1362, %v1354
    %v2075 = vpack.c.b16 %v1371, %v1363
    %v2076 = vpack.c.b16 %v1372, %v1364
    %v2077 = vpack.c.b16 %v1373, %v1365
    %v2078 = vpack.c.b16 %v1374, %v1366
    %v2079 = vpack.c.b16 %v1375, %v1367
    %v2080 = vpack.c.b16 %v1376, %v1368
    %v2081 = vpack.c.b16 %v1377, %v1369
    %v2082 = vpack.c.b16 %v1378, %v1370
    %v2083 = vpack.c.b16 %v1387, %v1379
    %v2084 = vpack.c.b16 %v1388, %v1380
    %v2085 = vpack.c.b16 %v1389, %v1381
    %v2086 = vpack.c.b16 %v1390, %v1382
    %v2087 = vpack.c.b16 %v1391, %v1383
    %v2088 = vpack.c.b16 %v1392, %v1384
    %v2089 = vpack.c.b16 %v1393, %v1385
    %v2090 = vpack.c.b16 %v1394, %v1386
    %v2091 = vpack.c.b16 %v1403, %v1395
    %v2092 = vpack.c.b16 %v1404, %v1396
    %v2093 = vpack.c.b16 %v1405, %v1397
    %v2094 = vpack.c.b16 %v1406, %v1398
    %v2095 = vpack.c.b16 %v1407, %v1399
    %v2096 = vpack.c.b16 %v1408, %v1400
    %v2097 = vpack.c.b16 %v1409, %v1401
    %v2098 = vpack.c.b16 %v1410, %v1402
    %v2099 = vpack.c.b16 %v1419, %v1411
    %v2100 = vpack.c.b16 %v1420, %v1412
    %v2101 = vpack.c.b16 %v1421, %v1413
    %v2102 = vpack.c.b16 %v1422, %v1414
    %v2103 = vpack.c.b16 %v1423, %v1415
    %v2104 = vpack.c.b16 %v1424, %v1416
    %v2105 = vpack.c.b16 %v1425, %v1417
    %v2106 = vpack.c.b16 %v1426, %v1418
    %v2107 = vpack.c.b16 %v1435, %v1427
    %v2108 = vpack.c.b16 %v1436, %v1428
    %v2109 = vpack.c.b16 %v1437, %v1429
    %v2110 = vpack.c.b16 %v1438, %v1430
    %v2111 = vpack.c.b16 %v1439, %v1431
    %v2112 = vpack.c.b16 %v1440, %v1432
    %v2113 = vpack.c.b16 %v1441, %v1433
    %v2114 = vpack.c.b16 %v1442, %v1434
    %v2115 = vpack.c.b16 %v1451, %v1443
    %v2116 = vpack.c.b16 %v1452, %v1444
    %v2117 = vpack.c.b16 %v1453, %v1445
    %v2118 = vpack.c.b16 %v1454, %v1446
    %v2119 = vpack.c.b16 %v1455, %v1447
    %v2120 = vpack.c.b16 %v1456, %v1448
    %v2121 = vpack.c.b16 %v1457, %v1449
    %v2122 = vpack.c.b16 %v1458, %v1450
    %v2123 = vpack.c.b16 %v1467, %v1459
    %v2124 = vpack.c.b16 %v1468, %v1460
    %v2125 = vpack.c.b16 %v1469, %v1461
    %v2126 = vpack.c.b16 %v1470, %v1462
    %v2127 = vpack.c.b16 %v1471, %v1463
    %v2128 = vpack.c.b16 %v1472, %v1464
    %v2129 = vpack.c.b16 %v1473, %v1465
    %v2130 = vpack.c.b16 %v1474, %v1466
    %v2131 = vpack.c.b16 %v1483, %v1475
    %v2132 = vpack.c.b16 %v1484, %v1476
    %v2133 = vpack.c.b16 %v1485, %v1477
    %v2134 = vpack.c.b16 %v1486, %v1478
    %v2135 = vpack.c.b16 %v1487, %v1479
    %v2136 = vpack.c.b16 %v1488, %v1480
    %v2137 = vpack.c.b16 %v1489, %v1481
    %v2138 = vpack.c.b16 %v1490, %v1482
    %v2139 = vpack.c.b16 %v1499, %v1491
    %v2140 = vpack.c.b16 %v1500, %v1492
    %v2141 = vpack.c.b16 %v1501, %v1493
    %v2142 = vpack.c.b16 %v1502, %v1494
    %v2143 = vpack.c.b16 %v1503, %v1495
    %v2144 = vpack.c.b16 %v1504, %v1496
    %v2145 = vpack.c.b16 %v1505, %v1497
    %v2146 = vpack.c.b16 %v1506, %v1498
    %v2147 = vpack.c.b16 %v1515, %v1507
    %v2148 = vpack.c.b16 %v1516, %v1508
    %v2149 = vpack.c.b16 %v1517, %v1509
    %v2150 = vpack.c.b16 %v1518, %v1510
    %v2151 = vpack.c.b16 %v1519, %v1511
    %v2152 = vpack.c.b16 %v1520, %v1512
    %v2153 = vpack.c.b16 %v1521, %v1513
    %v2154 = vpack.c.b16 %v1522, %v1514
    %v2155 = vpack.c.b16 %v1531, %v1523
    %v2156 = vpack.c.b16 %v1532, %v1524
    %v2157 = vpack.c.b16 %v1533, %v1525
    %v2158 = vpack.c.b16 %v1534, %v1526
    %v2159 = vpack.c.b16 %v1535, %v1527
    %v2160 = vpack.c.b16 %v1536, %v1528
    %v2161 = vpack.c.b16 %v1537, %v1529
    %v2162 = vpack.c.b16 %v1538, %v1530
    %v2163 = vpack.c.b16 %v1547, %v1539
    %v2164 = vpack.c.b16 %v1548, %v1540
    %v2165 = vpack.c.b16 %v1549, %v1541
    %v2166 = vpack.c.b16 %v1550, %v1542
    %v2167 = vpack.c.b16 %v1551, %v1543
    %v2168 = vpack.c.b16 %v1552, %v1544
    %v2169 = vpack.c.b16 %v1553, %v1545
    %v2170 = vpack.c.b16 %v1554, %v1546
    %v2171 = vpack.c.b16 %v1563, %v1555
    %v2172 = vpack.c.b16 %v1564, %v1556
    %v2173 = vpack.c.b16 %v1565, %v1557
    %v2174 = vpack.c.b16 %v1566, %v1558
    %v2175 = vpack.c.b16 %v1567, %v1559
    %v2176 = vpack.c.b16 %v1568, %v1560
    %v2177 = vpack.c.b16 %v1569, %v1561
    %v2178 = vpack.c.b16 %v1570, %v1562
    %v2179 = vpack.c.b16 %v1579, %v1571
    %v2180 = vpack.c.b16 %v1580, %v1572
    %v2181 = vpack.c.b16 %v1581, %v1573
    %v2182 = vpack.c.b16 %v1582, %v1574
    %v2183 = vpack.c.b16 %v1583, %v1575
    %v2184 = vpack.c.b16 %v1584, %v1576
    %v2185 = vpack.c.b16 %v1585, %v1577
    %v2186 = vpack.c.b16 %v1586, %v1578
    %v2187 = vpack.c.b16 %v1595, %v1587
    %v2188 = vpack.c.b16 %v1596, %v1588
    %v2189 = vpack.c.b16 %v1597, %v1589
    %v2190 = vpack.c.b16 %v1598, %v1590
    %v2191 = vpack.c.b16 %v1599, %v1591
    %v2192 = vpack.c.b16 %v1600, %v1592
    %v2193 = vpack.c.b16 %v1601, %v1593
    %v2194 = vpack.c.b16 %v1602, %v1594
    %v2195 = vpack.c.b16 %v1611, %v1603
    %v2196 = vpack.c.b16 %v1612, %v1604
    %v2197 = vpack.c.b16 %v1613, %v1605
    %v2198 = vpack.c.b16 %v1614, %v1606
    %v2199 = vpack.c.b16 %v1615, %v1607
    %v2200 = vpack.c.b16 %v1616, %v1608
    %v2201 = vpack.c.b16 %v1617, %v1609
    %v2202 = vpack.c.b16 %v1618, %v1610
    %v2203 = vpack.c.b16 %v1627, %v1619
    %v2204 = vpack.c.b16 %v1628, %v1620
    %v2205 = vpack.c.b16 %v1629, %v1621
    %v2206 = vpack.c.b16 %v1630, %v1622
    %v2207 = vpack.c.b16 %v1631, %v1623
    %v2208 = vpack.c.b16 %v1632, %v1624
    %v2209 = vpack.c.b16 %v1633, %v1625
    %v2210 = vpack.c.b16 %v1634, %v1626
    %v2211 = vpack.c.b16 %v1643, %v1635
    %v2212 = vpack.c.b16 %v1644, %v1636
    %v2213 = vpack.c.b16 %v1645, %v1637
    %v2214 = vpack.c.b16 %v1646, %v1638
    %v2215 = vpack.c.b16 %v1647, %v1639
    %v2216 = vpack.c.b16 %v1648, %v1640
    %v2217 = vpack.c.b16 %v1649, %v1641
    %v2218 = vpack.c.b16 %v1650, %v1642
    %v2219 = vpack.c.b16 %v1659, %v1651
    %v2220 = vpack.c.b16 %v1660, %v1652
    %v2221 = vpack.c.b16 %v1661, %v1653
    %v2222 = vpack.c.b16 %v1662, %v1654
    %v2223 = vpack.c.b16 %v1663, %v1655
    %v2224 = vpack.c.b16 %v1664, %v1656
    %v2225 = vpack.c.b16 %v1665, %v1657
    %v2226 = vpack.c.b16 %v1666, %v1658
    %v2227 = vpack.c.b16 %v1675, %v1667
    %v2228 = vpack.c.b16 %v1676, %v1668
    %v2229 = vpack.c.b16 %v1677, %v1669
    %v2230 = vpack.c.b16 %v1678, %v1670
    %v2231 = vpack.c.b16 %v1679, %v1671
    %v2232 = vpack.c.b16 %v1680, %v1672
    %v2233 = vpack.c.b16 %v1681, %v1673
    %v2234 = vpack.c.b16 %v1682, %v1674
    %v2235 = vpack.c.b16 %v1691, %v1683
    %v2236 = vpack.c.b16 %v1692, %v1684
    %v2237 = vpack.c.b16 %v1693, %v1685
    %v2238 = vpack.c.b16 %v1694, %v1686
    %v2239 = vpack.c.b16 %v1695, %v1687
    %v2240 = vpack.c.b16 %v1696, %v1688
    %v2241 = vpack.c.b16 %v1697, %v1689
    %v2242 = vpack.c.b16 %v1698, %v1690
    %v2243 = vpack.c.b16 %v1707, %v1699
    %v2244 = vpack.c.b16 %v1708, %v1700
    %v2245 = vpack.c.b16 %v1709, %v1701
    %v2246 = vpack.c.b16 %v1710, %v1702
    %v2247 = vpack.c.b16 %v1711, %v1703
    %v2248 = vpack.c.b16 %v1712, %v1704
    %v2249 = vpack.c.b16 %v1713, %v1705
    %v2250 = vpack.c.b16 %v1714, %v1706
    %v2251 = vpack.c.b16 %v1723, %v1715
    %v2252 = vpack.c.b16 %v1724, %v1716
    %v2253 = vpack.c.b16 %v1725, %v1717
    %v2254 = vpack.c.b16 %v1726, %v1718
    %v2255 = vpack.c.b16 %v1727, %v1719
    %v2256 = vpack.c.b16 %v1728, %v1720
    %v2257 = vpack.c.b16 %v1729, %v1721
    %v2258 = vpack.c.b16 %v1730, %v1722
    %v2259 = vpack.c.b16 %v1739, %v1731
    %v2260 = vpack.c.b16 %v1740, %v1732
    %v2261 = vpack.c.b16 %v1741, %v1733
    %v2262 = vpack.c.b16 %v1742, %v1734
    %v2263 = vpack.c.b16 %v1743, %v1735
    %v2264 = vpack.c.b16 %v1744, %v1736
    %v2265 = vpack.c.b16 %v1745, %v1737
    %v2266 = vpack.c.b16 %v1746, %v1738
    %v2267 = vpack.c.b16 %v1755, %v1747
    %v2268 = vpack.c.b16 %v1756, %v1748
    %v2269 = vpack.c.b16 %v1757, %v1749
    %v2270 = vpack.c.b16 %v1758, %v1750
    %v2271 = vpack.c.b16 %v1759, %v1751
    %v2272 = vpack.c.b16 %v1760, %v1752
    %v2273 = vpack.c.b16 %v1761, %v1753
    %v2274 = vpack.c.b16 %v1762, %v1754
    %v2275 = vpack.c.b16 %v1771, %v1763
    %v2276 = vpack.c.b16 %v1772, %v1764
    %v2277 = vpack.c.b16 %v1773, %v1765
    %v2278 = vpack.c.b16 %v1774, %v1766
    %v2279 = vpack.c.b16 %v1775, %v1767
    %v2280 = vpack.c.b16 %v1776, %v1768
    %v2281 = vpack.c.b16 %v1777, %v1769
    %v2282 = vpack.c.b16 %v1778, %v1770
    %v2283 = vpack.c.b16 %v1787, %v1779
    %v2284 = vpack.c.b16 %v1788, %v1780
    %v2285 = vpack.c.b16 %v1789, %v1781
    %v2286 = vpack.c.b16 %v1790, %v1782
    %v2287 = vpack.c.b16 %v1791, %v1783
    %v2288 = vpack.c.b16 %v1792, %v1784
    %v2289 = vpack.c.b16 %v1793, %v1785
    %v2290 = vpack.c.b16 %v1794, %v1786
    %v2291 = vpack.c.b16 %v1803, %v1795
    %v2292 = vpack.c.b16 %v1804, %v1796
    %v2293 = vpack.c.b16 %v1805, %v1797
    %v2294 = vpack.c.b16 %v1806, %v1798
    %v2295 = vpack.c.b16 %v1807, %v1799
    %v2296 = vpack.c.b16 %v1808, %v1800
    %v2297 = vpack.c.b16 %v1809, %v1801
    %v2298 = vpack.c.b16 %v1810, %v1802
    %v2299 = vpack.c.b16 %v1819, %v1811
    %v2300 = vpack.c.b16 %v1820, %v1812
    %v2301 = vpack.c.b16 %v1821, %v1813
    %v2302 = vpack.c.b16 %v1822, %v1814
    %v2303 = vpack.c.b16 %v1823, %v1815
    %v2304 = vpack.c.b16 %v1824, %v1816
    %v2305 = vpack.c.b16 %v1825, %v1817
    %v2306 = vpack.c.b16 %v1826, %v1818
    %v2307 = vpack.c.b16 %v1835, %v1827
    %v2308 = vpack.c.b16 %v1836, %v1828
    %v2309 = vpack.c.b16 %v1837, %v1829
    %v2310 = vpack.c.b16 %v1838, %v1830
    %v2311 = vpack.c.b16 %v1839, %v1831
    %v2312 = vpack.c.b16 %v1840, %v1832
    %v2313 = vpack.c.b16 %v1841, %v1833
    %v2314 = vpack.c.b16 %v1842, %v1834
    %v2315 = vpack.c.b16 %v1851, %v1843
    %v2316 = vpack.c.b16 %v1852, %v1844
    %v2317 = vpack.c.b16 %v1853, %v1845
    %v2318 = vpack.c.b16 %v1854, %v1846
    %v2319 = vpack.c.b16 %v1855, %v1847
    %v2320 = vpack.c.b16 %v1856, %v1848
    %v2321 = vpack.c.b16 %v1857, %v1849
    %v2322 = vpack.c.b16 %v1858, %v1850
    %v2323 = vpack.c.b16 %v1867, %v1859
    %v2324 = vpack.c.b16 %v1868, %v1860
    %v2325 = vpack.c.b16 %v1869, %v1861
    %v2326 = vpack.c.b16 %v1870, %v1862
    %v2327 = vpack.c.b16 %v1871, %v1863
    %v2328 = vpack.c.b16 %v1872, %v1864
    %v2329 = vpack.c.b16 %v1873, %v1865
    %v2330 = vpack.c.b16 %v1874, %v1866
    %v2331 = vpack.c.b16 %v1883, %v1875
    %v2332 = vpack.c.b16 %v1884, %v1876
    %v2333 = vpack.c.b16 %v1885, %v1877
    %v2334 = vpack.c.b16 %v1886, %v1878
    %v2335 = vpack.c.b16 %v1887, %v1879
    %v2336 = vpack.c.b16 %v1888, %v1880
    %v2337 = vpack.c.b16 %v1889, %v1881
    %v2338 = vpack.c.b16 %v1890, %v1882
    %2787 = vmatprep.subr.bf16.mxu0 %v1948
    %2788 = vmatpush1.bf16.msra.mxu0 %v1947
    %2789 = vmatprep.subr.bf16.mxu0 %v1940
    %2790 = vmatpush1.bf16.msra.mxu0 %v1939
    %2791 = vmatprep.subr.bf16.mxu0 %v1932
    %2792 = vmatpush1.bf16.msra.mxu0 %v1931
    %2793 = vmatprep.subr.bf16.mxu0 %v1924
    %2794 = vmatpush1.bf16.msra.mxu0 %v1923
    %2795 = vmatprep.subr.bf16.mxu0 %v1916
    %2796 = vmatpush1.bf16.msra.mxu0 %v1915
    %2797 = vmatprep.subr.bf16.mxu0 %v1908
    %2798 = vmatpush1.bf16.msra.mxu0 %v1907
    %2799 = vmatprep.subr.bf16.mxu0 %v1900
    %2800 = vmatpush1.bf16.msra.mxu0 %v1899
    %2801 = vmatprep.subr.bf16.mxu0 %v1892
    %2802 = vmatpush1.bf16.msra.mxu0 %v1891
    %2803 = vmatprep.subr.bf16.mxu0 %v2012
    %2804 = vmatpush2.bf16.msra.mxu0 %v2011
    %2805 = vmatprep.subr.bf16.mxu0 %v2004
    %2806 = vmatpush2.bf16.msra.mxu0 %v2003
    %2807 = vmatprep.subr.bf16.mxu0 %v1996
    %2808 = vmatpush2.bf16.msra.mxu0 %v1995
    %2809 = vmatprep.subr.bf16.mxu0 %v1988
    %2810 = vmatpush2.bf16.msra.mxu0 %v1987
    %2811 = vmatprep.subr.bf16.mxu0 %v1980
    %2812 = vmatpush2.bf16.msra.mxu0 %v1979
    %2813 = vmatprep.subr.bf16.mxu0 %v1972
    %2814 = vmatpush2.bf16.msra.mxu0 %v1971
    %2815 = vmatprep.subr.bf16.mxu0 %v1964
    %2816 = vmatpush2.bf16.msra.mxu0 %v1963
    %2817 = vmatprep.subr.bf16.mxu0 %v1956
    %2818 = vmatpush2.bf16.msra.mxu0 %v1955
    %2819 = vmatprep.mubr.bf16.mxu0 %v534
    %2820 = vmatmul.mubr.bf16.gmra.mxu0 %v533
    %v2821 = vpop.f32.mrf.mxu0
    %v2822 = vadd.f32 %v485, %v2821
    %v2823 = vpop.f32.mrf.mxu0
    %v2824 = vadd.f32 %v489, %v2823
    %v2825 = vpop.f32.mrf.mxu0
    %v2826 = vpop.f32.mrf.mxu0
    %2827 = vdwg.mxu0
    %2828 = vmatprep.subr.bf16.mxu0 %v2076
    %2829 = vmatpush1.bf16.msra.mxu0 %v2075
    %2830 = vmatprep.subr.bf16.mxu0 %v2068
    %2831 = vmatpush1.bf16.msra.mxu0 %v2067
    %2832 = vmatprep.subr.bf16.mxu0 %v2060
    %2833 = vmatpush1.bf16.msra.mxu0 %v2059
    %2834 = vmatprep.subr.bf16.mxu0 %v2052
    %2835 = vmatpush1.bf16.msra.mxu0 %v2051
    %2836 = vmatprep.subr.bf16.mxu0 %v2044
    %2837 = vmatpush1.bf16.msra.mxu0 %v2043
    %2838 = vmatprep.subr.bf16.mxu0 %v2036
    %2839 = vmatpush1.bf16.msra.mxu0 %v2035
    %2840 = vmatprep.subr.bf16.mxu0 %v2028
    %2841 = vmatpush1.bf16.msra.mxu0 %v2027
    %2842 = vmatprep.subr.bf16.mxu0 %v2020
    %2843 = vmatpush1.bf16.msra.mxu0 %v2019
    %2844 = vmatprep.subr.bf16.mxu0 %v2140
    %2845 = vmatpush2.bf16.msra.mxu0 %v2139
    %2846 = vmatprep.subr.bf16.mxu0 %v2132
    %2847 = vmatpush2.bf16.msra.mxu0 %v2131
    %2848 = vmatprep.subr.bf16.mxu0 %v2124
    %2849 = vmatpush2.bf16.msra.mxu0 %v2123
    %2850 = vmatprep.subr.bf16.mxu0 %v2116
    %2851 = vmatpush2.bf16.msra.mxu0 %v2115
    %2852 = vmatprep.subr.bf16.mxu0 %v2108
    %2853 = vmatpush2.bf16.msra.mxu0 %v2107
    %2854 = vmatprep.subr.bf16.mxu0 %v2100
    %2855 = vmatpush2.bf16.msra.mxu0 %v2099
    %2856 = vmatprep.subr.bf16.mxu0 %v2092
    %2857 = vmatpush2.bf16.msra.mxu0 %v2091
    %2858 = vmatprep.subr.bf16.mxu0 %v2084
    %2859 = vmatpush2.bf16.msra.mxu0 %v2083
    %2860 = vmatprep.mubr.bf16.mxu0 %v536
    %2861 = vmatmul.mubr.bf16.gmra.mxu0 %v535
    %v2862 = vpop.f32.mrf.mxu0
    %v2863 = vadd.f32 %v2822, %v2862
    %v2864 = vpop.f32.mrf.mxu0
    %v2865 = vadd.f32 %v2824, %v2864
    %v2866 = vpop.f32.mrf.mxu0
    %v2867 = vpop.f32.mrf.mxu0
    %2868 = vdwg.mxu0
    %2869 = vmatprep.subr.bf16.mxu0 %v2204
    %2870 = vmatpush1.bf16.msra.mxu0 %v2203
    %2871 = vmatprep.subr.bf16.mxu0 %v2196
    %2872 = vmatpush1.bf16.msra.mxu0 %v2195
    %2873 = vmatprep.subr.bf16.mxu0 %v2188
    %2874 = vmatpush1.bf16.msra.mxu0 %v2187
    %2875 = vmatprep.subr.bf16.mxu0 %v2180
    %2876 = vmatpush1.bf16.msra.mxu0 %v2179
    %2877 = vmatprep.subr.bf16.mxu0 %v2172
    %2878 = vmatpush1.bf16.msra.mxu0 %v2171
    %2879 = vmatprep.subr.bf16.mxu0 %v2164
    %2880 = vmatpush1.bf16.msra.mxu0 %v2163
    %2881 = vmatprep.subr.bf16.mxu0 %v2156
    %2882 = vmatpush1.bf16.msra.mxu0 %v2155
    %2883 = vmatprep.subr.bf16.mxu0 %v2148
    %2884 = vmatpush1.bf16.msra.mxu0 %v2147
    %2885 = vmatprep.subr.bf16.mxu0 %v2268
    %2886 = vmatpush2.bf16.msra.mxu0 %v2267
    %2887 = vmatprep.subr.bf16.mxu0 %v2260
    %2888 = vmatpush2.bf16.msra.mxu0 %v2259
    %2889 = vmatprep.subr.bf16.mxu0 %v2252
    %2890 = vmatpush2.bf16.msra.mxu0 %v2251
    %2891 = vmatprep.subr.bf16.mxu0 %v2244
    %2892 = vmatpush2.bf16.msra.mxu0 %v2243
    %2893 = vmatprep.subr.bf16.mxu0 %v2236
    %2894 = vmatpush2.bf16.msra.mxu0 %v2235
    %2895 = vmatprep.subr.bf16.mxu0 %v2228
    %2896 = vmatpush2.bf16.msra.mxu0 %v2227
    %2897 = vmatprep.subr.bf16.mxu0 %v2220
    %2898 = vmatpush2.bf16.msra.mxu0 %v2219
    %2899 = vmatprep.subr.bf16.mxu0 %v2212
    %2900 = vmatpush2.bf16.msra.mxu0 %v2211
    %2901 = vmatprep.mubr.bf16.mxu0 %v538
    %2902 = vmatmul.mubr.bf16.gmra.mxu0 %v537
    %v2903 = vpop.f32.mrf.mxu0
    %v2904 = vadd.f32 %v2863, %v2903
    %v2905 = vpop.f32.mrf.mxu0
    %v2906 = vadd.f32 %v2865, %v2905
    %v2907 = vpop.f32.mrf.mxu0
    %v2908 = vpop.f32.mrf.mxu0
    %2909 = vdwg.mxu0
    %2910 = vmatprep.subr.bf16.mxu0 %v2332
    %2911 = vmatpush1.bf16.msra.mxu0 %v2331
    %2912 = vmatprep.subr.bf16.mxu0 %v2324
    %2913 = vmatpush1.bf16.msra.mxu0 %v2323
    %2914 = vmatprep.subr.bf16.mxu0 %v2316
    %2915 = vmatpush1.bf16.msra.mxu0 %v2315
    %2916 = vmatprep.subr.bf16.mxu0 %v2308
    %2917 = vmatpush1.bf16.msra.mxu0 %v2307
    %2918 = vmatprep.subr.bf16.mxu0 %v2300
    %2919 = vmatpush1.bf16.msra.mxu0 %v2299
    %2920 = vmatprep.subr.bf16.mxu0 %v2292
    %2921 = vmatpush1.bf16.msra.mxu0 %v2291
    %2922 = vmatprep.subr.bf16.mxu0 %v2284
    %2923 = vmatpush1.bf16.msra.mxu0 %v2283
    %2924 = vmatprep.subr.bf16.mxu0 %v2276
    %2925 = vmatpush1.bf16.msra.mxu0 %v2275
    %2926 = vmatprep.subr.bf16.mxu0 0
    %2927 = vmatpush2.bf16.msra.mxu0 0
    %2928 = vmatprep.subr.bf16.mxu0 0
    %2929 = vmatpush2.bf16.msra.mxu0 0
    %2930 = vmatprep.subr.bf16.mxu0 0
    %2931 = vmatpush2.bf16.msra.mxu0 0
    %2932 = vmatprep.subr.bf16.mxu0 0
    %2933 = vmatpush2.bf16.msra.mxu0 0
    %2934 = vmatprep.subr.bf16.mxu0 0
    %2935 = vmatpush2.bf16.msra.mxu0 0
    %2936 = vmatprep.subr.bf16.mxu0 0
    %2937 = vmatpush2.bf16.msra.mxu0 0
    %2938 = vmatprep.subr.bf16.mxu0 0
    %2939 = vmatpush2.bf16.msra.mxu0 0
    %2940 = vmatprep.subr.bf16.mxu0 0
    %2941 = vmatpush2.bf16.msra.mxu0 0
    %2942 = vmatprep.mubr.bf16.mxu0 0
    %2943 = vmatmul.mubr.bf16.gmra.mxu0 %v539
    %v2944 = vpop.f32.mrf.mxu0
    %v2945 = vadd.f32 %v2904, %v2944
    %v2946 = vpop.f32.mrf.mxu0
    %v2947 = vadd.f32 %v2906, %v2946
    %v2948 = vpop.f32.mrf.mxu0
    %v2949 = vpop.f32.mrf.mxu0
    %2950 = vdwg.mxu0
    %2951 = vmatprep.subr.bf16.mxu0 %v1950
    %2952 = vmatpush1.bf16.msra.mxu0 %v1949
    %2953 = vmatprep.subr.bf16.mxu0 %v1942
    %2954 = vmatpush1.bf16.msra.mxu0 %v1941
    %2955 = vmatprep.subr.bf16.mxu0 %v1934
    %2956 = vmatpush1.bf16.msra.mxu0 %v1933
    %2957 = vmatprep.subr.bf16.mxu0 %v1926
    %2958 = vmatpush1.bf16.msra.mxu0 %v1925
    %2959 = vmatprep.subr.bf16.mxu0 %v1918
    %2960 = vmatpush1.bf16.msra.mxu0 %v1917
    %2961 = vmatprep.subr.bf16.mxu0 %v1910
    %2962 = vmatpush1.bf16.msra.mxu0 %v1909
    %2963 = vmatprep.subr.bf16.mxu0 %v1902
    %2964 = vmatpush1.bf16.msra.mxu0 %v1901
    %2965 = vmatprep.subr.bf16.mxu0 %v1894
    %2966 = vmatpush1.bf16.msra.mxu0 %v1893
    %2967 = vmatprep.subr.bf16.mxu0 %v2014
    %2968 = vmatpush2.bf16.msra.mxu0 %v2013
    %2969 = vmatprep.subr.bf16.mxu0 %v2006
    %2970 = vmatpush2.bf16.msra.mxu0 %v2005
    %2971 = vmatprep.subr.bf16.mxu0 %v1998
    %2972 = vmatpush2.bf16.msra.mxu0 %v1997
    %2973 = vmatprep.subr.bf16.mxu0 %v1990
    %2974 = vmatpush2.bf16.msra.mxu0 %v1989
    %2975 = vmatprep.subr.bf16.mxu0 %v1982
    %2976 = vmatpush2.bf16.msra.mxu0 %v1981
    %2977 = vmatprep.subr.bf16.mxu0 %v1974
    %2978 = vmatpush2.bf16.msra.mxu0 %v1973
    %2979 = vmatprep.subr.bf16.mxu0 %v1966
    %2980 = vmatpush2.bf16.msra.mxu0 %v1965
    %2981 = vmatprep.subr.bf16.mxu0 %v1958
    %2982 = vmatpush2.bf16.msra.mxu0 %v1957
    %2983 = vmatprep.mubr.bf16.mxu0 %v534
    %2984 = vmatmul.mubr.bf16.gmra.mxu0 %v533
    %v2985 = vpop.f32.mrf.mxu0
    %v2986 = vadd.f32 %v493, %v2985
    %v2987 = vpop.f32.mrf.mxu0
    %v2988 = vadd.f32 %v497, %v2987
    %v2989 = vpop.f32.mrf.mxu0
    %v2990 = vpop.f32.mrf.mxu0
    %2991 = vdwg.mxu0
    %2992 = vmatprep.subr.bf16.mxu0 %v2078
    %2993 = vmatpush1.bf16.msra.mxu0 %v2077
    %2994 = vmatprep.subr.bf16.mxu0 %v2070
    %2995 = vmatpush1.bf16.msra.mxu0 %v2069
    %2996 = vmatprep.subr.bf16.mxu0 %v2062
    %2997 = vmatpush1.bf16.msra.mxu0 %v2061
    %2998 = vmatprep.subr.bf16.mxu0 %v2054
    %2999 = vmatpush1.bf16.msra.mxu0 %v2053
    %3000 = vmatprep.subr.bf16.mxu0 %v2046
    %3001 = vmatpush1.bf16.msra.mxu0 %v2045
    %3002 = vmatprep.subr.bf16.mxu0 %v2038
    %3003 = vmatpush1.bf16.msra.mxu0 %v2037
    %3004 = vmatprep.subr.bf16.mxu0 %v2030
    %3005 = vmatpush1.bf16.msra.mxu0 %v2029
    %3006 = vmatprep.subr.bf16.mxu0 %v2022
    %3007 = vmatpush1.bf16.msra.mxu0 %v2021
    %3008 = vmatprep.subr.bf16.mxu0 %v2142
    %3009 = vmatpush2.bf16.msra.mxu0 %v2141
    %3010 = vmatprep.subr.bf16.mxu0 %v2134
    %3011 = vmatpush2.bf16.msra.mxu0 %v2133
    %3012 = vmatprep.subr.bf16.mxu0 %v2126
    %3013 = vmatpush2.bf16.msra.mxu0 %v2125
    %3014 = vmatprep.subr.bf16.mxu0 %v2118
    %3015 = vmatpush2.bf16.msra.mxu0 %v2117
    %3016 = vmatprep.subr.bf16.mxu0 %v2110
    %3017 = vmatpush2.bf16.msra.mxu0 %v2109
    %3018 = vmatprep.subr.bf16.mxu0 %v2102
    %3019 = vmatpush2.bf16.msra.mxu0 %v2101
    %3020 = vmatprep.subr.bf16.mxu0 %v2094
    %3021 = vmatpush2.bf16.msra.mxu0 %v2093
    %3022 = vmatprep.subr.bf16.mxu0 %v2086
    %3023 = vmatpush2.bf16.msra.mxu0 %v2085
    %3024 = vmatprep.mubr.bf16.mxu0 %v536
    %3025 = vmatmul.mubr.bf16.gmra.mxu0 %v535
    %v3026 = vpop.f32.mrf.mxu0
    %v3027 = vadd.f32 %v2986, %v3026
    %v3028 = vpop.f32.mrf.mxu0
    %v3029 = vadd.f32 %v2988, %v3028
    %v3030 = vpop.f32.mrf.mxu0
    %v3031 = vpop.f32.mrf.mxu0
    %3032 = vdwg.mxu0
    %3033 = vmatprep.subr.bf16.mxu0 %v2206
    %3034 = vmatpush1.bf16.msra.mxu0 %v2205
    %3035 = vmatprep.subr.bf16.mxu0 %v2198
    %3036 = vmatpush1.bf16.msra.mxu0 %v2197
    %3037 = vmatprep.subr.bf16.mxu0 %v2190
    %3038 = vmatpush1.bf16.msra.mxu0 %v2189
    %3039 = vmatprep.subr.bf16.mxu0 %v2182
    %3040 = vmatpush1.bf16.msra.mxu0 %v2181
    %3041 = vmatprep.subr.bf16.mxu0 %v2174
    %3042 = vmatpush1.bf16.msra.mxu0 %v2173
    %3043 = vmatprep.subr.bf16.mxu0 %v2166
    %3044 = vmatpush1.bf16.msra.mxu0 %v2165
    %3045 = vmatprep.subr.bf16.mxu0 %v2158
    %3046 = vmatpush1.bf16.msra.mxu0 %v2157
    %3047 = vmatprep.subr.bf16.mxu0 %v2150
    %3048 = vmatpush1.bf16.msra.mxu0 %v2149
    %3049 = vmatprep.subr.bf16.mxu0 %v2270
    %3050 = vmatpush2.bf16.msra.mxu0 %v2269
    %3051 = vmatprep.subr.bf16.mxu0 %v2262
    %3052 = vmatpush2.bf16.msra.mxu0 %v2261
    %3053 = vmatprep.subr.bf16.mxu0 %v2254
    %3054 = vmatpush2.bf16.msra.mxu0 %v2253
    %3055 = vmatprep.subr.bf16.mxu0 %v2246
    %3056 = vmatpush2.bf16.msra.mxu0 %v2245
    %3057 = vmatprep.subr.bf16.mxu0 %v2238
    %3058 = vmatpush2.bf16.msra.mxu0 %v2237
    %3059 = vmatprep.subr.bf16.mxu0 %v2230
    %3060 = vmatpush2.bf16.msra.mxu0 %v2229
    %3061 = vmatprep.subr.bf16.mxu0 %v2222
    %3062 = vmatpush2.bf16.msra.mxu0 %v2221
    %3063 = vmatprep.subr.bf16.mxu0 %v2214
    %3064 = vmatpush2.bf16.msra.mxu0 %v2213
    %3065 = vmatprep.mubr.bf16.mxu0 %v538
    %3066 = vmatmul.mubr.bf16.gmra.mxu0 %v537
    %v3067 = vpop.f32.mrf.mxu0
    %v3068 = vadd.f32 %v3027, %v3067
    %v3069 = vpop.f32.mrf.mxu0
    %v3070 = vadd.f32 %v3029, %v3069
    %v3071 = vpop.f32.mrf.mxu0
    %v3072 = vpop.f32.mrf.mxu0
    %3073 = vdwg.mxu0
    %3074 = vmatprep.subr.bf16.mxu0 %v2334
    %3075 = vmatpush1.bf16.msra.mxu0 %v2333
    %3076 = vmatprep.subr.bf16.mxu0 %v2326
    %3077 = vmatpush1.bf16.msra.mxu0 %v2325
    %3078 = vmatprep.subr.bf16.mxu0 %v2318
    %3079 = vmatpush1.bf16.msra.mxu0 %v2317
    %3080 = vmatprep.subr.bf16.mxu0 %v2310
    %3081 = vmatpush1.bf16.msra.mxu0 %v2309
    %3082 = vmatprep.subr.bf16.mxu0 %v2302
    %3083 = vmatpush1.bf16.msra.mxu0 %v2301
    %3084 = vmatprep.subr.bf16.mxu0 %v2294
    %3085 = vmatpush1.bf16.msra.mxu0 %v2293
    %3086 = vmatprep.subr.bf16.mxu0 %v2286
    %3087 = vmatpush1.bf16.msra.mxu0 %v2285
    %3088 = vmatprep.subr.bf16.mxu0 %v2278
    %3089 = vmatpush1.bf16.msra.mxu0 %v2277
    %3090 = vmatprep.subr.bf16.mxu0 0
    %3091 = vmatpush2.bf16.msra.mxu0 0
    %3092 = vmatprep.subr.bf16.mxu0 0
    %3093 = vmatpush2.bf16.msra.mxu0 0
    %3094 = vmatprep.subr.bf16.mxu0 0
    %3095 = vmatpush2.bf16.msra.mxu0 0
    %3096 = vmatprep.subr.bf16.mxu0 0
    %3097 = vmatpush2.bf16.msra.mxu0 0
    %3098 = vmatprep.subr.bf16.mxu0 0
    %3099 = vmatpush2.bf16.msra.mxu0 0
    %3100 = vmatprep.subr.bf16.mxu0 0
    %3101 = vmatpush2.bf16.msra.mxu0 0
    %3102 = vmatprep.subr.bf16.mxu0 0
    %3103 = vmatpush2.bf16.msra.mxu0 0
    %3104 = vmatprep.subr.bf16.mxu0 0
    %3105 = vmatpush2.bf16.msra.mxu0 0
    %3106 = vmatprep.mubr.bf16.mxu0 0
    %3107 = vmatmul.mubr.bf16.gmra.mxu0 %v539
    %v3108 = vpop.f32.mrf.mxu0
    %v3109 = vadd.f32 %v3068, %v3108
    %v3110 = vpop.f32.mrf.mxu0
    %v3111 = vadd.f32 %v3070, %v3110
    %v3112 = vpop.f32.mrf.mxu0
    %v3113 = vpop.f32.mrf.mxu0
    %3114 = vdwg.mxu0
    %3115 = vmatprep.subr.bf16.mxu0 %v1952
    %3116 = vmatpush1.bf16.msra.mxu0 %v1951
    %3117 = vmatprep.subr.bf16.mxu0 %v1944
    %3118 = vmatpush1.bf16.msra.mxu0 %v1943
    %3119 = vmatprep.subr.bf16.mxu0 %v1936
    %3120 = vmatpush1.bf16.msra.mxu0 %v1935
    %3121 = vmatprep.subr.bf16.mxu0 %v1928
    %3122 = vmatpush1.bf16.msra.mxu0 %v1927
    %3123 = vmatprep.subr.bf16.mxu0 %v1920
    %3124 = vmatpush1.bf16.msra.mxu0 %v1919
    %3125 = vmatprep.subr.bf16.mxu0 %v1912
    %3126 = vmatpush1.bf16.msra.mxu0 %v1911
    %3127 = vmatprep.subr.bf16.mxu0 %v1904
    %3128 = vmatpush1.bf16.msra.mxu0 %v1903
    %3129 = vmatprep.subr.bf16.mxu0 %v1896
    %3130 = vmatpush1.bf16.msra.mxu0 %v1895
    %3131 = vmatprep.subr.bf16.mxu0 %v2016
    %3132 = vmatpush2.bf16.msra.mxu0 %v2015
    %3133 = vmatprep.subr.bf16.mxu0 %v2008
    %3134 = vmatpush2.bf16.msra.mxu0 %v2007
    %3135 = vmatprep.subr.bf16.mxu0 %v2000
    %3136 = vmatpush2.bf16.msra.mxu0 %v1999
    %3137 = vmatprep.subr.bf16.mxu0 %v1992
    %3138 = vmatpush2.bf16.msra.mxu0 %v1991
    %3139 = vmatprep.subr.bf16.mxu0 %v1984
    %3140 = vmatpush2.bf16.msra.mxu0 %v1983
    %3141 = vmatprep.subr.bf16.mxu0 %v1976
    %3142 = vmatpush2.bf16.msra.mxu0 %v1975
    %3143 = vmatprep.subr.bf16.mxu0 %v1968
    %3144 = vmatpush2.bf16.msra.mxu0 %v1967
    %3145 = vmatprep.subr.bf16.mxu0 %v1960
    %3146 = vmatpush2.bf16.msra.mxu0 %v1959
    %3147 = vmatprep.mubr.bf16.mxu0 %v534
    %3148 = vmatmul.mubr.bf16.gmra.mxu0 %v533
    %v3149 = vpop.f32.mrf.mxu0
    %v3150 = vadd.f32 %v501, %v3149
    %v3151 = vpop.f32.mrf.mxu0
    %v3152 = vadd.f32 %v505, %v3151
    %v3153 = vpop.f32.mrf.mxu0
    %v3154 = vpop.f32.mrf.mxu0
    %3155 = vdwg.mxu0
    %3156 = vmatprep.subr.bf16.mxu0 %v2080
    %3157 = vmatpush1.bf16.msra.mxu0 %v2079
    %3158 = vmatprep.subr.bf16.mxu0 %v2072
    %3159 = vmatpush1.bf16.msra.mxu0 %v2071
    %3160 = vmatprep.subr.bf16.mxu0 %v2064
    %3161 = vmatpush1.bf16.msra.mxu0 %v2063
    %3162 = vmatprep.subr.bf16.mxu0 %v2056
    %3163 = vmatpush1.bf16.msra.mxu0 %v2055
    %3164 = vmatprep.subr.bf16.mxu0 %v2048
    %3165 = vmatpush1.bf16.msra.mxu0 %v2047
    %3166 = vmatprep.subr.bf16.mxu0 %v2040
    %3167 = vmatpush1.bf16.msra.mxu0 %v2039
    %3168 = vmatprep.subr.bf16.mxu0 %v2032
    %3169 = vmatpush1.bf16.msra.mxu0 %v2031
    %3170 = vmatprep.subr.bf16.mxu0 %v2024
    %3171 = vmatpush1.bf16.msra.mxu0 %v2023
    %3172 = vmatprep.subr.bf16.mxu0 %v2144
    %3173 = vmatpush2.bf16.msra.mxu0 %v2143
    %3174 = vmatprep.subr.bf16.mxu0 %v2136
    %3175 = vmatpush2.bf16.msra.mxu0 %v2135
    %3176 = vmatprep.subr.bf16.mxu0 %v2128
    %3177 = vmatpush2.bf16.msra.mxu0 %v2127
    %3178 = vmatprep.subr.bf16.mxu0 %v2120
    %3179 = vmatpush2.bf16.msra.mxu0 %v2119
    %3180 = vmatprep.subr.bf16.mxu0 %v2112
    %3181 = vmatpush2.bf16.msra.mxu0 %v2111
    %3182 = vmatprep.subr.bf16.mxu0 %v2104
    %3183 = vmatpush2.bf16.msra.mxu0 %v2103
    %3184 = vmatprep.subr.bf16.mxu0 %v2096
    %3185 = vmatpush2.bf16.msra.mxu0 %v2095
    %3186 = vmatprep.subr.bf16.mxu0 %v2088
    %3187 = vmatpush2.bf16.msra.mxu0 %v2087
    %3188 = vmatprep.mubr.bf16.mxu0 %v536
    %3189 = vmatmul.mubr.bf16.gmra.mxu0 %v535
    %v3190 = vpop.f32.mrf.mxu0
    %v3191 = vadd.f32 %v3150, %v3190
    %v3192 = vpop.f32.mrf.mxu0
    %v3193 = vadd.f32 %v3152, %v3192
    %v3194 = vpop.f32.mrf.mxu0
    %v3195 = vpop.f32.mrf.mxu0
    %3196 = vdwg.mxu0
    %3197 = vmatprep.subr.bf16.mxu0 %v2208
    %3198 = vmatpush1.bf16.msra.mxu0 %v2207
    %3199 = vmatprep.subr.bf16.mxu0 %v2200
    %3200 = vmatpush1.bf16.msra.mxu0 %v2199
    %3201 = vmatprep.subr.bf16.mxu0 %v2192
    %3202 = vmatpush1.bf16.msra.mxu0 %v2191
    %3203 = vmatprep.subr.bf16.mxu0 %v2184
    %3204 = vmatpush1.bf16.msra.mxu0 %v2183
    %3205 = vmatprep.subr.bf16.mxu0 %v2176
    %3206 = vmatpush1.bf16.msra.mxu0 %v2175
    %3207 = vmatprep.subr.bf16.mxu0 %v2168
    %3208 = vmatpush1.bf16.msra.mxu0 %v2167
    %3209 = vmatprep.subr.bf16.mxu0 %v2160
    %3210 = vmatpush1.bf16.msra.mxu0 %v2159
    %3211 = vmatprep.subr.bf16.mxu0 %v2152
    %3212 = vmatpush1.bf16.msra.mxu0 %v2151
    %3213 = vmatprep.subr.bf16.mxu0 %v2272
    %3214 = vmatpush2.bf16.msra.mxu0 %v2271
    %3215 = vmatprep.subr.bf16.mxu0 %v2264
    %3216 = vmatpush2.bf16.msra.mxu0 %v2263
    %3217 = vmatprep.subr.bf16.mxu0 %v2256
    %3218 = vmatpush2.bf16.msra.mxu0 %v2255
    %3219 = vmatprep.subr.bf16.mxu0 %v2248
    %3220 = vmatpush2.bf16.msra.mxu0 %v2247
    %3221 = vmatprep.subr.bf16.mxu0 %v2240
    %3222 = vmatpush2.bf16.msra.mxu0 %v2239
    %3223 = vmatprep.subr.bf16.mxu0 %v2232
    %3224 = vmatpush2.bf16.msra.mxu0 %v2231
    %3225 = vmatprep.subr.bf16.mxu0 %v2224
    %3226 = vmatpush2.bf16.msra.mxu0 %v2223
    %3227 = vmatprep.subr.bf16.mxu0 %v2216
    %3228 = vmatpush2.bf16.msra.mxu0 %v2215
    %3229 = vmatprep.mubr.bf16.mxu0 %v538
    %3230 = vmatmul.mubr.bf16.gmra.mxu0 %v537
    %v3231 = vpop.f32.mrf.mxu0
    %v3232 = vadd.f32 %v3191, %v3231
    %v3233 = vpop.f32.mrf.mxu0
    %v3234 = vadd.f32 %v3193, %v3233
    %v3235 = vpop.f32.mrf.mxu0
    %v3236 = vpop.f32.mrf.mxu0
    %3237 = vdwg.mxu0
    %3238 = vmatprep.subr.bf16.mxu0 %v2336
    %3239 = vmatpush1.bf16.msra.mxu0 %v2335
    %3240 = vmatprep.subr.bf16.mxu0 %v2328
    %3241 = vmatpush1.bf16.msra.mxu0 %v2327
    %3242 = vmatprep.subr.bf16.mxu0 %v2320
    %3243 = vmatpush1.bf16.msra.mxu0 %v2319
    %3244 = vmatprep.subr.bf16.mxu0 %v2312
    %3245 = vmatpush1.bf16.msra.mxu0 %v2311
    %3246 = vmatprep.subr.bf16.mxu0 %v2304
    %3247 = vmatpush1.bf16.msra.mxu0 %v2303
    %3248 = vmatprep.subr.bf16.mxu0 %v2296
    %3249 = vmatpush1.bf16.msra.mxu0 %v2295
    %3250 = vmatprep.subr.bf16.mxu0 %v2288
    %3251 = vmatpush1.bf16.msra.mxu0 %v2287
    %3252 = vmatprep.subr.bf16.mxu0 %v2280
    %3253 = vmatpush1.bf16.msra.mxu0 %v2279
    %3254 = vmatprep.subr.bf16.mxu0 0
    %3255 = vmatpush2.bf16.msra.mxu0 0
    %3256 = vmatprep.subr.bf16.mxu0 0
    %3257 = vmatpush2.bf16.msra.mxu0 0
    %3258 = vmatprep.subr.bf16.mxu0 0
    %3259 = vmatpush2.bf16.msra.mxu0 0
    %3260 = vmatprep.subr.bf16.mxu0 0
    %3261 = vmatpush2.bf16.msra.mxu0 0
    %3262 = vmatprep.subr.bf16.mxu0 0
    %3263 = vmatpush2.bf16.msra.mxu0 0
    %3264 = vmatprep.subr.bf16.mxu0 0
    %3265 = vmatpush2.bf16.msra.mxu0 0
    %3266 = vmatprep.subr.bf16.mxu0 0
    %3267 = vmatpush2.bf16.msra.mxu0 0
    %3268 = vmatprep.subr.bf16.mxu0 0
    %3269 = vmatpush2.bf16.msra.mxu0 0
    %3270 = vmatprep.mubr.bf16.mxu0 0
    %3271 = vmatmul.mubr.bf16.gmra.mxu0 %v539
    %v3272 = vpop.f32.mrf.mxu0
    %v3273 = vadd.f32 %v3232, %v3272
    %v3274 = vpop.f32.mrf.mxu0
    %v3275 = vadd.f32 %v3234, %v3274
    %v3276 = vpop.f32.mrf.mxu0
    %v3277 = vpop.f32.mrf.mxu0
    %3278 = vdwg.mxu0
    %3279 = vmatprep.subr.bf16.mxu0 %v1954
    %3280 = vmatpush1.bf16.msra.mxu0 %v1953
    %3281 = vmatprep.subr.bf16.mxu0 %v1946
    %3282 = vmatpush1.bf16.msra.mxu0 %v1945
    %3283 = vmatprep.subr.bf16.mxu0 %v1938
    %3284 = vmatpush1.bf16.msra.mxu0 %v1937
    %3285 = vmatprep.subr.bf16.mxu0 %v1930
    %3286 = vmatpush1.bf16.msra.mxu0 %v1929
    %3287 = vmatprep.subr.bf16.mxu0 %v1922
    %3288 = vmatpush1.bf16.msra.mxu0 %v1921
    %3289 = vmatprep.subr.bf16.mxu0 %v1914
    %3290 = vmatpush1.bf16.msra.mxu0 %v1913
    %3291 = vmatprep.subr.bf16.mxu0 %v1906
    %3292 = vmatpush1.bf16.msra.mxu0 %v1905
    %3293 = vmatprep.subr.bf16.mxu0 %v1898
    %3294 = vmatpush1.bf16.msra.mxu0 %v1897
    %3295 = vmatprep.subr.bf16.mxu0 %v2018
    %3296 = vmatpush2.bf16.msra.mxu0 %v2017
    %3297 = vmatprep.subr.bf16.mxu0 %v2010
    %3298 = vmatpush2.bf16.msra.mxu0 %v2009
    %3299 = vmatprep.subr.bf16.mxu0 %v2002
    %3300 = vmatpush2.bf16.msra.mxu0 %v2001
    %3301 = vmatprep.subr.bf16.mxu0 %v1994
    %3302 = vmatpush2.bf16.msra.mxu0 %v1993
    %3303 = vmatprep.subr.bf16.mxu0 %v1986
    %3304 = vmatpush2.bf16.msra.mxu0 %v1985
    %3305 = vmatprep.subr.bf16.mxu0 %v1978
    %3306 = vmatpush2.bf16.msra.mxu0 %v1977
    %3307 = vmatprep.subr.bf16.mxu0 %v1970
    %3308 = vmatpush2.bf16.msra.mxu0 %v1969
    %3309 = vmatprep.subr.bf16.mxu0 %v1962
    %3310 = vmatpush2.bf16.msra.mxu0 %v1961
    %3311 = vmatprep.mubr.bf16.mxu0 %v534
    %3312 = vmatmul.mubr.bf16.gmra.mxu0 %v533
    %v3313 = vpop.f32.mrf.mxu0
    %v3314 = vadd.f32 %v509, %v3313
    %v3315 = vpop.f32.mrf.mxu0
    %v3316 = vadd.f32 %v513, %v3315
    %v3317 = vpop.f32.mrf.mxu0
    %v3318 = vpop.f32.mrf.mxu0
    %3319 = vdwg.mxu0
    %3320 = vmatprep.subr.bf16.mxu0 %v2082
    %3321 = vmatpush1.bf16.msra.mxu0 %v2081
    %3322 = vmatprep.subr.bf16.mxu0 %v2074
    %3323 = vmatpush1.bf16.msra.mxu0 %v2073
    %3324 = vmatprep.subr.bf16.mxu0 %v2066
    %3325 = vmatpush1.bf16.msra.mxu0 %v2065
    %3326 = vmatprep.subr.bf16.mxu0 %v2058
    %3327 = vmatpush1.bf16.msra.mxu0 %v2057
    %3328 = vmatprep.subr.bf16.mxu0 %v2050
    %3329 = vmatpush1.bf16.msra.mxu0 %v2049
    %3330 = vmatprep.subr.bf16.mxu0 %v2042
    %3331 = vmatpush1.bf16.msra.mxu0 %v2041
    %3332 = vmatprep.subr.bf16.mxu0 %v2034
    %3333 = vmatpush1.bf16.msra.mxu0 %v2033
    %3334 = vmatprep.subr.bf16.mxu0 %v2026
    %3335 = vmatpush1.bf16.msra.mxu0 %v2025
    %3336 = vmatprep.subr.bf16.mxu0 %v2146
    %3337 = vmatpush2.bf16.msra.mxu0 %v2145
    %3338 = vmatprep.subr.bf16.mxu0 %v2138
    %3339 = vmatpush2.bf16.msra.mxu0 %v2137
    %3340 = vmatprep.subr.bf16.mxu0 %v2130
    %3341 = vmatpush2.bf16.msra.mxu0 %v2129
    %3342 = vmatprep.subr.bf16.mxu0 %v2122
    %3343 = vmatpush2.bf16.msra.mxu0 %v2121
    %3344 = vmatprep.subr.bf16.mxu0 %v2114
    %3345 = vmatpush2.bf16.msra.mxu0 %v2113
    %3346 = vmatprep.subr.bf16.mxu0 %v2106
    %3347 = vmatpush2.bf16.msra.mxu0 %v2105
    %3348 = vmatprep.subr.bf16.mxu0 %v2098
    %3349 = vmatpush2.bf16.msra.mxu0 %v2097
    %3350 = vmatprep.subr.bf16.mxu0 %v2090
    %3351 = vmatpush2.bf16.msra.mxu0 %v2089
    %3352 = vmatprep.mubr.bf16.mxu0 %v536
    %3353 = vmatmul.mubr.bf16.gmra.mxu0 %v535
    %v3354 = vpop.f32.mrf.mxu0
    %v3355 = vadd.f32 %v3314, %v3354
    %v3356 = vpop.f32.mrf.mxu0
    %v3357 = vadd.f32 %v3316, %v3356
    %v3358 = vpop.f32.mrf.mxu0
    %v3359 = vpop.f32.mrf.mxu0
    %3360 = vdwg.mxu0
    %3361 = vmatprep.subr.bf16.mxu0 %v2210
    %3362 = vmatpush1.bf16.msra.mxu0 %v2209
    %3363 = vmatprep.subr.bf16.mxu0 %v2202
    %3364 = vmatpush1.bf16.msra.mxu0 %v2201
    %3365 = vmatprep.subr.bf16.mxu0 %v2194
    %3366 = vmatpush1.bf16.msra.mxu0 %v2193
    %3367 = vmatprep.subr.bf16.mxu0 %v2186
    %3368 = vmatpush1.bf16.msra.mxu0 %v2185
    %3369 = vmatprep.subr.bf16.mxu0 %v2178
    %3370 = vmatpush1.bf16.msra.mxu0 %v2177
    %3371 = vmatprep.subr.bf16.mxu0 %v2170
    %3372 = vmatpush1.bf16.msra.mxu0 %v2169
    %3373 = vmatprep.subr.bf16.mxu0 %v2162
    %3374 = vmatpush1.bf16.msra.mxu0 %v2161
    %3375 = vmatprep.subr.bf16.mxu0 %v2154
    %3376 = vmatpush1.bf16.msra.mxu0 %v2153
    %3377 = vmatprep.subr.bf16.mxu0 %v2274
    %3378 = vmatpush2.bf16.msra.mxu0 %v2273
    %3379 = vmatprep.subr.bf16.mxu0 %v2266
    %3380 = vmatpush2.bf16.msra.mxu0 %v2265
    %3381 = vmatprep.subr.bf16.mxu0 %v2258
    %3382 = vmatpush2.bf16.msra.mxu0 %v2257
    %3383 = vmatprep.subr.bf16.mxu0 %v2250
    %3384 = vmatpush2.bf16.msra.mxu0 %v2249
    %3385 = vmatprep.subr.bf16.mxu0 %v2242
    %3386 = vmatpush2.bf16.msra.mxu0 %v2241
    %3387 = vmatprep.subr.bf16.mxu0 %v2234
    %3388 = vmatpush2.bf16.msra.mxu0 %v2233
    %3389 = vmatprep.subr.bf16.mxu0 %v2226
    %3390 = vmatpush2.bf16.msra.mxu0 %v2225
    %3391 = vmatprep.subr.bf16.mxu0 %v2218
    %3392 = vmatpush2.bf16.msra.mxu0 %v2217
    %3393 = vmatprep.mubr.bf16.mxu0 %v538
    %3394 = vmatmul.mubr.bf16.gmra.mxu0 %v537
    %v3395 = vpop.f32.mrf.mxu0
    %v3396 = vadd.f32 %v3355, %v3395
    %v3397 = vpop.f32.mrf.mxu0
    %v3398 = vadd.f32 %v3357, %v3397
    %v3399 = vpop.f32.mrf.mxu0
    %v3400 = vpop.f32.mrf.mxu0
    %3401 = vdwg.mxu0
    %3402 = vmatprep.subr.bf16.mxu0 %v2338
    %3403 = vmatpush1.bf16.msra.mxu0 %v2337
    %3404 = vmatprep.subr.bf16.mxu0 %v2330
    %3405 = vmatpush1.bf16.msra.mxu0 %v2329
    %3406 = vmatprep.subr.bf16.mxu0 %v2322
    %3407 = vmatpush1.bf16.msra.mxu0 %v2321
    %3408 = vmatprep.subr.bf16.mxu0 %v2314
    %3409 = vmatpush1.bf16.msra.mxu0 %v2313
    %3410 = vmatprep.subr.bf16.mxu0 %v2306
    %3411 = vmatpush1.bf16.msra.mxu0 %v2305
    %3412 = vmatprep.subr.bf16.mxu0 %v2298
    %3413 = vmatpush1.bf16.msra.mxu0 %v2297
    %3414 = vmatprep.subr.bf16.mxu0 %v2290
    %3415 = vmatpush1.bf16.msra.mxu0 %v2289
    %3416 = vmatprep.subr.bf16.mxu0 %v2282
    %3417 = vmatpush1.bf16.msra.mxu0 %v2281
    %3418 = vmatprep.subr.bf16.mxu0 0
    %3419 = vmatpush2.bf16.msra.mxu0 0
    %3420 = vmatprep.subr.bf16.mxu0 0
    %3421 = vmatpush2.bf16.msra.mxu0 0
    %3422 = vmatprep.subr.bf16.mxu0 0
    %3423 = vmatpush2.bf16.msra.mxu0 0
    %3424 = vmatprep.subr.bf16.mxu0 0
    %3425 = vmatpush2.bf16.msra.mxu0 0
    %3426 = vmatprep.subr.bf16.mxu0 0
    %3427 = vmatpush2.bf16.msra.mxu0 0
    %3428 = vmatprep.subr.bf16.mxu0 0
    %3429 = vmatpush2.bf16.msra.mxu0 0
    %3430 = vmatprep.subr.bf16.mxu0 0
    %3431 = vmatpush2.bf16.msra.mxu0 0
    %3432 = vmatprep.subr.bf16.mxu0 0
    %3433 = vmatpush2.bf16.msra.mxu0 0
    %3434 = vmatprep.mubr.bf16.mxu0 0
    %3435 = vmatmul.mubr.bf16.gmra.mxu0 %v539
    %v3436 = vpop.f32.mrf.mxu0
    %v3437 = vadd.f32 %v3396, %v3436
    %v3438 = vpop.f32.mrf.mxu0
    %v3439 = vadd.f32 %v3398, %v3438
    %v3440 = vpop.f32.mrf.mxu0
    %v3441 = vpop.f32.mrf.mxu0
    %3442 = vdwg.mxu0
    %v3443 = vxor.u32 %v2945, 2147483648
    %v3444 = vxor.u32 %v2947, 2147483648
    %v3445 = vxor.u32 %v3109, 2147483648
    %v3446 = vxor.u32 %v3111, 2147483648
    %v3447 = vxor.u32 %v3273, 2147483648
    %v3448 = vxor.u32 %v3275, 2147483648
    %v3449 = vxor.u32 %v3437, 2147483648
    %v3450 = vxor.u32 %v3439, 2147483648
    %v3451 = vmul.f32 %v3443, 1.442695
    %v3452 = vpow.pop %v3451
    %v3453 = vmul.f32 %v3444, 1.442695
    %v3454 = vpow.pop %v3453
    %v3455 = vmul.f32 %v3445, 1.442695
    %v3456 = vpow.pop %v3455
    %v3457 = vmul.f32 %v3446, 1.442695
    %v3458 = vpow.pop %v3457
    %v3459 = vmul.f32 %v3447, 1.442695
    %v3460 = vpow.pop %v3459
    %v3461 = vmul.f32 %v3448, 1.442695
    %v3462 = vpow.pop %v3461
    %v3463 = vmul.f32 %v3449, 1.442695
    %v3464 = vpow.pop %v3463
    %v3465 = vmul.f32 %v3450, 1.442695
    %v3466 = vpow.pop %v3465
    %v3467 = vadd.f32 %v3452, 1.0
    %v3468 = vadd.f32 %v3454, 1.0
    %v3469 = vadd.f32 %v3456, 1.0
    %v3470 = vadd.f32 %v3458, 1.0
    %v3471 = vadd.f32 %v3460, 1.0
    %v3472 = vadd.f32 %v3462, 1.0
    %v3473 = vadd.f32 %v3464, 1.0
    %v3474 = vadd.f32 %v3466, 1.0
    %v3475 = vrcp.pop %v3467
    %v3476 = vmul.f32 1.0, %v3475
    %v3477 = vrcp.pop %v3468
    %v3478 = vmul.f32 1.0, %v3477
    %v3479 = vrcp.pop %v3469
    %v3480 = vmul.f32 1.0, %v3479
    %v3481 = vrcp.pop %v3470
    %v3482 = vmul.f32 1.0, %v3481
    %v3483 = vrcp.pop %v3471
    %v3484 = vmul.f32 1.0, %v3483
    %v3485 = vrcp.pop %v3472
    %v3486 = vmul.f32 1.0, %v3485
    %v3487 = vrcp.pop %v3473
    %v3488 = vmul.f32 1.0, %v3487
    %v3489 = vrcp.pop %v3474
    %v3490 = vmul.f32 1.0, %v3489
    %v3491 = vpack.c.bf16 %v3476, %v3476
    %v3492 = vpack.c.bf16 %v3478, %v3478
    %v3493 = vpack.c.bf16 %v3480, %v3480
    %v3494 = vpack.c.bf16 %v3482, %v3482
    %v3495 = vpack.c.bf16 %v3484, %v3484
    %v3496 = vpack.c.bf16 %v3486, %v3486
    %v3497 = vpack.c.bf16 %v3488, %v3488
    %v3498 = vpack.c.bf16 %v3490, %v3490
    %v3499 = vld [vmem:[%s3] sm:$0xff]
    %v3500 = vld [vmem:[%s3 + $0x8] sm:$0xff]
    %v3501 = vld [vmem:[%s3 + $0x10] sm:$0xff]
    %v3502 = vld [vmem:[%s3 + $0x18] sm:$0xff]
    %v3503 = vld [vmem:[%s3 + $0x20] sm:$0xff]
    %v3504 = vld [vmem:[%s3 + $0x28] sm:$0xff]
    %v3505 = vld [vmem:[%s3 + $0x30] sm:$0xff]
    %v3506 = vld [vmem:[%s3 + $0x38] sm:$0xff]
    %v3507 = vld [vmem:[%s3 + $0x40] sm:$0xff]
    %v3508 = vld [vmem:[%s3 + $0x48] sm:$0xff]
    %v3509 = vld [vmem:[%s3 + $0x50] sm:$0xff]
    %v3510 = vld [vmem:[%s3 + $0x58] sm:$0xff]
    %v3511 = vld [vmem:[%s3 + $0x60] sm:$0xff]
    %v3512 = vld [vmem:[%s3 + $0x68] sm:$0xff]
    %v3513 = vld [vmem:[%s3 + $0x70] sm:$0xff]
    %v3514 = vld [vmem:[%s3 + $0x78] sm:$0xff]
    %v3515 = vld [vmem:[%s3 + $0x80] sm:$0xff]
    %v3516 = vld [vmem:[%s3 + $0x88] sm:$0xff]
    %v3517 = vld [vmem:[%s3 + $0x90] sm:$0xff]
    %v3518 = vld [vmem:[%s3 + $0x98] sm:$0xff]
    %v3519 = vld [vmem:[%s3 + $0xa0] sm:$0xff]
    %v3520 = vld [vmem:[%s3 + $0xa8] sm:$0xff]
    %v3521 = vld [vmem:[%s3 + $0xb0] sm:$0xff]
    %v3522 = vld [vmem:[%s3 + $0xb8] sm:$0xff]
    %v3523 = vld [vmem:[%s3 + $0xc0] sm:$0xff]
    %v3524 = vld [vmem:[%s3 + $0xc8] sm:$0xff]
    %v3525 = vld [vmem:[%s3 + $0xd0] sm:$0xff]
    %v3526 = vld [vmem:[%s3 + $0xd8] sm:$0xff]
    %v3527 = vld [vmem:[%s3 + $0xe0] sm:$0xff]
    %v3528 = vld [vmem:[%s3 + $0xe8] sm:$0xff]
    %v3529 = vld [vmem:[%s3 + $0xf0] sm:$0xff]
    %v3530 = vld [vmem:[%s3 + $0xf8] sm:$0xff]
    %v3531 = vld [vmem:[%s3 + $0x100] sm:$0xff]
    %v3532 = vld [vmem:[%s3 + $0x108] sm:$0xff]
    %v3533 = vld [vmem:[%s3 + $0x110] sm:$0xff]
    %v3534 = vld [vmem:[%s3 + $0x118] sm:$0xff]
    %v3535 = vld [vmem:[%s3 + $0x120] sm:$0xff]
    %v3536 = vld [vmem:[%s3 + $0x128] sm:$0xff]
    %v3537 = vld [vmem:[%s3 + $0x130] sm:$0xff]
    %v3538 = vld [vmem:[%s3 + $0x138] sm:$0xff]
    %v3539 = vld [vmem:[%s3 + $0x140] sm:$0xff]
    %v3540 = vld [vmem:[%s3 + $0x148] sm:$0xff]
    %v3541 = vld [vmem:[%s3 + $0x150] sm:$0xff]
    %v3542 = vld [vmem:[%s3 + $0x158] sm:$0xff]
    %v3543 = vld [vmem:[%s3 + $0x160] sm:$0xff]
    %v3544 = vld [vmem:[%s3 + $0x168] sm:$0xff]
    %v3545 = vld [vmem:[%s3 + $0x170] sm:$0xff]
    %v3546 = vld [vmem:[%s3 + $0x178] sm:$0xff]
    %v3547 = vld [vmem:[%s3 + $0x180] sm:$0xff]
    %v3548 = vld [vmem:[%s3 + $0x188] sm:$0xff]
    %v3549 = vld [vmem:[%s3 + $0x190] sm:$0xff]
    %v3550 = vld [vmem:[%s3 + $0x198] sm:$0xff]
    %v3551 = vld [vmem:[%s3 + $0x1a0] sm:$0xff]
    %v3552 = vld [vmem:[%s3 + $0x1a8] sm:$0xff]
    %v3553 = vld [vmem:[%s3 + $0x1b0] sm:$0xff]
    %v3554 = vld [vmem:[%s3 + $0x1b8] sm:$0xff]
    %v3555 = vld [vmem:[%s3 + $0x1c0] sm:$0xff]
    %v3556 = vld [vmem:[%s3 + $0x1c8] sm:$0xff]
    %v3557 = vld [vmem:[%s3 + $0x1d0] sm:$0xff]
    %v3558 = vld [vmem:[%s3 + $0x1d8] sm:$0xff]
    %v3559 = vld [vmem:[%s3 + $0x1e0] sm:$0xff]
    %v3560 = vld [vmem:[%s3 + $0x1e8] sm:$0xff]
    %v3561 = vld [vmem:[%s3 + $0x1f0] sm:$0xff]
    %v3562 = vld [vmem:[%s3 + $0x1f8] sm:$0xff]
    %v3563 = vld [vmem:[%s3 + $0x200] sm:$0xff]
    %v3564 = vld [vmem:[%s3 + $0x208] sm:$0xff]
    %v3565 = vld [vmem:[%s3 + $0x210] sm:$0xff]
    %v3566 = vld [vmem:[%s3 + $0x218] sm:$0xff]
    %v3567 = vld [vmem:[%s3 + $0x220] sm:$0xff]
    %v3568 = vld [vmem:[%s3 + $0x228] sm:$0xff]
    %v3569 = vld [vmem:[%s3 + $0x230] sm:$0xff]
    %v3570 = vld [vmem:[%s3 + $0x238] sm:$0xff]
    %v3571 = vld [vmem:[%s3 + $0x240] sm:$0xff]
    %v3572 = vld [vmem:[%s3 + $0x248] sm:$0xff]
    %v3573 = vld [vmem:[%s3 + $0x250] sm:$0xff]
    %v3574 = vld [vmem:[%s3 + $0x258] sm:$0xff]
    %v3575 = vld [vmem:[%s3 + $0x260] sm:$0xff]
    %v3576 = vld [vmem:[%s3 + $0x268] sm:$0xff]
    %v3577 = vld [vmem:[%s3 + $0x270] sm:$0xff]
    %v3578 = vld [vmem:[%s3 + $0x278] sm:$0xff]
    %v3579 = vld [vmem:[%s3 + $0x280] sm:$0xff]
    %v3580 = vld [vmem:[%s3 + $0x288] sm:$0xff]
    %v3581 = vld [vmem:[%s3 + $0x290] sm:$0xff]
    %v3582 = vld [vmem:[%s3 + $0x298] sm:$0xff]
    %v3583 = vld [vmem:[%s3 + $0x2a0] sm:$0xff]
    %v3584 = vld [vmem:[%s3 + $0x2a8] sm:$0xff]
    %v3585 = vld [vmem:[%s3 + $0x2b0] sm:$0xff]
    %v3586 = vld [vmem:[%s3 + $0x2b8] sm:$0xff]
    %v3587 = vld [vmem:[%s3 + $0x2c0] sm:$0xff]
    %v3588 = vld [vmem:[%s3 + $0x2c8] sm:$0xff]
    %v3589 = vld [vmem:[%s3 + $0x2d0] sm:$0xff]
    %v3590 = vld [vmem:[%s3 + $0x2d8] sm:$0xff]
    %v3591 = vld [vmem:[%s3 + $0x2e0] sm:$0xff]
    %v3592 = vld [vmem:[%s3 + $0x2e8] sm:$0xff]
    %v3593 = vld [vmem:[%s3 + $0x2f0] sm:$0xff]
    %v3594 = vld [vmem:[%s3 + $0x2f8] sm:$0xff]
    %v3595 = vld [vmem:[%s3 + $0x300] sm:$0xff]
    %v3596 = vld [vmem:[%s3 + $0x308] sm:$0xff]
    %v3597 = vld [vmem:[%s3 + $0x310] sm:$0xff]
    %v3598 = vld [vmem:[%s3 + $0x318] sm:$0xff]
    %v3599 = vld [vmem:[%s3 + $0x320] sm:$0xff]
    %v3600 = vld [vmem:[%s3 + $0x328] sm:$0xff]
    %v3601 = vld [vmem:[%s3 + $0x330] sm:$0xff]
    %v3602 = vld [vmem:[%s3 + $0x338] sm:$0xff]
    %v3603 = vld [vmem:[%s3 + $0x340] sm:$0xff]
    %v3604 = vld [vmem:[%s3 + $0x348] sm:$0xff]
    %v3605 = vld [vmem:[%s3 + $0x350] sm:$0xff]
    %v3606 = vld [vmem:[%s3 + $0x358] sm:$0xff]
    %v3607 = vld [vmem:[%s3 + $0x360] sm:$0xff]
    %v3608 = vld [vmem:[%s3 + $0x368] sm:$0xff]
    %v3609 = vld [vmem:[%s3 + $0x370] sm:$0xff]
    %v3610 = vld [vmem:[%s3 + $0x378] sm:$0xff]
    %v3611 = vld [vmem:[%s3 + $0x380] sm:$0xff]
    %v3612 = vld [vmem:[%s3 + $0x388] sm:$0xff]
    %v3613 = vld [vmem:[%s3 + $0x390] sm:$0xff]
    %v3614 = vld [vmem:[%s3 + $0x398] sm:$0xff]
    %v3615 = vld [vmem:[%s3 + $0x3a0] sm:$0xff]
    %v3616 = vld [vmem:[%s3 + $0x3a8] sm:$0xff]
    %v3617 = vld [vmem:[%s3 + $0x3b0] sm:$0xff]
    %v3618 = vld [vmem:[%s3 + $0x3b8] sm:$0xff]
    %v3619 = vld [vmem:[%s3 + $0x3c0] sm:$0xff]
    %v3620 = vld [vmem:[%s3 + $0x3c8] sm:$0xff]
    %v3621 = vld [vmem:[%s3 + $0x3d0] sm:$0xff]
    %v3622 = vld [vmem:[%s3 + $0x3d8] sm:$0xff]
    %v3623 = vld [vmem:[%s3 + $0x3e0] sm:$0xff]
    %v3624 = vld [vmem:[%s3 + $0x3e8] sm:$0xff]
    %v3625 = vld [vmem:[%s3 + $0x3f0] sm:$0xff]
    %v3626 = vld [vmem:[%s3 + $0x3f8] sm:$0xff]
    %v3627 = vld [vmem:[%s4] sm:$0x3]
    %v3629 = vlaneseq
    %v3630 = vshrl.u32 %v3629, 7
    %v3631 = vsub.s32 0, %v3630
    %v3632 = vrot.slane %v3627, %v3631
    %v3633 = vlaneseq
    %v3634 = vshrl.u32 %v3633, 7
    %v3635 = vsub.s32 1, %v3634
    %v3636 = vrot.slane %v3627, %v3635
    %v3767 = vunpack.c.l.b16 %v3499
    %v3768 = vunpack.c.h.b16 %v3499
    %v3769 = vunpack.c.l.b16 %v3500
    %v3770 = vunpack.c.h.b16 %v3500
    %v3771 = vunpack.c.l.b16 %v3501
    %v3772 = vunpack.c.h.b16 %v3501
    %v3773 = vunpack.c.l.b16 %v3502
    %v3774 = vunpack.c.h.b16 %v3502
    %v3775 = vunpack.c.l.b16 %v3503
    %v3776 = vunpack.c.h.b16 %v3503
    %v3777 = vunpack.c.l.b16 %v3504
    %v3778 = vunpack.c.h.b16 %v3504
    %v3779 = vunpack.c.l.b16 %v3505
    %v3780 = vunpack.c.h.b16 %v3505
    %v3781 = vunpack.c.l.b16 %v3506
    %v3782 = vunpack.c.h.b16 %v3506
    %v3783 = vunpack.c.l.b16 %v3507
    %v3784 = vunpack.c.h.b16 %v3507
    %v3785 = vunpack.c.l.b16 %v3508
    %v3786 = vunpack.c.h.b16 %v3508
    %v3787 = vunpack.c.l.b16 %v3509
    %v3788 = vunpack.c.h.b16 %v3509
    %v3789 = vunpack.c.l.b16 %v3510
    %v3790 = vunpack.c.h.b16 %v3510
    %v3791 = vunpack.c.l.b16 %v3511
    %v3792 = vunpack.c.h.b16 %v3511
    %v3793 = vunpack.c.l.b16 %v3512
    %v3794 = vunpack.c.h.b16 %v3512
    %v3795 = vunpack.c.l.b16 %v3513
    %v3796 = vunpack.c.h.b16 %v3513
    %v3797 = vunpack.c.l.b16 %v3514
    %v3798 = vunpack.c.h.b16 %v3514
    %v3799 = vunpack.c.l.b16 %v3515
    %v3800 = vunpack.c.h.b16 %v3515
    %v3801 = vunpack.c.l.b16 %v3516
    %v3802 = vunpack.c.h.b16 %v3516
    %v3803 = vunpack.c.l.b16 %v3517
    %v3804 = vunpack.c.h.b16 %v3517
    %v3805 = vunpack.c.l.b16 %v3518
    %v3806 = vunpack.c.h.b16 %v3518
    %v3807 = vunpack.c.l.b16 %v3519
    %v3808 = vunpack.c.h.b16 %v3519
    %v3809 = vunpack.c.l.b16 %v3520
    %v3810 = vunpack.c.h.b16 %v3520
    %v3811 = vunpack.c.l.b16 %v3521
    %v3812 = vunpack.c.h.b16 %v3521
    %v3813 = vunpack.c.l.b16 %v3522
    %v3814 = vunpack.c.h.b16 %v3522
    %v3815 = vunpack.c.l.b16 %v3523
    %v3816 = vunpack.c.h.b16 %v3523
    %v3817 = vunpack.c.l.b16 %v3524
    %v3818 = vunpack.c.h.b16 %v3524
    %v3819 = vunpack.c.l.b16 %v3525
    %v3820 = vunpack.c.h.b16 %v3525
    %v3821 = vunpack.c.l.b16 %v3526
    %v3822 = vunpack.c.h.b16 %v3526
    %v3823 = vunpack.c.l.b16 %v3527
    %v3824 = vunpack.c.h.b16 %v3527
    %v3825 = vunpack.c.l.b16 %v3528
    %v3826 = vunpack.c.h.b16 %v3528
    %v3827 = vunpack.c.l.b16 %v3529
    %v3828 = vunpack.c.h.b16 %v3529
    %v3829 = vunpack.c.l.b16 %v3530
    %v3830 = vunpack.c.h.b16 %v3530
    %v3831 = vunpack.c.l.b16 %v3531
    %v3832 = vunpack.c.h.b16 %v3531
    %v3833 = vunpack.c.l.b16 %v3532
    %v3834 = vunpack.c.h.b16 %v3532
    %v3835 = vunpack.c.l.b16 %v3533
    %v3836 = vunpack.c.h.b16 %v3533
    %v3837 = vunpack.c.l.b16 %v3534
    %v3838 = vunpack.c.h.b16 %v3534
    %v3839 = vunpack.c.l.b16 %v3535
    %v3840 = vunpack.c.h.b16 %v3535
    %v3841 = vunpack.c.l.b16 %v3536
    %v3842 = vunpack.c.h.b16 %v3536
    %v3843 = vunpack.c.l.b16 %v3537
    %v3844 = vunpack.c.h.b16 %v3537
    %v3845 = vunpack.c.l.b16 %v3538
    %v3846 = vunpack.c.h.b16 %v3538
    %v3847 = vunpack.c.l.b16 %v3539
    %v3848 = vunpack.c.h.b16 %v3539
    %v3849 = vunpack.c.l.b16 %v3540
    %v3850 = vunpack.c.h.b16 %v3540
    %v3851 = vunpack.c.l.b16 %v3541
    %v3852 = vunpack.c.h.b16 %v3541
    %v3853 = vunpack.c.l.b16 %v3542
    %v3854 = vunpack.c.h.b16 %v3542
    %v3855 = vunpack.c.l.b16 %v3543
    %v3856 = vunpack.c.h.b16 %v3543
    %v3857 = vunpack.c.l.b16 %v3544
    %v3858 = vunpack.c.h.b16 %v3544
    %v3859 = vunpack.c.l.b16 %v3545
    %v3860 = vunpack.c.h.b16 %v3545
    %v3861 = vunpack.c.l.b16 %v3546
    %v3862 = vunpack.c.h.b16 %v3546
    %v3863 = vunpack.c.l.b16 %v3547
    %v3864 = vunpack.c.h.b16 %v3547
    %v3865 = vunpack.c.l.b16 %v3548
    %v3866 = vunpack.c.h.b16 %v3548
    %v3867 = vunpack.c.l.b16 %v3549
    %v3868 = vunpack.c.h.b16 %v3549
    %v3869 = vunpack.c.l.b16 %v3550
    %v3870 = vunpack.c.h.b16 %v3550
    %v3871 = vunpack.c.l.b16 %v3551
    %v3872 = vunpack.c.h.b16 %v3551
    %v3873 = vunpack.c.l.b16 %v3552
    %v3874 = vunpack.c.h.b16 %v3552
    %v3875 = vunpack.c.l.b16 %v3553
    %v3876 = vunpack.c.h.b16 %v3553
    %v3877 = vunpack.c.l.b16 %v3554
    %v3878 = vunpack.c.h.b16 %v3554
    %v3879 = vunpack.c.l.b16 %v3555
    %v3880 = vunpack.c.h.b16 %v3555
    %v3881 = vunpack.c.l.b16 %v3556
    %v3882 = vunpack.c.h.b16 %v3556
    %v3883 = vunpack.c.l.b16 %v3557
    %v3884 = vunpack.c.h.b16 %v3557
    %v3885 = vunpack.c.l.b16 %v3558
    %v3886 = vunpack.c.h.b16 %v3558
    %v3887 = vunpack.c.l.b16 %v3559
    %v3888 = vunpack.c.h.b16 %v3559
    %v3889 = vunpack.c.l.b16 %v3560
    %v3890 = vunpack.c.h.b16 %v3560
    %v3891 = vunpack.c.l.b16 %v3561
    %v3892 = vunpack.c.h.b16 %v3561
    %v3893 = vunpack.c.l.b16 %v3562
    %v3894 = vunpack.c.h.b16 %v3562
    %v3895 = vunpack.c.l.b16 %v3563
    %v3896 = vunpack.c.h.b16 %v3563
    %v3897 = vunpack.c.l.b16 %v3564
    %v3898 = vunpack.c.h.b16 %v3564
    %v3899 = vunpack.c.l.b16 %v3565
    %v3900 = vunpack.c.h.b16 %v3565
    %v3901 = vunpack.c.l.b16 %v3566
    %v3902 = vunpack.c.h.b16 %v3566
    %v3903 = vunpack.c.l.b16 %v3567
    %v3904 = vunpack.c.h.b16 %v3567
    %v3905 = vunpack.c.l.b16 %v3568
    %v3906 = vunpack.c.h.b16 %v3568
    %v3907 = vunpack.c.l.b16 %v3569
    %v3908 = vunpack.c.h.b16 %v3569
    %v3909 = vunpack.c.l.b16 %v3570
    %v3910 = vunpack.c.h.b16 %v3570
    %v3911 = vunpack.c.l.b16 %v3571
    %v3912 = vunpack.c.h.b16 %v3571
    %v3913 = vunpack.c.l.b16 %v3572
    %v3914 = vunpack.c.h.b16 %v3572
    %v3915 = vunpack.c.l.b16 %v3573
    %v3916 = vunpack.c.h.b16 %v3573
    %v3917 = vunpack.c.l.b16 %v3574
    %v3918 = vunpack.c.h.b16 %v3574
    %v3919 = vunpack.c.l.b16 %v3575
    %v3920 = vunpack.c.h.b16 %v3575
    %v3921 = vunpack.c.l.b16 %v3576
    %v3922 = vunpack.c.h.b16 %v3576
    %v3923 = vunpack.c.l.b16 %v3577
    %v3924 = vunpack.c.h.b16 %v3577
    %v3925 = vunpack.c.l.b16 %v3578
    %v3926 = vunpack.c.h.b16 %v3578
    %v3927 = vunpack.c.l.b16 %v3579
    %v3928 = vunpack.c.h.b16 %v3579
    %v3929 = vunpack.c.l.b16 %v3580
    %v3930 = vunpack.c.h.b16 %v3580
    %v3931 = vunpack.c.l.b16 %v3581
    %v3932 = vunpack.c.h.b16 %v3581
    %v3933 = vunpack.c.l.b16 %v3582
    %v3934 = vunpack.c.h.b16 %v3582
    %v3935 = vunpack.c.l.b16 %v3583
    %v3936 = vunpack.c.h.b16 %v3583
    %v3937 = vunpack.c.l.b16 %v3584
    %v3938 = vunpack.c.h.b16 %v3584
    %v3939 = vunpack.c.l.b16 %v3585
    %v3940 = vunpack.c.h.b16 %v3585
    %v3941 = vunpack.c.l.b16 %v3586
    %v3942 = vunpack.c.h.b16 %v3586
    %v3943 = vunpack.c.l.b16 %v3587
    %v3944 = vunpack.c.h.b16 %v3587
    %v3945 = vunpack.c.l.b16 %v3588
    %v3946 = vunpack.c.h.b16 %v3588
    %v3947 = vunpack.c.l.b16 %v3589
    %v3948 = vunpack.c.h.b16 %v3589
    %v3949 = vunpack.c.l.b16 %v3590
    %v3950 = vunpack.c.h.b16 %v3590
    %v3951 = vunpack.c.l.b16 %v3591
    %v3952 = vunpack.c.h.b16 %v3591
    %v3953 = vunpack.c.l.b16 %v3592
    %v3954 = vunpack.c.h.b16 %v3592
    %v3955 = vunpack.c.l.b16 %v3593
    %v3956 = vunpack.c.h.b16 %v3593
    %v3957 = vunpack.c.l.b16 %v3594
    %v3958 = vunpack.c.h.b16 %v3594
    %v3959 = vunpack.c.l.b16 %v3595
    %v3960 = vunpack.c.h.b16 %v3595
    %v3961 = vunpack.c.l.b16 %v3596
    %v3962 = vunpack.c.h.b16 %v3596
    %v3963 = vunpack.c.l.b16 %v3597
    %v3964 = vunpack.c.h.b16 %v3597
    %v3965 = vunpack.c.l.b16 %v3598
    %v3966 = vunpack.c.h.b16 %v3598
    %v3967 = vunpack.c.l.b16 %v3599
    %v3968 = vunpack.c.h.b16 %v3599
    %v3969 = vunpack.c.l.b16 %v3600
    %v3970 = vunpack.c.h.b16 %v3600
    %v3971 = vunpack.c.l.b16 %v3601
    %v3972 = vunpack.c.h.b16 %v3601
    %v3973 = vunpack.c.l.b16 %v3602
    %v3974 = vunpack.c.h.b16 %v3602
    %v3975 = vunpack.c.l.b16 %v3603
    %v3976 = vunpack.c.h.b16 %v3603
    %v3977 = vunpack.c.l.b16 %v3604
    %v3978 = vunpack.c.h.b16 %v3604
    %v3979 = vunpack.c.l.b16 %v3605
    %v3980 = vunpack.c.h.b16 %v3605
    %v3981 = vunpack.c.l.b16 %v3606
    %v3982 = vunpack.c.h.b16 %v3606
    %v3983 = vunpack.c.l.b16 %v3607
    %v3984 = vunpack.c.h.b16 %v3607
    %v3985 = vunpack.c.l.b16 %v3608
    %v3986 = vunpack.c.h.b16 %v3608
    %v3987 = vunpack.c.l.b16 %v3609
    %v3988 = vunpack.c.h.b16 %v3609
    %v3989 = vunpack.c.l.b16 %v3610
    %v3990 = vunpack.c.h.b16 %v3610
    %v3991 = vunpack.c.l.b16 %v3611
    %v3992 = vunpack.c.h.b16 %v3611
    %v3993 = vunpack.c.l.b16 %v3612
    %v3994 = vunpack.c.h.b16 %v3612
    %v3995 = vunpack.c.l.b16 %v3613
    %v3996 = vunpack.c.h.b16 %v3613
    %v3997 = vunpack.c.l.b16 %v3614
    %v3998 = vunpack.c.h.b16 %v3614
    %v3999 = vunpack.c.l.b16 %v3615
    %v4000 = vunpack.c.h.b16 %v3615
    %v4001 = vunpack.c.l.b16 %v3616
    %v4002 = vunpack.c.h.b16 %v3616
    %v4003 = vunpack.c.l.b16 %v3617
    %v4004 = vunpack.c.h.b16 %v3617
    %v4005 = vunpack.c.l.b16 %v3618
    %v4006 = vunpack.c.h.b16 %v3618
    %v4007 = vunpack.c.l.b16 %v3619
    %v4008 = vunpack.c.h.b16 %v3619
    %v4009 = vunpack.c.l.b16 %v3620
    %v4010 = vunpack.c.h.b16 %v3620
    %v4011 = vunpack.c.l.b16 %v3621
    %v4012 = vunpack.c.h.b16 %v3621
    %v4013 = vunpack.c.l.b16 %v3622
    %v4014 = vunpack.c.h.b16 %v3622
    %v4015 = vunpack.c.l.b16 %v3623
    %v4016 = vunpack.c.h.b16 %v3623
    %v4017 = vunpack.c.l.b16 %v3624
    %v4018 = vunpack.c.h.b16 %v3624
    %v4019 = vunpack.c.l.b16 %v3625
    %v4020 = vunpack.c.h.b16 %v3625
    %v4021 = vunpack.c.l.b16 %v3626
    %v4022 = vunpack.c.h.b16 %v3626
    %v4023 = vpack.c.b16 %v3769, %v3767
    %v4024 = vpack.c.b16 %v3770, %v3768
    %v4025 = vpack.c.b16 %v3773, %v3771
    %v4026 = vpack.c.b16 %v3774, %v3772
    %v4027 = vpack.c.b16 %v3777, %v3775
    %v4028 = vpack.c.b16 %v3778, %v3776
    %v4029 = vpack.c.b16 %v3781, %v3779
    %v4030 = vpack.c.b16 %v3782, %v3780
    %v4031 = vpack.c.b16 %v3785, %v3783
    %v4032 = vpack.c.b16 %v3786, %v3784
    %v4033 = vpack.c.b16 %v3789, %v3787
    %v4034 = vpack.c.b16 %v3790, %v3788
    %v4035 = vpack.c.b16 %v3793, %v3791
    %v4036 = vpack.c.b16 %v3794, %v3792
    %v4037 = vpack.c.b16 %v3797, %v3795
    %v4038 = vpack.c.b16 %v3798, %v3796
    %v4039 = vpack.c.b16 %v3801, %v3799
    %v4040 = vpack.c.b16 %v3802, %v3800
    %v4041 = vpack.c.b16 %v3805, %v3803
    %v4042 = vpack.c.b16 %v3806, %v3804
    %v4043 = vpack.c.b16 %v3809, %v3807
    %v4044 = vpack.c.b16 %v3810, %v3808
    %v4045 = vpack.c.b16 %v3813, %v3811
    %v4046 = vpack.c.b16 %v3814, %v3812
    %v4047 = vpack.c.b16 %v3817, %v3815
    %v4048 = vpack.c.b16 %v3818, %v3816
    %v4049 = vpack.c.b16 %v3821, %v3819
    %v4050 = vpack.c.b16 %v3822, %v3820
    %v4051 = vpack.c.b16 %v3825, %v3823
    %v4052 = vpack.c.b16 %v3826, %v3824
    %v4053 = vpack.c.b16 %v3829, %v3827
    %v4054 = vpack.c.b16 %v3830, %v3828
    %v4055 = vpack.c.b16 %v3833, %v3831
    %v4056 = vpack.c.b16 %v3834, %v3832
    %v4057 = vpack.c.b16 %v3837, %v3835
    %v4058 = vpack.c.b16 %v3838, %v3836
    %v4059 = vpack.c.b16 %v3841, %v3839
    %v4060 = vpack.c.b16 %v3842, %v3840
    %v4061 = vpack.c.b16 %v3845, %v3843
    %v4062 = vpack.c.b16 %v3846, %v3844
    %v4063 = vpack.c.b16 %v3849, %v3847
    %v4064 = vpack.c.b16 %v3850, %v3848
    %v4065 = vpack.c.b16 %v3853, %v3851
    %v4066 = vpack.c.b16 %v3854, %v3852
    %v4067 = vpack.c.b16 %v3857, %v3855
    %v4068 = vpack.c.b16 %v3858, %v3856
    %v4069 = vpack.c.b16 %v3861, %v3859
    %v4070 = vpack.c.b16 %v3862, %v3860
    %v4071 = vpack.c.b16 %v3865, %v3863
    %v4072 = vpack.c.b16 %v3866, %v3864
    %v4073 = vpack.c.b16 %v3869, %v3867
    %v4074 = vpack.c.b16 %v3870, %v3868
    %v4075 = vpack.c.b16 %v3873, %v3871
    %v4076 = vpack.c.b16 %v3874, %v3872
    %v4077 = vpack.c.b16 %v3877, %v3875
    %v4078 = vpack.c.b16 %v3878, %v3876
    %v4079 = vpack.c.b16 %v3881, %v3879
    %v4080 = vpack.c.b16 %v3882, %v3880
    %v4081 = vpack.c.b16 %v3885, %v3883
    %v4082 = vpack.c.b16 %v3886, %v3884
    %v4083 = vpack.c.b16 %v3889, %v3887
    %v4084 = vpack.c.b16 %v3890, %v3888
    %v4085 = vpack.c.b16 %v3893, %v3891
    %v4086 = vpack.c.b16 %v3894, %v3892
    %v4087 = vpack.c.b16 %v3897, %v3895
    %v4088 = vpack.c.b16 %v3898, %v3896
    %v4089 = vpack.c.b16 %v3901, %v3899
    %v4090 = vpack.c.b16 %v3902, %v3900
    %v4091 = vpack.c.b16 %v3905, %v3903
    %v4092 = vpack.c.b16 %v3906, %v3904
    %v4093 = vpack.c.b16 %v3909, %v3907
    %v4094 = vpack.c.b16 %v3910, %v3908
    %v4095 = vpack.c.b16 %v3913, %v3911
    %v4096 = vpack.c.b16 %v3914, %v3912
    %v4097 = vpack.c.b16 %v3917, %v3915
    %v4098 = vpack.c.b16 %v3918, %v3916
    %v4099 = vpack.c.b16 %v3921, %v3919
    %v4100 = vpack.c.b16 %v3922, %v3920
    %v4101 = vpack.c.b16 %v3925, %v3923
    %v4102 = vpack.c.b16 %v3926, %v3924
    %v4103 = vpack.c.b16 %v3929, %v3927
    %v4104 = vpack.c.b16 %v3930, %v3928
    %v4105 = vpack.c.b16 %v3933, %v3931
    %v4106 = vpack.c.b16 %v3934, %v3932
    %v4107 = vpack.c.b16 %v3937, %v3935
    %v4108 = vpack.c.b16 %v3938, %v3936
    %v4109 = vpack.c.b16 %v3941, %v3939
    %v4110 = vpack.c.b16 %v3942, %v3940
    %v4111 = vpack.c.b16 %v3945, %v3943
    %v4112 = vpack.c.b16 %v3946, %v3944
    %v4113 = vpack.c.b16 %v3949, %v3947
    %v4114 = vpack.c.b16 %v3950, %v3948
    %v4115 = vpack.c.b16 %v3953, %v3951
    %v4116 = vpack.c.b16 %v3954, %v3952
    %v4117 = vpack.c.b16 %v3957, %v3955
    %v4118 = vpack.c.b16 %v3958, %v3956
    %v4119 = vpack.c.b16 %v3961, %v3959
    %v4120 = vpack.c.b16 %v3962, %v3960
    %v4121 = vpack.c.b16 %v3965, %v3963
    %v4122 = vpack.c.b16 %v3966, %v3964
    %v4123 = vpack.c.b16 %v3969, %v3967
    %v4124 = vpack.c.b16 %v3970, %v3968
    %v4125 = vpack.c.b16 %v3973, %v3971
    %v4126 = vpack.c.b16 %v3974, %v3972
    %v4127 = vpack.c.b16 %v3977, %v3975
    %v4128 = vpack.c.b16 %v3978, %v3976
    %v4129 = vpack.c.b16 %v3981, %v3979
    %v4130 = vpack.c.b16 %v3982, %v3980
    %v4131 = vpack.c.b16 %v3985, %v3983
    %v4132 = vpack.c.b16 %v3986, %v3984
    %v4133 = vpack.c.b16 %v3989, %v3987
    %v4134 = vpack.c.b16 %v3990, %v3988
    %v4135 = vpack.c.b16 %v3993, %v3991
    %v4136 = vpack.c.b16 %v3994, %v3992
    %v4137 = vpack.c.b16 %v3997, %v3995
    %v4138 = vpack.c.b16 %v3998, %v3996
    %v4139 = vpack.c.b16 %v4001, %v3999
    %v4140 = vpack.c.b16 %v4002, %v4000
    %v4141 = vpack.c.b16 %v4005, %v4003
    %v4142 = vpack.c.b16 %v4006, %v4004
    %v4143 = vpack.c.b16 %v4009, %v4007
    %v4144 = vpack.c.b16 %v4010, %v4008
    %v4145 = vpack.c.b16 %v4013, %v4011
    %v4146 = vpack.c.b16 %v4014, %v4012
    %v4147 = vpack.c.b16 %v4017, %v4015
    %v4148 = vpack.c.b16 %v4018, %v4016
    %v4149 = vpack.c.b16 %v4021, %v4019
    %v4150 = vpack.c.b16 %v4022, %v4020
    %4279 = vmatprep.subr.bf16.mxu0 %v4038
    %4280 = vmatpush1.bf16.msra.mxu0 %v4037
    %4281 = vmatprep.subr.bf16.mxu0 %v4036
    %4282 = vmatpush1.bf16.msra.mxu0 %v4035
    %4283 = vmatprep.subr.bf16.mxu0 %v4034
    %4284 = vmatpush1.bf16.msra.mxu0 %v4033
    %4285 = vmatprep.subr.bf16.mxu0 %v4032
    %4286 = vmatpush1.bf16.msra.mxu0 %v4031
    %4287 = vmatprep.subr.bf16.mxu0 %v4030
    %4288 = vmatpush1.bf16.msra.mxu0 %v4029
    %4289 = vmatprep.subr.bf16.mxu0 %v4028
    %4290 = vmatpush1.bf16.msra.mxu0 %v4027
    %4291 = vmatprep.subr.bf16.mxu0 %v4026
    %4292 = vmatpush1.bf16.msra.mxu0 %v4025
    %4293 = vmatprep.subr.bf16.mxu0 %v4024
    %4294 = vmatpush1.bf16.msra.mxu0 %v4023
    %4295 = vmatprep.subr.bf16.mxu0 %v4054
    %4296 = vmatpush2.bf16.msra.mxu0 %v4053
    %4297 = vmatprep.subr.bf16.mxu0 %v4052
    %4298 = vmatpush2.bf16.msra.mxu0 %v4051
    %4299 = vmatprep.subr.bf16.mxu0 %v4050
    %4300 = vmatpush2.bf16.msra.mxu0 %v4049
    %4301 = vmatprep.subr.bf16.mxu0 %v4048
    %4302 = vmatpush2.bf16.msra.mxu0 %v4047
    %4303 = vmatprep.subr.bf16.mxu0 %v4046
    %4304 = vmatpush2.bf16.msra.mxu0 %v4045
    %4305 = vmatprep.subr.bf16.mxu0 %v4044
    %4306 = vmatpush2.bf16.msra.mxu0 %v4043
    %4307 = vmatprep.subr.bf16.mxu0 %v4042
    %4308 = vmatpush2.bf16.msra.mxu0 %v4041
    %4309 = vmatprep.subr.bf16.mxu0 %v4040
    %4310 = vmatpush2.bf16.msra.mxu0 %v4039
    %4311 = vmatprep.mubr.bf16.mxu0 %v3492
    %4312 = vmatmul.mubr.bf16.gmra.mxu0 %v3491
    %v4313 = vpop.f32.mrf.mxu0
    %v4314 = vadd.f32 %v3632, %v4313
    %v4315 = vpop.f32.mrf.mxu0
    %v4316 = vadd.f32 %v3636, %v4315
    %v4317 = vpop.f32.mrf.mxu0
    %v4318 = vpop.f32.mrf.mxu0
    %4319 = vdwg.mxu0
    %4320 = vmatprep.subr.bf16.mxu0 %v4070
    %4321 = vmatpush1.bf16.msra.mxu0 %v4069
    %4322 = vmatprep.subr.bf16.mxu0 %v4068
    %4323 = vmatpush1.bf16.msra.mxu0 %v4067
    %4324 = vmatprep.subr.bf16.mxu0 %v4066
    %4325 = vmatpush1.bf16.msra.mxu0 %v4065
    %4326 = vmatprep.subr.bf16.mxu0 %v4064
    %4327 = vmatpush1.bf16.msra.mxu0 %v4063
    %4328 = vmatprep.subr.bf16.mxu0 %v4062
    %4329 = vmatpush1.bf16.msra.mxu0 %v4061
    %4330 = vmatprep.subr.bf16.mxu0 %v4060
    %4331 = vmatpush1.bf16.msra.mxu0 %v4059
    %4332 = vmatprep.subr.bf16.mxu0 %v4058
    %4333 = vmatpush1.bf16.msra.mxu0 %v4057
    %4334 = vmatprep.subr.bf16.mxu0 %v4056
    %4335 = vmatpush1.bf16.msra.mxu0 %v4055
    %4336 = vmatprep.subr.bf16.mxu0 %v4086
    %4337 = vmatpush2.bf16.msra.mxu0 %v4085
    %4338 = vmatprep.subr.bf16.mxu0 %v4084
    %4339 = vmatpush2.bf16.msra.mxu0 %v4083
    %4340 = vmatprep.subr.bf16.mxu0 %v4082
    %4341 = vmatpush2.bf16.msra.mxu0 %v4081
    %4342 = vmatprep.subr.bf16.mxu0 %v4080
    %4343 = vmatpush2.bf16.msra.mxu0 %v4079
    %4344 = vmatprep.subr.bf16.mxu0 %v4078
    %4345 = vmatpush2.bf16.msra.mxu0 %v4077
    %4346 = vmatprep.subr.bf16.mxu0 %v4076
    %4347 = vmatpush2.bf16.msra.mxu0 %v4075
    %4348 = vmatprep.subr.bf16.mxu0 %v4074
    %4349 = vmatpush2.bf16.msra.mxu0 %v4073
    %4350 = vmatprep.subr.bf16.mxu0 %v4072
    %4351 = vmatpush2.bf16.msra.mxu0 %v4071
    %4352 = vmatprep.mubr.bf16.mxu0 %v3494
    %4353 = vmatmul.mubr.bf16.gmra.mxu0 %v3493
    %v4354 = vpop.f32.mrf.mxu0
    %v4355 = vadd.f32 %v4314, %v4354
    %v4356 = vpop.f32.mrf.mxu0
    %v4357 = vadd.f32 %v4316, %v4356
    %v4358 = vpop.f32.mrf.mxu0
    %v4359 = vpop.f32.mrf.mxu0
    %4360 = vdwg.mxu0
    %4361 = vmatprep.subr.bf16.mxu0 %v4102
    %4362 = vmatpush1.bf16.msra.mxu0 %v4101
    %4363 = vmatprep.subr.bf16.mxu0 %v4100
    %4364 = vmatpush1.bf16.msra.mxu0 %v4099
    %4365 = vmatprep.subr.bf16.mxu0 %v4098
    %4366 = vmatpush1.bf16.msra.mxu0 %v4097
    %4367 = vmatprep.subr.bf16.mxu0 %v4096
    %4368 = vmatpush1.bf16.msra.mxu0 %v4095
    %4369 = vmatprep.subr.bf16.mxu0 %v4094
    %4370 = vmatpush1.bf16.msra.mxu0 %v4093
    %4371 = vmatprep.subr.bf16.mxu0 %v4092
    %4372 = vmatpush1.bf16.msra.mxu0 %v4091
    %4373 = vmatprep.subr.bf16.mxu0 %v4090
    %4374 = vmatpush1.bf16.msra.mxu0 %v4089
    %4375 = vmatprep.subr.bf16.mxu0 %v4088
    %4376 = vmatpush1.bf16.msra.mxu0 %v4087
    %4377 = vmatprep.subr.bf16.mxu0 %v4118
    %4378 = vmatpush2.bf16.msra.mxu0 %v4117
    %4379 = vmatprep.subr.bf16.mxu0 %v4116
    %4380 = vmatpush2.bf16.msra.mxu0 %v4115
    %4381 = vmatprep.subr.bf16.mxu0 %v4114
    %4382 = vmatpush2.bf16.msra.mxu0 %v4113
    %4383 = vmatprep.subr.bf16.mxu0 %v4112
    %4384 = vmatpush2.bf16.msra.mxu0 %v4111
    %4385 = vmatprep.subr.bf16.mxu0 %v4110
    %4386 = vmatpush2.bf16.msra.mxu0 %v4109
    %4387 = vmatprep.subr.bf16.mxu0 %v4108
    %4388 = vmatpush2.bf16.msra.mxu0 %v4107
    %4389 = vmatprep.subr.bf16.mxu0 %v4106
    %4390 = vmatpush2.bf16.msra.mxu0 %v4105
    %4391 = vmatprep.subr.bf16.mxu0 %v4104
    %4392 = vmatpush2.bf16.msra.mxu0 %v4103
    %4393 = vmatprep.mubr.bf16.mxu0 %v3496
    %4394 = vmatmul.mubr.bf16.gmra.mxu0 %v3495
    %v4395 = vpop.f32.mrf.mxu0
    %v4396 = vadd.f32 %v4355, %v4395
    %v4397 = vpop.f32.mrf.mxu0
    %v4398 = vadd.f32 %v4357, %v4397
    %v4399 = vpop.f32.mrf.mxu0
    %v4400 = vpop.f32.mrf.mxu0
    %4401 = vdwg.mxu0
    %4402 = vmatprep.subr.bf16.mxu0 %v4134
    %4403 = vmatpush1.bf16.msra.mxu0 %v4133
    %4404 = vmatprep.subr.bf16.mxu0 %v4132
    %4405 = vmatpush1.bf16.msra.mxu0 %v4131
    %4406 = vmatprep.subr.bf16.mxu0 %v4130
    %4407 = vmatpush1.bf16.msra.mxu0 %v4129
    %4408 = vmatprep.subr.bf16.mxu0 %v4128
    %4409 = vmatpush1.bf16.msra.mxu0 %v4127
    %4410 = vmatprep.subr.bf16.mxu0 %v4126
    %4411 = vmatpush1.bf16.msra.mxu0 %v4125
    %4412 = vmatprep.subr.bf16.mxu0 %v4124
    %4413 = vmatpush1.bf16.msra.mxu0 %v4123
    %4414 = vmatprep.subr.bf16.mxu0 %v4122
    %4415 = vmatpush1.bf16.msra.mxu0 %v4121
    %4416 = vmatprep.subr.bf16.mxu0 %v4120
    %4417 = vmatpush1.bf16.msra.mxu0 %v4119
    %4418 = vmatprep.subr.bf16.mxu0 %v4150
    %4419 = vmatpush2.bf16.msra.mxu0 %v4149
    %4420 = vmatprep.subr.bf16.mxu0 %v4148
    %4421 = vmatpush2.bf16.msra.mxu0 %v4147
    %4422 = vmatprep.subr.bf16.mxu0 %v4146
    %4423 = vmatpush2.bf16.msra.mxu0 %v4145
    %4424 = vmatprep.subr.bf16.mxu0 %v4144
    %4425 = vmatpush2.bf16.msra.mxu0 %v4143
    %4426 = vmatprep.subr.bf16.mxu0 %v4142
    %4427 = vmatpush2.bf16.msra.mxu0 %v4141
    %4428 = vmatprep.subr.bf16.mxu0 %v4140
    %4429 = vmatpush2.bf16.msra.mxu0 %v4139
    %4430 = vmatprep.subr.bf16.mxu0 %v4138
    %4431 = vmatpush2.bf16.msra.mxu0 %v4137
    %4432 = vmatprep.subr.bf16.mxu0 %v4136
    %4433 = vmatpush2.bf16.msra.mxu0 %v4135
    %4434 = vmatprep.mubr.bf16.mxu0 %v3498
    %4435 = vmatmul.mubr.bf16.gmra.mxu0 %v3497
    %v4436 = vpop.f32.mrf.mxu0
    %v4437 = vadd.f32 %v4396, %v4436
    %v4438 = vpop.f32.mrf.mxu0
    %v4439 = vadd.f32 %v4398, %v4438
    %v4440 = vpop.f32.mrf.mxu0
    %v4441 = vpop.f32.mrf.mxu0
    %4442 = vdwg.mxu0
    %v4443 = vxor.u32 %v4437, 2147483648
    %v4444 = vxor.u32 %v4439, 2147483648
    %v4445 = vmul.f32 %v4443, 1.442695
    %v4446 = vpow.pop %v4445
    %v4447 = vmul.f32 %v4444, 1.442695
    %v4448 = vpow.pop %v4447
    %v4449 = vadd.f32 %v4446, 1.0
    %v4450 = vadd.f32 %v4448, 1.0
    %v4451 = vrcp.pop %v4449
    %v4452 = vmul.f32 1.0, %v4451
    %v4453 = vrcp.pop %v4450
    %v4454 = vmul.f32 1.0, %v4453
    %v4455 = vpack.c.bf16 %v4452, %v4452
    %v4456 = vpack.c.bf16 %v4454, %v4454
    %v4457 = vld [vmem:[%s5] sm:$0xf]
    %v4458 = vld [vmem:[%s5 + $0x4] sm:$0xf]
    %v4459 = vld [vmem:[%s5 + $0x8] sm:$0xf]
    %v4460 = vld [vmem:[%s5 + $0xc] sm:$0xf]
    %v4461 = vld [vmem:[%s5 + $0x10] sm:$0xf]
    %v4462 = vld [vmem:[%s5 + $0x14] sm:$0xf]
    %v4463 = vld [vmem:[%s5 + $0x18] sm:$0xf]
    %v4464 = vld [vmem:[%s5 + $0x1c] sm:$0xf]
    %v4465 = vld [vmem:[%s5 + $0x20] sm:$0xf]
    %v4466 = vld [vmem:[%s5 + $0x24] sm:$0xf]
    %v4467 = vld [vmem:[%s5 + $0x28] sm:$0xf]
    %v4468 = vld [vmem:[%s5 + $0x2c] sm:$0xf]
    %v4469 = vld [vmem:[%s5 + $0x30] sm:$0xf]
    %v4470 = vld [vmem:[%s5 + $0x34] sm:$0xf]
    %v4471 = vld [vmem:[%s5 + $0x38] sm:$0xf]
    %v4472 = vld [vmem:[%s5 + $0x3c] sm:$0xf]
    %v4473 = vld [vmem:[%s5 + $0x40] sm:$0xf]
    %v4474 = vld [vmem:[%s5 + $0x44] sm:$0xf]
    %v4475 = vld [vmem:[%s5 + $0x48] sm:$0xf]
    %v4476 = vld [vmem:[%s5 + $0x4c] sm:$0xf]
    %v4477 = vld [vmem:[%s5 + $0x50] sm:$0xf]
    %v4478 = vld [vmem:[%s5 + $0x54] sm:$0xf]
    %v4479 = vld [vmem:[%s5 + $0x58] sm:$0xf]
    %v4480 = vld [vmem:[%s5 + $0x5c] sm:$0xf]
    %v4481 = vld [vmem:[%s5 + $0x60] sm:$0xf]
    %v4482 = vld [vmem:[%s5 + $0x64] sm:$0xf]
    %v4483 = vld [vmem:[%s5 + $0x68] sm:$0xf]
    %v4484 = vld [vmem:[%s5 + $0x6c] sm:$0xf]
    %v4485 = vld [vmem:[%s5 + $0x70] sm:$0xf]
    %v4486 = vld [vmem:[%s5 + $0x74] sm:$0xf]
    %v4487 = vld [vmem:[%s5 + $0x78] sm:$0xf]
    %v4488 = vld [vmem:[%s5 + $0x7c] sm:$0xf]
    %v4489 = vld [vmem:[%s6] sm:$0x1]
    %v4491 = vlaneseq
    %v4492 = vshrl.u32 %v4491, 7
    %v4493 = vsub.s32 0, %v4492
    %v4494 = vrot.slane %v4489, %v4493
    %v4528 = vunpack.c.l.b16 %v4457
    %v4529 = vunpack.c.l.b16 %v4458
    %v4530 = vunpack.c.l.b16 %v4459
    %v4531 = vunpack.c.l.b16 %v4460
    %v4532 = vunpack.c.l.b16 %v4461
    %v4533 = vunpack.c.l.b16 %v4462
    %v4534 = vunpack.c.l.b16 %v4463
    %v4535 = vunpack.c.l.b16 %v4464
    %v4536 = vunpack.c.l.b16 %v4465
    %v4537 = vunpack.c.l.b16 %v4466
    %v4538 = vunpack.c.l.b16 %v4467
    %v4539 = vunpack.c.l.b16 %v4468
    %v4540 = vunpack.c.l.b16 %v4469
    %v4541 = vunpack.c.l.b16 %v4470
    %v4542 = vunpack.c.l.b16 %v4471
    %v4543 = vunpack.c.l.b16 %v4472
    %v4544 = vunpack.c.l.b16 %v4473
    %v4545 = vunpack.c.l.b16 %v4474
    %v4546 = vunpack.c.l.b16 %v4475
    %v4547 = vunpack.c.l.b16 %v4476
    %v4548 = vunpack.c.l.b16 %v4477
    %v4549 = vunpack.c.l.b16 %v4478
    %v4550 = vunpack.c.l.b16 %v4479
    %v4551 = vunpack.c.l.b16 %v4480
    %v4552 = vunpack.c.l.b16 %v4481
    %v4553 = vunpack.c.l.b16 %v4482
    %v4554 = vunpack.c.l.b16 %v4483
    %v4555 = vunpack.c.l.b16 %v4484
    %v4556 = vunpack.c.l.b16 %v4485
    %v4557 = vunpack.c.l.b16 %v4486
    %v4558 = vunpack.c.l.b16 %v4487
    %v4559 = vunpack.c.l.b16 %v4488
    %v4560 = vpack.c.b16 %v4529, %v4528
    %v4561 = vpack.c.b16 %v4531, %v4530
    %v4562 = vpack.c.b16 %v4533, %v4532
    %v4563 = vpack.c.b16 %v4535, %v4534
    %v4564 = vpack.c.b16 %v4537, %v4536
    %v4565 = vpack.c.b16 %v4539, %v4538
    %v4566 = vpack.c.b16 %v4541, %v4540
    %v4567 = vpack.c.b16 %v4543, %v4542
    %v4568 = vpack.c.b16 %v4545, %v4544
    %v4569 = vpack.c.b16 %v4547, %v4546
    %v4570 = vpack.c.b16 %v4549, %v4548
    %v4571 = vpack.c.b16 %v4551, %v4550
    %v4572 = vpack.c.b16 %v4553, %v4552
    %v4573 = vpack.c.b16 %v4555, %v4554
    %v4574 = vpack.c.b16 %v4557, %v4556
    %v4575 = vpack.c.b16 %v4559, %v4558
    %4592 = vmatprep.subr.bf16.mxu0 0
    %4593 = vmatpush1.bf16.msra.mxu0 %v4567
    %4594 = vmatprep.subr.bf16.mxu0 0
    %4595 = vmatpush1.bf16.msra.mxu0 %v4566
    %4596 = vmatprep.subr.bf16.mxu0 0
    %4597 = vmatpush1.bf16.msra.mxu0 %v4565
    %4598 = vmatprep.subr.bf16.mxu0 0
    %4599 = vmatpush1.bf16.msra.mxu0 %v4564
    %4600 = vmatprep.subr.bf16.mxu0 0
    %4601 = vmatpush1.bf16.msra.mxu0 %v4563
    %4602 = vmatprep.subr.bf16.mxu0 0
    %4603 = vmatpush1.bf16.msra.mxu0 %v4562
    %4604 = vmatprep.subr.bf16.mxu0 0
    %4605 = vmatpush1.bf16.msra.mxu0 %v4561
    %4606 = vmatprep.subr.bf16.mxu0 0
    %4607 = vmatpush1.bf16.msra.mxu0 %v4560
    %4608 = vmatprep.subr.bf16.mxu0 0
    %4609 = vmatpush2.bf16.msra.mxu0 %v4575
    %4610 = vmatprep.subr.bf16.mxu0 0
    %4611 = vmatpush2.bf16.msra.mxu0 %v4574
    %4612 = vmatprep.subr.bf16.mxu0 0
    %4613 = vmatpush2.bf16.msra.mxu0 %v4573
    %4614 = vmatprep.subr.bf16.mxu0 0
    %4615 = vmatpush2.bf16.msra.mxu0 %v4572
    %4616 = vmatprep.subr.bf16.mxu0 0
    %4617 = vmatpush2.bf16.msra.mxu0 %v4571
    %4618 = vmatprep.subr.bf16.mxu0 0
    %4619 = vmatpush2.bf16.msra.mxu0 %v4570
    %4620 = vmatprep.subr.bf16.mxu0 0
    %4621 = vmatpush2.bf16.msra.mxu0 %v4569
    %4622 = vmatprep.subr.bf16.mxu0 0
    %4623 = vmatpush2.bf16.msra.mxu0 %v4568
    %4624 = vmatprep.mubr.bf16.mxu0 %v4456
    %4625 = vmatmul.mubr.bf16.gmra.mxu0 %v4455
    %v4626 = vpop.f32.mrf.mxu0
    %v4627 = vadd.f32 %v4494, %v4626
    %v4628 = vpop.f32.mrf.mxu0
    %v4629 = vpop.f32.mrf.mxu0
    %v4630 = vpop.f32.mrf.mxu0
    %4631 = vdwg.mxu0
    %v4632 = vxor.u32 %v4627, 2147483648
    %v4633 = vmul.f32 %v4632, 1.442695
    %v4634 = vpow.pop %v4633
    %v4635 = vadd.f32 %v4634, 1.0
    %v4636 = vrcp.pop %v4635
    %v4637 = vmul.f32 1.0, %v4636
    %4638 = vst [vmem:[#allocation2] sm:$0xff] %v4637
    // Predicated region
    $region30: #{model_3_2_forward.1} parent=1 // pred_check
      _
    $region31: #{model_3_2_forward.1} parent=1 // pred_check_branch
      %4640 = sbr.rel (0) target = $region33
    $region32: #{model_3_2_forward.1} parent=1 // pred_region
      %s4642 = ssub.s32 128, 128
      %4643 = vsyncadd [#allocation3], %s4642
      %s4645 = sshll.u32 [#allocation2], 4
      %s4646 = int_to_ptr.vmem [resolvable:$true] %s4645
      %4648 = dma.vmem_to_hbm [thread:$0]  %s4646, 128, %s7, [#allocation3]
    $region33: #{model_3_2_forward.1} parent=1 // pred_fallthru
      _
    // Predicated region
    $region34: #{model_3_2_forward.1} parent=1 // pred_check
      _
    $region35: #{model_3_2_forward.1} parent=1 // pred_check_branch
      %4650 = sbr.rel (0) target = $region37
    $region36: #{model_3_2_forward.1} parent=1 // pred_region
      %4651 = dma.done [#allocation3], 128
    $region37: #{model_3_2_forward.1} parent=1 // pred_fallthru
      _
    %4652 = vsyncpa [#allocation3], 1

</llo_original>
